<compile_context>
chip_gen: v6e
topology: v6e:2x2x1
jax: 0.10.0
libtpu: 0.0.40
codegen_flags: <defaults>
</compile_context>

<pallas_src>
import functools
import math

import jax
import jax.numpy as jnp
from jax import lax
from jax.experimental import pallas as pl
from jax.experimental.pallas import tpu as pltpu


def _mm(a, b):
    """f32 matmul with explicit f32 accumulation."""
    return jnp.dot(a, b, preferred_element_type=jnp.float32)


def _mm_nt(a, b):
    """a @ b.T (contraction over last dims) without materializing a transpose."""
    return lax.dot_general(a, b, dimension_numbers=(((1,), (1,)), ((), ())),
                           preferred_element_type=jnp.float32)


# ----------------------------------------------------------------------------
# One TransformerConv layer (all heads, averaged, + skip, + ReLU).
#   wf_ref : [Fin, H*3*C + C]   fused [Wq*scale | Wk | Wv] per head, then Wskip
#   bf_ref : [1,   H*3*C + C]   matching fused bias row (bq pre-scaled)
#   we_ref : [H*De, C]          per-head edge projections stacked along rows
#   edge_planes : python list of De [N, N] arrays (edge_attr of edge j -> i)
# ----------------------------------------------------------------------------
def _transformer_conv(x, adj, edge_planes, wf_ref, bf_ref, we_ref, *, heads, c):
    n = x.shape[0]
    de = len(edge_planes)
    neg = jnp.float32(-1e30)

    # One wide projection for all heads' Q/K/V plus the skip connection.
    proj = _mm(x, wf_ref[...]) + bf_ref[...]            # [N, H*3*C + C]
    we_all = we_ref[...]                                 # [H*De, C]

    alphas = []      # H x [N, N]
    values = []      # H x [N, C]
    edge_sums = []   # H x [N, De]
    for h in range(heads):                               # static unroll over heads
        base = h * 3 * c
        qh = proj[:, base:base + c]                      # already scaled by 1/sqrt(C)
        kh = proj[:, base + c:base + 2 * c]
        vh = proj[:, base + 2 * c:base + 3 * c]
        we_h = we_all[h * de:(h + 1) * de, :]            # [De, C]

        # scores[i, j] = q_i . (k_j + We_h e_ij)   (scale already folded into q)
        s = _mm_nt(qh, kh)                               # [N, N]
        t = _mm_nt(qh, we_h)                             # [N, De]: t[i,d] = q_i . We_h[d,:]
        for d in range(de):
            s = s + edge_planes[d] * t[:, d:d + 1]

        # Masked softmax over incoming edges j of each target i
        # (nodes with no incoming edges aggregate to 0, matching PyG softmax).
        sm = jnp.where(adj > 0, s, neg)
        m = jnp.max(sm, axis=1, keepdims=True)
        p = jnp.exp(sm - m) * adj
        denom = jnp.sum(p, axis=1, keepdims=True)
        alpha = p * (1.0 / jnp.where(denom == 0.0, 1.0, denom))   # [N, N]

        alphas.append(alpha)
        values.append(vh)
        edge_sums.append(jnp.concatenate(
            [jnp.sum(alpha * edge_planes[d], axis=1, keepdims=True)
             for d in range(de)], axis=1))               # [N, De]

    # Batched head aggregation: the sum over heads falls out of the contraction.
    alpha_cat = jnp.concatenate(alphas, axis=1)          # [N, H*N]
    v_stack = jnp.concatenate(values, axis=0)            # [H*N, C]
    wsum_cat = jnp.concatenate(edge_sums, axis=1)        # [N, H*De]
    acc = _mm(alpha_cat, v_stack) + _mm(wsum_cat, we_all)   # [N, C]

    out = acc * (1.0 / float(heads))                     # concat=False: mean over heads
    out = out + proj[:, heads * 3 * c:heads * 3 * c + c]   # skip = x @ Wskip + bskip
    return jnp.maximum(out, 0.0)                         # ReLU from forward()


# ----------------------------------------------------------------------------
# Fused whole-model kernel: conv1 -> conv2 -> linear1(+relu) -> linear2.
# ----------------------------------------------------------------------------
def fused_model_kernel(x_ref, adj_ref, edge_ref,
                       wf1, bf1, we1,
                       wf2, bf2, we2,
                       w1_ref, b1_ref, w2_ref, b2_ref,
                       out_ref, *, heads, de, c1, c2):
    x = x_ref[...]                                       # [N, F0]
    adj = adj_ref[...]                                   # [N, N]
    edge_planes = [edge_ref[d] for d in range(de)]       # De x [N, N]

    h1 = _transformer_conv(x, adj, edge_planes, wf1, bf1, we1, heads=heads, c=c1)
    h2 = _transformer_conv(h1, adj, edge_planes, wf2, bf2, we2, heads=heads, c=c2)

    hid = jnp.maximum(_mm(h2, w1_ref[...]) + b1_ref[...], 0.0)
    out_ref[...] = _mm(hid, w2_ref[...]) + b2_ref[...]


# ----------------------------------------------------------------------------
# Parameter construction (deterministic synthetic init; PyG-like per-head
# layout) and host-side packing into the fused kernel layout.
# ----------------------------------------------------------------------------
def init_conv_params(key, fin, out_channels, heads, edge_dim):
    ks = jax.random.split(key, 6)
    s = 0.1
    return {
        "wq": s * jax.random.normal(ks[0], (heads, fin, out_channels), jnp.float32),
        "bq": jnp.zeros((heads, 1, out_channels), jnp.float32),
        "wk": s * jax.random.normal(ks[1], (heads, fin, out_channels), jnp.float32),
        "bk": jnp.zeros((heads, 1, out_channels), jnp.float32),
        "wv": s * jax.random.normal(ks[2], (heads, fin, out_channels), jnp.float32),
        "bv": jnp.zeros((heads, 1, out_channels), jnp.float32),
        # TODO(synk): PyG lin_edge has bias=True by default; modeled here as bias=0.
        "we": s * jax.random.normal(ks[3], (heads, edge_dim, out_channels), jnp.float32),
        "wskip": s * jax.random.normal(ks[4], (fin, out_channels), jnp.float32),
        "bskip": s * jax.random.normal(ks[5], (1, out_channels), jnp.float32),
    }


def init_mlp_params(key, d_in, d_hidden, n_classes):
    ks = jax.random.split(key, 4)
    s = 0.1
    return {
        "w1": s * jax.random.normal(ks[0], (d_in, d_hidden), jnp.float32),
        "b1": s * jax.random.normal(ks[1], (1, d_hidden), jnp.float32),
        "w2": s * jax.random.normal(ks[2], (d_hidden, n_classes), jnp.float32),
        "b2": s * jax.random.normal(ks[3], (1, n_classes), jnp.float32),
    }


def pack_conv_params(p):
    """Pack per-head conv params into (fused_weight, fused_bias, we_stacked)."""
    heads, _, c = p["wq"].shape
    de = p["we"].shape[1]
    scale = 1.0 / math.sqrt(float(c))
    w_blocks, b_blocks = [], []
    for h in range(heads):
        w_blocks += [p["wq"][h] * scale, p["wk"][h], p["wv"][h]]
        b_blocks += [p["bq"][h] * scale, p["bk"][h], p["bv"][h]]
    w_blocks.append(p["wskip"])
    b_blocks.append(p["bskip"])
    wf = jnp.concatenate(w_blocks, axis=1)                # [Fin, H*3*C + C]
    bf = jnp.concatenate([b.reshape(1, -1) for b in b_blocks], axis=1)  # [1, H*3*C + C]
    we = p["we"].reshape(heads * de, c)                   # [H*De, C]
    return wf, bf, we


def model_attention_forward(x, edge_index, edge_attr, params, *, heads, hidden_size):
    n = x.shape[0]
    de = edge_attr.shape[1]
    c1 = hidden_size
    c2 = hidden_size // 2
    src = edge_index[0]
    dst = edge_index[1]

    # Host glue: densify the edge list directly in [De, N, N] layout.
    # (Assumes no duplicate (src, dst) pairs — the scatter keeps only one.)
    adj = jnp.zeros((n, n), jnp.float32).at[dst, src].set(1.0)
    edge_stack = jnp.zeros((de, n, n), jnp.float32).at[:, dst, src].set(edge_attr.T)

    wf1, bf1, we1 = pack_conv_params(params["conv1"])
    wf2, bf2, we2 = pack_conv_params(params["conv2"])
    mlp = params["mlp"]

    args = (x, adj, edge_stack,
            wf1, bf1, we1,
            wf2, bf2, we2,
            mlp["w1"], mlp["b1"], mlp["w2"], mlp["b2"])

    n_classes = mlp["w2"].shape[1]
    vmem = pl.BlockSpec(memory_space=pltpu.MemorySpace.VMEM)
    kern = functools.partial(fused_model_kernel, heads=heads, de=de, c1=c1, c2=c2)
    return pl.pallas_call(
        kern,
        out_shape=jax.ShapeDtypeStruct((n, n_classes), jnp.float32),
        in_specs=[vmem] * len(args),
        out_specs=vmem,
    )(*args)


if __name__ == "__main__":
    # Small, module-consistent sizes.
    N_NODES = 16
    N_NODE_FEATURES = 4
    N_EDGE_ATTRIBUTES = 3
    N_CLASSES = 2
    HIDDEN_SIZE = 16
    HEADS = 5

    key = jax.random.PRNGKey(0)
    k_x, k_e, k_c1, k_c2, k_mlp = jax.random.split(key, 5)

    x = jax.random.normal(k_x, (N_NODES, N_NODE_FEATURES), jnp.float32)

    # Deterministic duplicate-free edge list: ring + skip-2 ring (E = 2N).
    src = jnp.concatenate([jnp.arange(N_NODES), jnp.arange(N_NODES)])
    dst = jnp.concatenate([(jnp.arange(N_NODES) + 1) % N_NODES,
                           (jnp.arange(N_NODES) + 2) % N_NODES])
    edge_index = jnp.stack([src, dst]).astype(jnp.int32)            # [2, E]
    edge_attr = jax.random.normal(k_e, (edge_index.shape[1], N_EDGE_ATTRIBUTES),
                                  jnp.float32)

    params = {
        "conv1": init_conv_params(k_c1, N_NODE_FEATURES, HIDDEN_SIZE, HEADS,
                                  N_EDGE_ATTRIBUTES),
        "conv2": init_conv_params(k_c2, HIDDEN_SIZE, HIDDEN_SIZE // 2, HEADS,
                                  N_EDGE_ATTRIBUTES),
        "mlp": init_mlp_params(k_mlp, HIDDEN_SIZE // 2, HIDDEN_SIZE, N_CLASSES),
    }

    logits = model_attention_forward(x, edge_index, edge_attr, params,
                                     heads=HEADS, hidden_size=HIDDEN_SIZE)
    logits = jax.block_until_ready(logits)
    assert logits.shape == (N_NODES, N_CLASSES)
    assert bool(jnp.all(jnp.isfinite(logits)))
    print("KERNEL_OK")
</pallas_src>

<mosaic_0001>
module attributes {stable_mosaic.version = 11 : i64} {
  func.func @fused_model_kernel(%arg0: memref<16x4xf32, #tpu.memory_space<vmem>>, %arg1: memref<16x16xf32, #tpu.memory_space<vmem>>, %arg2: memref<3x16x16xf32, #tpu.memory_space<vmem>>, %arg3: memref<4x256xf32, #tpu.memory_space<vmem>>, %arg4: memref<1x256xf32, #tpu.memory_space<vmem>>, %arg5: memref<15x16xf32, #tpu.memory_space<vmem>>, %arg6: memref<16x128xf32, #tpu.memory_space<vmem>>, %arg7: memref<1x128xf32, #tpu.memory_space<vmem>>, %arg8: memref<15x8xf32, #tpu.memory_space<vmem>>, %arg9: memref<8x16xf32, #tpu.memory_space<vmem>>, %arg10: memref<1x16xf32, #tpu.memory_space<vmem>>, %arg11: memref<16x2xf32, #tpu.memory_space<vmem>>, %arg12: memref<1x2xf32, #tpu.memory_space<vmem>>, %arg13: memref<16x2xf32, #tpu.memory_space<vmem>>) attributes {dimension_semantics = [], scalar_prefetch = 0 : i64, scratch_operands = 0 : i64, tpu.core_type = #tpu.core_type<tc>} {
    %c0 = arith.constant 0 : index
    %c0_0 = arith.constant 0 : index
    %0 = vector.load %arg0[%c0, %c0_0] : memref<16x4xf32, #tpu.memory_space<vmem>>, vector<16x4xf32>
    %c0_1 = arith.constant 0 : index
    %c0_2 = arith.constant 0 : index
    %1 = vector.load %arg1[%c0_1, %c0_2] : memref<16x16xf32, #tpu.memory_space<vmem>>, vector<16x16xf32>
    %c0_3 = arith.constant 0 : index
    %c0_4 = arith.constant 0 : index
    %c0_5 = arith.constant 0 : index
    %2 = vector.load %arg2[%c0_3, %c0_4, %c0_5] : memref<3x16x16xf32, #tpu.memory_space<vmem>>, vector<1x16x16xf32>
    %3 = vector.shape_cast %2 : vector<1x16x16xf32> to vector<16x16xf32>
    %c1 = arith.constant 1 : index
    %c0_6 = arith.constant 0 : index
    %c0_7 = arith.constant 0 : index
    %4 = vector.load %arg2[%c1, %c0_6, %c0_7] : memref<3x16x16xf32, #tpu.memory_space<vmem>>, vector<1x16x16xf32>
    %5 = vector.shape_cast %4 : vector<1x16x16xf32> to vector<16x16xf32>
    %c2 = arith.constant 2 : index
    %c0_8 = arith.constant 0 : index
    %c0_9 = arith.constant 0 : index
    %6 = vector.load %arg2[%c2, %c0_8, %c0_9] : memref<3x16x16xf32, #tpu.memory_space<vmem>>, vector<1x16x16xf32>
    %7 = vector.shape_cast %6 : vector<1x16x16xf32> to vector<16x16xf32>
    %c0_10 = arith.constant 0 : index
    %c0_11 = arith.constant 0 : index
    %8 = vector.load %arg3[%c0_10, %c0_11] : memref<4x256xf32, #tpu.memory_space<vmem>>, vector<4x256xf32>
    %cst = arith.constant dense<0.000000e+00> : vector<16x256xf32>
    %9 = tpu.matmul %0, %8, %cst {dimension_numbers = #tpu.dot_dimension_numbers<[1], [0], [0], [1], [0, 0, 1, 1], [], []>} : vector<16x4xf32>, vector<4x256xf32>, vector<16x256xf32> -> vector<16x256xf32>
    %c0_12 = arith.constant 0 : index
    %c0_13 = arith.constant 0 : index
    %10 = vector.load %arg4[%c0_12, %c0_13] : memref<1x256xf32, #tpu.memory_space<vmem>>, vector<1x256xf32>
    %11 = vector.broadcast %10 : vector<1x256xf32> to vector<16x256xf32>
    %12 = arith.addf %9, %11 : vector<16x256xf32>
    %c0_14 = arith.constant 0 : index
    %c0_15 = arith.constant 0 : index
    %13 = vector.load %arg5[%c0_14, %c0_15] : memref<15x16xf32, #tpu.memory_space<vmem>>, vector<15x16xf32>
    %14 = vector.extract_strided_slice %12 {offsets = [0, 0], sizes = [16, 16], strides = [1, 1]} : vector<16x256xf32> to vector<16x16xf32>
    %15 = vector.extract_strided_slice %12 {offsets = [0, 16], sizes = [16, 16], strides = [1, 1]} : vector<16x256xf32> to vector<16x16xf32>
    %16 = vector.extract_strided_slice %12 {offsets = [0, 32], sizes = [16, 16], strides = [1, 1]} : vector<16x256xf32> to vector<16x16xf32>
    %17 = vector.extract_strided_slice %13 {offsets = [0, 0], sizes = [3, 16], strides = [1, 1]} : vector<15x16xf32> to vector<3x16xf32>
    %cst_16 = arith.constant dense<0.000000e+00> : vector<16x16xf32>
    %18 = tpu.matmul %14, %15, %cst_16 {dimension_numbers = #tpu.dot_dimension_numbers<[1], [1], [0], [0], [0, 0, 1, 0], [], []>} : vector<16x16xf32>, vector<16x16xf32>, vector<16x16xf32> -> vector<16x16xf32>
    %cst_17 = arith.constant dense<0.000000e+00> : vector<16x3xf32>
    %19 = tpu.matmul %14, %17, %cst_17 {dimension_numbers = #tpu.dot_dimension_numbers<[1], [1], [0], [0], [0, 0, 1, 0], [], []>} : vector<16x16xf32>, vector<3x16xf32>, vector<16x3xf32> -> vector<16x3xf32>
    %20 = vector.extract_strided_slice %19 {offsets = [0, 0], sizes = [16, 1], strides = [1, 1]} : vector<16x3xf32> to vector<16x1xf32>
    %21 = vector.broadcast %20 : vector<16x1xf32> to vector<16x16xf32>
    %22 = arith.mulf %3, %21 : vector<16x16xf32>
    %23 = arith.addf %18, %22 : vector<16x16xf32>
    %24 = vector.extract_strided_slice %19 {offsets = [0, 1], sizes = [16, 1], strides = [1, 1]} : vector<16x3xf32> to vector<16x1xf32>
    %25 = vector.broadcast %24 : vector<16x1xf32> to vector<16x16xf32>
    %26 = arith.mulf %5, %25 : vector<16x16xf32>
    %27 = arith.addf %23, %26 : vector<16x16xf32>
    %28 = vector.extract_strided_slice %19 {offsets = [0, 2], sizes = [16, 1], strides = [1, 1]} : vector<16x3xf32> to vector<16x1xf32>
    %29 = vector.broadcast %28 : vector<16x1xf32> to vector<16x16xf32>
    %30 = arith.mulf %7, %29 : vector<16x16xf32>
    %31 = arith.addf %27, %30 : vector<16x16xf32>
    %cst_18 = arith.constant 0.000000e+00 : f32
    %32 = vector.broadcast %cst_18 : f32 to vector<16x16xf32>
    %33 = arith.cmpf ogt, %1, %32 : vector<16x16xf32>
    %cst_19 = arith.constant -1.000000e+30 : f32
    %34 = vector.broadcast %cst_19 : f32 to vector<16x16xf32>
    %35 = arith.select %33, %31, %34 : vector<16x16xi1>, vector<16x16xf32>
    %cst_20 = arith.constant dense<0xFF800000> : vector<16xf32>
    %36 = vector.multi_reduction <maximumf>, %35, %cst_20 [1] : vector<16x16xf32> to vector<16xf32>
    %37 = vector.shape_cast %36 : vector<16xf32> to vector<16x1xf32>
    %38 = vector.broadcast %37 : vector<16x1xf32> to vector<16x16xf32>
    %39 = arith.subf %35, %38 : vector<16x16xf32>
    %40 = math.exp %39 : vector<16x16xf32>
    %41 = arith.mulf %40, %1 : vector<16x16xf32>
    %cst_21 = arith.constant dense<0.000000e+00> : vector<16xf32>
    %42 = vector.multi_reduction <add>, %41, %cst_21 [1] : vector<16x16xf32> to vector<16xf32>
    %43 = vector.shape_cast %42 : vector<16xf32> to vector<16x1xf32>
    %cst_22 = arith.constant 0.000000e+00 : f32
    %44 = vector.broadcast %cst_22 : f32 to vector<16x1xf32>
    %45 = arith.cmpf oeq, %43, %44 : vector<16x1xf32>
    %cst_23 = arith.constant 1.000000e+00 : f32
    %46 = vector.broadcast %cst_23 : f32 to vector<16x1xf32>
    %47 = arith.select %45, %46, %43 : vector<16x1xi1>, vector<16x1xf32>
    %cst_24 = arith.constant 1.000000e+00 : f32
    %48 = vector.broadcast %cst_24 : f32 to vector<16x1xf32>
    %49 = arith.divf %48, %47 : vector<16x1xf32>
    %50 = vector.broadcast %49 : vector<16x1xf32> to vector<16x16xf32>
    %51 = arith.mulf %41, %50 : vector<16x16xf32>
    %52 = arith.mulf %51, %3 : vector<16x16xf32>
    %cst_25 = arith.constant dense<0.000000e+00> : vector<16xf32>
    %53 = vector.multi_reduction <add>, %52, %cst_25 [1] : vector<16x16xf32> to vector<16xf32>
    %54 = vector.shape_cast %53 : vector<16xf32> to vector<16x1xf32>
    %55 = arith.mulf %51, %5 : vector<16x16xf32>
    %cst_26 = arith.constant dense<0.000000e+00> : vector<16xf32>
    %56 = vector.multi_reduction <add>, %55, %cst_26 [1] : vector<16x16xf32> to vector<16xf32>
    %57 = vector.shape_cast %56 : vector<16xf32> to vector<16x1xf32>
    %58 = arith.mulf %51, %7 : vector<16x16xf32>
    %cst_27 = arith.constant dense<0.000000e+00> : vector<16xf32>
    %59 = vector.multi_reduction <add>, %58, %cst_27 [1] : vector<16x16xf32> to vector<16xf32>
    %60 = vector.shape_cast %59 : vector<16xf32> to vector<16x1xf32>
    %61 = tpu.concatenate %54, %57, %60 in 1 : vector<16x1xf32>, vector<16x1xf32>, vector<16x1xf32> -> vector<16x3xf32>
    %62 = vector.extract_strided_slice %12 {offsets = [0, 48], sizes = [16, 16], strides = [1, 1]} : vector<16x256xf32> to vector<16x16xf32>
    %63 = vector.extract_strided_slice %12 {offsets = [0, 64], sizes = [16, 16], strides = [1, 1]} : vector<16x256xf32> to vector<16x16xf32>
    %64 = vector.extract_strided_slice %12 {offsets = [0, 80], sizes = [16, 16], strides = [1, 1]} : vector<16x256xf32> to vector<16x16xf32>
    %65 = vector.extract_strided_slice %13 {offsets = [3, 0], sizes = [3, 16], strides = [1, 1]} : vector<15x16xf32> to vector<3x16xf32>
    %cst_28 = arith.constant dense<0.000000e+00> : vector<16x16xf32>
    %66 = tpu.matmul %62, %63, %cst_28 {dimension_numbers = #tpu.dot_dimension_numbers<[1], [1], [0], [0], [0, 0, 1, 0], [], []>} : vector<16x16xf32>, vector<16x16xf32>, vector<16x16xf32> -> vector<16x16xf32>
    %cst_29 = arith.constant dense<0.000000e+00> : vector<16x3xf32>
    %67 = tpu.matmul %62, %65, %cst_29 {dimension_numbers = #tpu.dot_dimension_numbers<[1], [1], [0], [0], [0, 0, 1, 0], [], []>} : vector<16x16xf32>, vector<3x16xf32>, vector<16x3xf32> -> vector<16x3xf32>
    %68 = vector.extract_strided_slice %67 {offsets = [0, 0], sizes = [16, 1], strides = [1, 1]} : vector<16x3xf32> to vector<16x1xf32>
    %69 = vector.broadcast %68 : vector<16x1xf32> to vector<16x16xf32>
    %70 = arith.mulf %3, %69 : vector<16x16xf32>
    %71 = arith.addf %66, %70 : vector<16x16xf32>
    %72 = vector.extract_strided_slice %67 {offsets = [0, 1], sizes = [16, 1], strides = [1, 1]} : vector<16x3xf32> to vector<16x1xf32>
    %73 = vector.broadcast %72 : vector<16x1xf32> to vector<16x16xf32>
    %74 = arith.mulf %5, %73 : vector<16x16xf32>
    %75 = arith.addf %71, %74 : vector<16x16xf32>
    %76 = vector.extract_strided_slice %67 {offsets = [0, 2], sizes = [16, 1], strides = [1, 1]} : vector<16x3xf32> to vector<16x1xf32>
    %77 = vector.broadcast %76 : vector<16x1xf32> to vector<16x16xf32>
    %78 = arith.mulf %7, %77 : vector<16x16xf32>
    %79 = arith.addf %75, %78 : vector<16x16xf32>
    %cst_30 = arith.constant 0.000000e+00 : f32
    %80 = vector.broadcast %cst_30 : f32 to vector<16x16xf32>
    %81 = arith.cmpf ogt, %1, %80 : vector<16x16xf32>
    %cst_31 = arith.constant -1.000000e+30 : f32
    %82 = vector.broadcast %cst_31 : f32 to vector<16x16xf32>
    %83 = arith.select %81, %79, %82 : vector<16x16xi1>, vector<16x16xf32>
    %cst_32 = arith.constant dense<0xFF800000> : vector<16xf32>
    %84 = vector.multi_reduction <maximumf>, %83, %cst_32 [1] : vector<16x16xf32> to vector<16xf32>
    %85 = vector.shape_cast %84 : vector<16xf32> to vector<16x1xf32>
    %86 = vector.broadcast %85 : vector<16x1xf32> to vector<16x16xf32>
    %87 = arith.subf %83, %86 : vector<16x16xf32>
    %88 = math.exp %87 : vector<16x16xf32>
    %89 = arith.mulf %88, %1 : vector<16x16xf32>
    %cst_33 = arith.constant dense<0.000000e+00> : vector<16xf32>
    %90 = vector.multi_reduction <add>, %89, %cst_33 [1] : vector<16x16xf32> to vector<16xf32>
    %91 = vector.shape_cast %90 : vector<16xf32> to vector<16x1xf32>
    %cst_34 = arith.constant 0.000000e+00 : f32
    %92 = vector.broadcast %cst_34 : f32 to vector<16x1xf32>
    %93 = arith.cmpf oeq, %91, %92 : vector<16x1xf32>
    %cst_35 = arith.constant 1.000000e+00 : f32
    %94 = vector.broadcast %cst_35 : f32 to vector<16x1xf32>
    %95 = arith.select %93, %94, %91 : vector<16x1xi1>, vector<16x1xf32>
    %cst_36 = arith.constant 1.000000e+00 : f32
    %96 = vector.broadcast %cst_36 : f32 to vector<16x1xf32>
    %97 = arith.divf %96, %95 : vector<16x1xf32>
    %98 = vector.broadcast %97 : vector<16x1xf32> to vector<16x16xf32>
    %99 = arith.mulf %89, %98 : vector<16x16xf32>
    %100 = arith.mulf %99, %3 : vector<16x16xf32>
    %cst_37 = arith.constant dense<0.000000e+00> : vector<16xf32>
    %101 = vector.multi_reduction <add>, %100, %cst_37 [1] : vector<16x16xf32> to vector<16xf32>
    %102 = vector.shape_cast %101 : vector<16xf32> to vector<16x1xf32>
    %103 = arith.mulf %99, %5 : vector<16x16xf32>
    %cst_38 = arith.constant dense<0.000000e+00> : vector<16xf32>
    %104 = vector.multi_reduction <add>, %103, %cst_38 [1] : vector<16x16xf32> to vector<16xf32>
    %105 = vector.shape_cast %104 : vector<16xf32> to vector<16x1xf32>
    %106 = arith.mulf %99, %7 : vector<16x16xf32>
    %cst_39 = arith.constant dense<0.000000e+00> : vector<16xf32>
    %107 = vector.multi_reduction <add>, %106, %cst_39 [1] : vector<16x16xf32> to vector<16xf32>
    %108 = vector.shape_cast %107 : vector<16xf32> to vector<16x1xf32>
    %109 = tpu.concatenate %102, %105, %108 in 1 : vector<16x1xf32>, vector<16x1xf32>, vector<16x1xf32> -> vector<16x3xf32>
    %110 = vector.extract_strided_slice %12 {offsets = [0, 96], sizes = [16, 16], strides = [1, 1]} : vector<16x256xf32> to vector<16x16xf32>
    %111 = vector.extract_strided_slice %12 {offsets = [0, 112], sizes = [16, 16], strides = [1, 1]} : vector<16x256xf32> to vector<16x16xf32>
    %112 = vector.extract_strided_slice %12 {offsets = [0, 128], sizes = [16, 16], strides = [1, 1]} : vector<16x256xf32> to vector<16x16xf32>
    %113 = vector.extract_strided_slice %13 {offsets = [6, 0], sizes = [3, 16], strides = [1, 1]} : vector<15x16xf32> to vector<3x16xf32>
    %cst_40 = arith.constant dense<0.000000e+00> : vector<16x16xf32>
    %114 = tpu.matmul %110, %111, %cst_40 {dimension_numbers = #tpu.dot_dimension_numbers<[1], [1], [0], [0], [0, 0, 1, 0], [], []>} : vector<16x16xf32>, vector<16x16xf32>, vector<16x16xf32> -> vector<16x16xf32>
    %cst_41 = arith.constant dense<0.000000e+00> : vector<16x3xf32>
    %115 = tpu.matmul %110, %113, %cst_41 {dimension_numbers = #tpu.dot_dimension_numbers<[1], [1], [0], [0], [0, 0, 1, 0], [], []>} : vector<16x16xf32>, vector<3x16xf32>, vector<16x3xf32> -> vector<16x3xf32>
    %116 = vector.extract_strided_slice %115 {offsets = [0, 0], sizes = [16, 1], strides = [1, 1]} : vector<16x3xf32> to vector<16x1xf32>
    %117 = vector.broadcast %116 : vector<16x1xf32> to vector<16x16xf32>
    %118 = arith.mulf %3, %117 : vector<16x16xf32>
    %119 = arith.addf %114, %118 : vector<16x16xf32>
    %120 = vector.extract_strided_slice %115 {offsets = [0, 1], sizes = [16, 1], strides = [1, 1]} : vector<16x3xf32> to vector<16x1xf32>
    %121 = vector.broadcast %120 : vector<16x1xf32> to vector<16x16xf32>
    %122 = arith.mulf %5, %121 : vector<16x16xf32>
    %123 = arith.addf %119, %122 : vector<16x16xf32>
    %124 = vector.extract_strided_slice %115 {offsets = [0, 2], sizes = [16, 1], strides = [1, 1]} : vector<16x3xf32> to vector<16x1xf32>
    %125 = vector.broadcast %124 : vector<16x1xf32> to vector<16x16xf32>
    %126 = arith.mulf %7, %125 : vector<16x16xf32>
    %127 = arith.addf %123, %126 : vector<16x16xf32>
    %cst_42 = arith.constant 0.000000e+00 : f32
    %128 = vector.broadcast %cst_42 : f32 to vector<16x16xf32>
    %129 = arith.cmpf ogt, %1, %128 : vector<16x16xf32>
    %cst_43 = arith.constant -1.000000e+30 : f32
    %130 = vector.broadcast %cst_43 : f32 to vector<16x16xf32>
    %131 = arith.select %129, %127, %130 : vector<16x16xi1>, vector<16x16xf32>
    %cst_44 = arith.constant dense<0xFF800000> : vector<16xf32>
    %132 = vector.multi_reduction <maximumf>, %131, %cst_44 [1] : vector<16x16xf32> to vector<16xf32>
    %133 = vector.shape_cast %132 : vector<16xf32> to vector<16x1xf32>
    %134 = vector.broadcast %133 : vector<16x1xf32> to vector<16x16xf32>
    %135 = arith.subf %131, %134 : vector<16x16xf32>
    %136 = math.exp %135 : vector<16x16xf32>
    %137 = arith.mulf %136, %1 : vector<16x16xf32>
    %cst_45 = arith.constant dense<0.000000e+00> : vector<16xf32>
    %138 = vector.multi_reduction <add>, %137, %cst_45 [1] : vector<16x16xf32> to vector<16xf32>
    %139 = vector.shape_cast %138 : vector<16xf32> to vector<16x1xf32>
    %cst_46 = arith.constant 0.000000e+00 : f32
    %140 = vector.broadcast %cst_46 : f32 to vector<16x1xf32>
    %141 = arith.cmpf oeq, %139, %140 : vector<16x1xf32>
    %cst_47 = arith.constant 1.000000e+00 : f32
    %142 = vector.broadcast %cst_47 : f32 to vector<16x1xf32>
    %143 = arith.select %141, %142, %139 : vector<16x1xi1>, vector<16x1xf32>
    %cst_48 = arith.constant 1.000000e+00 : f32
    %144 = vector.broadcast %cst_48 : f32 to vector<16x1xf32>
    %145 = arith.divf %144, %143 : vector<16x1xf32>
    %146 = vector.broadcast %145 : vector<16x1xf32> to vector<16x16xf32>
    %147 = arith.mulf %137, %146 : vector<16x16xf32>
    %148 = arith.mulf %147, %3 : vector<16x16xf32>
    %cst_49 = arith.constant dense<0.000000e+00> : vector<16xf32>
    %149 = vector.multi_reduction <add>, %148, %cst_49 [1] : vector<16x16xf32> to vector<16xf32>
    %150 = vector.shape_cast %149 : vector<16xf32> to vector<16x1xf32>
    %151 = arith.mulf %147, %5 : vector<16x16xf32>
    %cst_50 = arith.constant dense<0.000000e+00> : vector<16xf32>
    %152 = vector.multi_reduction <add>, %151, %cst_50 [1] : vector<16x16xf32> to vector<16xf32>
    %153 = vector.shape_cast %152 : vector<16xf32> to vector<16x1xf32>
    %154 = arith.mulf %147, %7 : vector<16x16xf32>
    %cst_51 = arith.constant dense<0.000000e+00> : vector<16xf32>
    %155 = vector.multi_reduction <add>, %154, %cst_51 [1] : vector<16x16xf32> to vector<16xf32>
    %156 = vector.shape_cast %155 : vector<16xf32> to vector<16x1xf32>
    %157 = tpu.concatenate %150, %153, %156 in 1 : vector<16x1xf32>, vector<16x1xf32>, vector<16x1xf32> -> vector<16x3xf32>
    %158 = vector.extract_strided_slice %12 {offsets = [0, 144], sizes = [16, 16], strides = [1, 1]} : vector<16x256xf32> to vector<16x16xf32>
    %159 = vector.extract_strided_slice %12 {offsets = [0, 160], sizes = [16, 16], strides = [1, 1]} : vector<16x256xf32> to vector<16x16xf32>
    %160 = vector.extract_strided_slice %12 {offsets = [0, 176], sizes = [16, 16], strides = [1, 1]} : vector<16x256xf32> to vector<16x16xf32>
    %161 = vector.extract_strided_slice %13 {offsets = [9, 0], sizes = [3, 16], strides = [1, 1]} : vector<15x16xf32> to vector<3x16xf32>
    %cst_52 = arith.constant dense<0.000000e+00> : vector<16x16xf32>
    %162 = tpu.matmul %158, %159, %cst_52 {dimension_numbers = #tpu.dot_dimension_numbers<[1], [1], [0], [0], [0, 0, 1, 0], [], []>} : vector<16x16xf32>, vector<16x16xf32>, vector<16x16xf32> -> vector<16x16xf32>
    %cst_53 = arith.constant dense<0.000000e+00> : vector<16x3xf32>
    %163 = tpu.matmul %158, %161, %cst_53 {dimension_numbers = #tpu.dot_dimension_numbers<[1], [1], [0], [0], [0, 0, 1, 0], [], []>} : vector<16x16xf32>, vector<3x16xf32>, vector<16x3xf32> -> vector<16x3xf32>
    %164 = vector.extract_strided_slice %163 {offsets = [0, 0], sizes = [16, 1], strides = [1, 1]} : vector<16x3xf32> to vector<16x1xf32>
    %165 = vector.broadcast %164 : vector<16x1xf32> to vector<16x16xf32>
    %166 = arith.mulf %3, %165 : vector<16x16xf32>
    %167 = arith.addf %162, %166 : vector<16x16xf32>
    %168 = vector.extract_strided_slice %163 {offsets = [0, 1], sizes = [16, 1], strides = [1, 1]} : vector<16x3xf32> to vector<16x1xf32>
    %169 = vector.broadcast %168 : vector<16x1xf32> to vector<16x16xf32>
    %170 = arith.mulf %5, %169 : vector<16x16xf32>
    %171 = arith.addf %167, %170 : vector<16x16xf32>
    %172 = vector.extract_strided_slice %163 {offsets = [0, 2], sizes = [16, 1], strides = [1, 1]} : vector<16x3xf32> to vector<16x1xf32>
    %173 = vector.broadcast %172 : vector<16x1xf32> to vector<16x16xf32>
    %174 = arith.mulf %7, %173 : vector<16x16xf32>
    %175 = arith.addf %171, %174 : vector<16x16xf32>
    %cst_54 = arith.constant 0.000000e+00 : f32
    %176 = vector.broadcast %cst_54 : f32 to vector<16x16xf32>
    %177 = arith.cmpf ogt, %1, %176 : vector<16x16xf32>
    %cst_55 = arith.constant -1.000000e+30 : f32
    %178 = vector.broadcast %cst_55 : f32 to vector<16x16xf32>
    %179 = arith.select %177, %175, %178 : vector<16x16xi1>, vector<16x16xf32>
    %cst_56 = arith.constant dense<0xFF800000> : vector<16xf32>
    %180 = vector.multi_reduction <maximumf>, %179, %cst_56 [1] : vector<16x16xf32> to vector<16xf32>
    %181 = vector.shape_cast %180 : vector<16xf32> to vector<16x1xf32>
    %182 = vector.broadcast %181 : vector<16x1xf32> to vector<16x16xf32>
    %183 = arith.subf %179, %182 : vector<16x16xf32>
    %184 = math.exp %183 : vector<16x16xf32>
    %185 = arith.mulf %184, %1 : vector<16x16xf32>
    %cst_57 = arith.constant dense<0.000000e+00> : vector<16xf32>
    %186 = vector.multi_reduction <add>, %185, %cst_57 [1] : vector<16x16xf32> to vector<16xf32>
    %187 = vector.shape_cast %186 : vector<16xf32> to vector<16x1xf32>
    %cst_58 = arith.constant 0.000000e+00 : f32
    %188 = vector.broadcast %cst_58 : f32 to vector<16x1xf32>
    %189 = arith.cmpf oeq, %187, %188 : vector<16x1xf32>
    %cst_59 = arith.constant 1.000000e+00 : f32
    %190 = vector.broadcast %cst_59 : f32 to vector<16x1xf32>
    %191 = arith.select %189, %190, %187 : vector<16x1xi1>, vector<16x1xf32>
    %cst_60 = arith.constant 1.000000e+00 : f32
    %192 = vector.broadcast %cst_60 : f32 to vector<16x1xf32>
    %193 = arith.divf %192, %191 : vector<16x1xf32>
    %194 = vector.broadcast %193 : vector<16x1xf32> to vector<16x16xf32>
    %195 = arith.mulf %185, %194 : vector<16x16xf32>
    %196 = arith.mulf %195, %3 : vector<16x16xf32>
    %cst_61 = arith.constant dense<0.000000e+00> : vector<16xf32>
    %197 = vector.multi_reduction <add>, %196, %cst_61 [1] : vector<16x16xf32> to vector<16xf32>
    %198 = vector.shape_cast %197 : vector<16xf32> to vector<16x1xf32>
    %199 = arith.mulf %195, %5 : vector<16x16xf32>
    %cst_62 = arith.constant dense<0.000000e+00> : vector<16xf32>
    %200 = vector.multi_reduction <add>, %199, %cst_62 [1] : vector<16x16xf32> to vector<16xf32>
    %201 = vector.shape_cast %200 : vector<16xf32> to vector<16x1xf32>
    %202 = arith.mulf %195, %7 : vector<16x16xf32>
    %cst_63 = arith.constant dense<0.000000e+00> : vector<16xf32>
    %203 = vector.multi_reduction <add>, %202, %cst_63 [1] : vector<16x16xf32> to vector<16xf32>
    %204 = vector.shape_cast %203 : vector<16xf32> to vector<16x1xf32>
    %205 = tpu.concatenate %198, %201, %204 in 1 : vector<16x1xf32>, vector<16x1xf32>, vector<16x1xf32> -> vector<16x3xf32>
    %206 = vector.extract_strided_slice %12 {offsets = [0, 192], sizes = [16, 16], strides = [1, 1]} : vector<16x256xf32> to vector<16x16xf32>
    %207 = vector.extract_strided_slice %12 {offsets = [0, 208], sizes = [16, 16], strides = [1, 1]} : vector<16x256xf32> to vector<16x16xf32>
    %208 = vector.extract_strided_slice %12 {offsets = [0, 224], sizes = [16, 16], strides = [1, 1]} : vector<16x256xf32> to vector<16x16xf32>
    %209 = vector.extract_strided_slice %13 {offsets = [12, 0], sizes = [3, 16], strides = [1, 1]} : vector<15x16xf32> to vector<3x16xf32>
    %cst_64 = arith.constant dense<0.000000e+00> : vector<16x16xf32>
    %210 = tpu.matmul %206, %207, %cst_64 {dimension_numbers = #tpu.dot_dimension_numbers<[1], [1], [0], [0], [0, 0, 1, 0], [], []>} : vector<16x16xf32>, vector<16x16xf32>, vector<16x16xf32> -> vector<16x16xf32>
    %cst_65 = arith.constant dense<0.000000e+00> : vector<16x3xf32>
    %211 = tpu.matmul %206, %209, %cst_65 {dimension_numbers = #tpu.dot_dimension_numbers<[1], [1], [0], [0], [0, 0, 1, 0], [], []>} : vector<16x16xf32>, vector<3x16xf32>, vector<16x3xf32> -> vector<16x3xf32>
    %212 = vector.extract_strided_slice %211 {offsets = [0, 0], sizes = [16, 1], strides = [1, 1]} : vector<16x3xf32> to vector<16x1xf32>
    %213 = vector.broadcast %212 : vector<16x1xf32> to vector<16x16xf32>
    %214 = arith.mulf %3, %213 : vector<16x16xf32>
    %215 = arith.addf %210, %214 : vector<16x16xf32>
    %216 = vector.extract_strided_slice %211 {offsets = [0, 1], sizes = [16, 1], strides = [1, 1]} : vector<16x3xf32> to vector<16x1xf32>
    %217 = vector.broadcast %216 : vector<16x1xf32> to vector<16x16xf32>
    %218 = arith.mulf %5, %217 : vector<16x16xf32>
    %219 = arith.addf %215, %218 : vector<16x16xf32>
    %220 = vector.extract_strided_slice %211 {offsets = [0, 2], sizes = [16, 1], strides = [1, 1]} : vector<16x3xf32> to vector<16x1xf32>
    %221 = vector.broadcast %220 : vector<16x1xf32> to vector<16x16xf32>
    %222 = arith.mulf %7, %221 : vector<16x16xf32>
    %223 = arith.addf %219, %222 : vector<16x16xf32>
    %cst_66 = arith.constant 0.000000e+00 : f32
    %224 = vector.broadcast %cst_66 : f32 to vector<16x16xf32>
    %225 = arith.cmpf ogt, %1, %224 : vector<16x16xf32>
    %cst_67 = arith.constant -1.000000e+30 : f32
    %226 = vector.broadcast %cst_67 : f32 to vector<16x16xf32>
    %227 = arith.select %225, %223, %226 : vector<16x16xi1>, vector<16x16xf32>
    %cst_68 = arith.constant dense<0xFF800000> : vector<16xf32>
    %228 = vector.multi_reduction <maximumf>, %227, %cst_68 [1] : vector<16x16xf32> to vector<16xf32>
    %229 = vector.shape_cast %228 : vector<16xf32> to vector<16x1xf32>
    %230 = vector.broadcast %229 : vector<16x1xf32> to vector<16x16xf32>
    %231 = arith.subf %227, %230 : vector<16x16xf32>
    %232 = math.exp %231 : vector<16x16xf32>
    %233 = arith.mulf %232, %1 : vector<16x16xf32>
    %cst_69 = arith.constant dense<0.000000e+00> : vector<16xf32>
    %234 = vector.multi_reduction <add>, %233, %cst_69 [1] : vector<16x16xf32> to vector<16xf32>
    %235 = vector.shape_cast %234 : vector<16xf32> to vector<16x1xf32>
    %cst_70 = arith.constant 0.000000e+00 : f32
    %236 = vector.broadcast %cst_70 : f32 to vector<16x1xf32>
    %237 = arith.cmpf oeq, %235, %236 : vector<16x1xf32>
    %cst_71 = arith.constant 1.000000e+00 : f32
    %238 = vector.broadcast %cst_71 : f32 to vector<16x1xf32>
    %239 = arith.select %237, %238, %235 : vector<16x1xi1>, vector<16x1xf32>
    %cst_72 = arith.constant 1.000000e+00 : f32
    %240 = vector.broadcast %cst_72 : f32 to vector<16x1xf32>
    %241 = arith.divf %240, %239 : vector<16x1xf32>
    %242 = vector.broadcast %241 : vector<16x1xf32> to vector<16x16xf32>
    %243 = arith.mulf %233, %242 : vector<16x16xf32>
    %244 = arith.mulf %243, %3 : vector<16x16xf32>
    %cst_73 = arith.constant dense<0.000000e+00> : vector<16xf32>
    %245 = vector.multi_reduction <add>, %244, %cst_73 [1] : vector<16x16xf32> to vector<16xf32>
    %246 = vector.shape_cast %245 : vector<16xf32> to vector<16x1xf32>
    %247 = arith.mulf %243, %5 : vector<16x16xf32>
    %cst_74 = arith.constant dense<0.000000e+00> : vector<16xf32>
    %248 = vector.multi_reduction <add>, %247, %cst_74 [1] : vector<16x16xf32> to vector<16xf32>
    %249 = vector.shape_cast %248 : vector<16xf32> to vector<16x1xf32>
    %250 = arith.mulf %243, %7 : vector<16x16xf32>
    %cst_75 = arith.constant dense<0.000000e+00> : vector<16xf32>
    %251 = vector.multi_reduction <add>, %250, %cst_75 [1] : vector<16x16xf32> to vector<16xf32>
    %252 = vector.shape_cast %251 : vector<16xf32> to vector<16x1xf32>
    %253 = tpu.concatenate %246, %249, %252 in 1 : vector<16x1xf32>, vector<16x1xf32>, vector<16x1xf32> -> vector<16x3xf32>
    %254 = tpu.concatenate %51, %99, %147, %195, %243 in 1 : vector<16x16xf32>, vector<16x16xf32>, vector<16x16xf32>, vector<16x16xf32>, vector<16x16xf32> -> vector<16x80xf32>
    %255 = tpu.concatenate %16, %64, %112, %160, %208 in 0 : vector<16x16xf32>, vector<16x16xf32>, vector<16x16xf32>, vector<16x16xf32>, vector<16x16xf32> -> vector<80x16xf32>
    %256 = tpu.concatenate %61, %109, %157, %205, %253 in 1 : vector<16x3xf32>, vector<16x3xf32>, vector<16x3xf32>, vector<16x3xf32>, vector<16x3xf32> -> vector<16x15xf32>
    %cst_76 = arith.constant dense<0.000000e+00> : vector<16x16xf32>
    %257 = tpu.matmul %254, %255, %cst_76 {dimension_numbers = #tpu.dot_dimension_numbers<[1], [0], [0], [1], [0, 0, 1, 1], [], []>} : vector<16x80xf32>, vector<80x16xf32>, vector<16x16xf32> -> vector<16x16xf32>
    %cst_77 = arith.constant dense<0.000000e+00> : vector<16x16xf32>
    %258 = tpu.matmul %256, %13, %cst_77 {dimension_numbers = #tpu.dot_dimension_numbers<[1], [0], [0], [1], [0, 0, 1, 1], [], []>} : vector<16x15xf32>, vector<15x16xf32>, vector<16x16xf32> -> vector<16x16xf32>
    %259 = arith.addf %257, %258 : vector<16x16xf32>
    %cst_78 = arith.constant 2.000000e-01 : f32
    %260 = vector.broadcast %cst_78 : f32 to vector<16x16xf32>
    %261 = arith.mulf %259, %260 : vector<16x16xf32>
    %262 = vector.extract_strided_slice %12 {offsets = [0, 240], sizes = [16, 16], strides = [1, 1]} : vector<16x256xf32> to vector<16x16xf32>
    %263 = arith.addf %261, %262 : vector<16x16xf32>
    %cst_79 = arith.constant 0.000000e+00 : f32
    %264 = vector.broadcast %cst_79 : f32 to vector<16x16xf32>
    %265 = arith.maximumf %263, %264 : vector<16x16xf32>
    %c0_80 = arith.constant 0 : index
    %c0_81 = arith.constant 0 : index
    %266 = vector.load %arg6[%c0_80, %c0_81] : memref<16x128xf32, #tpu.memory_space<vmem>>, vector<16x128xf32>
    %cst_82 = arith.constant dense<0.000000e+00> : vector<16x128xf32>
    %267 = tpu.matmul %265, %266, %cst_82 {dimension_numbers = #tpu.dot_dimension_numbers<[1], [0], [0], [1], [0, 0, 1, 1], [], []>} : vector<16x16xf32>, vector<16x128xf32>, vector<16x128xf32> -> vector<16x128xf32>
    %c0_83 = arith.constant 0 : index
    %c0_84 = arith.constant 0 : index
    %268 = vector.load %arg7[%c0_83, %c0_84] : memref<1x128xf32, #tpu.memory_space<vmem>>, vector<1x128xf32>
    %269 = vector.broadcast %268 : vector<1x128xf32> to vector<16x128xf32>
    %270 = arith.addf %267, %269 : vector<16x128xf32>
    %c0_85 = arith.constant 0 : index
    %c0_86 = arith.constant 0 : index
    %271 = vector.load %arg8[%c0_85, %c0_86] : memref<15x8xf32, #tpu.memory_space<vmem>>, vector<15x8xf32>
    %272 = vector.extract_strided_slice %270 {offsets = [0, 0], sizes = [16, 8], strides = [1, 1]} : vector<16x128xf32> to vector<16x8xf32>
    %273 = vector.extract_strided_slice %270 {offsets = [0, 8], sizes = [16, 8], strides = [1, 1]} : vector<16x128xf32> to vector<16x8xf32>
    %274 = vector.extract_strided_slice %270 {offsets = [0, 16], sizes = [16, 8], strides = [1, 1]} : vector<16x128xf32> to vector<16x8xf32>
    %275 = vector.extract_strided_slice %271 {offsets = [0, 0], sizes = [3, 8], strides = [1, 1]} : vector<15x8xf32> to vector<3x8xf32>
    %cst_87 = arith.constant dense<0.000000e+00> : vector<16x16xf32>
    %276 = tpu.matmul %272, %273, %cst_87 {dimension_numbers = #tpu.dot_dimension_numbers<[1], [1], [0], [0], [0, 0, 1, 0], [], []>} : vector<16x8xf32>, vector<16x8xf32>, vector<16x16xf32> -> vector<16x16xf32>
    %cst_88 = arith.constant dense<0.000000e+00> : vector<16x3xf32>
    %277 = tpu.matmul %272, %275, %cst_88 {dimension_numbers = #tpu.dot_dimension_numbers<[1], [1], [0], [0], [0, 0, 1, 0], [], []>} : vector<16x8xf32>, vector<3x8xf32>, vector<16x3xf32> -> vector<16x3xf32>
    %278 = vector.extract_strided_slice %277 {offsets = [0, 0], sizes = [16, 1], strides = [1, 1]} : vector<16x3xf32> to vector<16x1xf32>
    %279 = vector.broadcast %278 : vector<16x1xf32> to vector<16x16xf32>
    %280 = arith.mulf %3, %279 : vector<16x16xf32>
    %281 = arith.addf %276, %280 : vector<16x16xf32>
    %282 = vector.extract_strided_slice %277 {offsets = [0, 1], sizes = [16, 1], strides = [1, 1]} : vector<16x3xf32> to vector<16x1xf32>
    %283 = vector.broadcast %282 : vector<16x1xf32> to vector<16x16xf32>
    %284 = arith.mulf %5, %283 : vector<16x16xf32>
    %285 = arith.addf %281, %284 : vector<16x16xf32>
    %286 = vector.extract_strided_slice %277 {offsets = [0, 2], sizes = [16, 1], strides = [1, 1]} : vector<16x3xf32> to vector<16x1xf32>
    %287 = vector.broadcast %286 : vector<16x1xf32> to vector<16x16xf32>
    %288 = arith.mulf %7, %287 : vector<16x16xf32>
    %289 = arith.addf %285, %288 : vector<16x16xf32>
    %cst_89 = arith.constant 0.000000e+00 : f32
    %290 = vector.broadcast %cst_89 : f32 to vector<16x16xf32>
    %291 = arith.cmpf ogt, %1, %290 : vector<16x16xf32>
    %cst_90 = arith.constant -1.000000e+30 : f32
    %292 = vector.broadcast %cst_90 : f32 to vector<16x16xf32>
    %293 = arith.select %291, %289, %292 : vector<16x16xi1>, vector<16x16xf32>
    %cst_91 = arith.constant dense<0xFF800000> : vector<16xf32>
    %294 = vector.multi_reduction <maximumf>, %293, %cst_91 [1] : vector<16x16xf32> to vector<16xf32>
    %295 = vector.shape_cast %294 : vector<16xf32> to vector<16x1xf32>
    %296 = vector.broadcast %295 : vector<16x1xf32> to vector<16x16xf32>
    %297 = arith.subf %293, %296 : vector<16x16xf32>
    %298 = math.exp %297 : vector<16x16xf32>
    %299 = arith.mulf %298, %1 : vector<16x16xf32>
    %cst_92 = arith.constant dense<0.000000e+00> : vector<16xf32>
    %300 = vector.multi_reduction <add>, %299, %cst_92 [1] : vector<16x16xf32> to vector<16xf32>
    %301 = vector.shape_cast %300 : vector<16xf32> to vector<16x1xf32>
    %cst_93 = arith.constant 0.000000e+00 : f32
    %302 = vector.broadcast %cst_93 : f32 to vector<16x1xf32>
    %303 = arith.cmpf oeq, %301, %302 : vector<16x1xf32>
    %cst_94 = arith.constant 1.000000e+00 : f32
    %304 = vector.broadcast %cst_94 : f32 to vector<16x1xf32>
    %305 = arith.select %303, %304, %301 : vector<16x1xi1>, vector<16x1xf32>
    %cst_95 = arith.constant 1.000000e+00 : f32
    %306 = vector.broadcast %cst_95 : f32 to vector<16x1xf32>
    %307 = arith.divf %306, %305 : vector<16x1xf32>
    %308 = vector.broadcast %307 : vector<16x1xf32> to vector<16x16xf32>
    %309 = arith.mulf %299, %308 : vector<16x16xf32>
    %310 = arith.mulf %309, %3 : vector<16x16xf32>
    %cst_96 = arith.constant dense<0.000000e+00> : vector<16xf32>
    %311 = vector.multi_reduction <add>, %310, %cst_96 [1] : vector<16x16xf32> to vector<16xf32>
    %312 = vector.shape_cast %311 : vector<16xf32> to vector<16x1xf32>
    %313 = arith.mulf %309, %5 : vector<16x16xf32>
    %cst_97 = arith.constant dense<0.000000e+00> : vector<16xf32>
    %314 = vector.multi_reduction <add>, %313, %cst_97 [1] : vector<16x16xf32> to vector<16xf32>
    %315 = vector.shape_cast %314 : vector<16xf32> to vector<16x1xf32>
    %316 = arith.mulf %309, %7 : vector<16x16xf32>
    %cst_98 = arith.constant dense<0.000000e+00> : vector<16xf32>
    %317 = vector.multi_reduction <add>, %316, %cst_98 [1] : vector<16x16xf32> to vector<16xf32>
    %318 = vector.shape_cast %317 : vector<16xf32> to vector<16x1xf32>
    %319 = tpu.concatenate %312, %315, %318 in 1 : vector<16x1xf32>, vector<16x1xf32>, vector<16x1xf32> -> vector<16x3xf32>
    %320 = vector.extract_strided_slice %270 {offsets = [0, 24], sizes = [16, 8], strides = [1, 1]} : vector<16x128xf32> to vector<16x8xf32>
    %321 = vector.extract_strided_slice %270 {offsets = [0, 32], sizes = [16, 8], strides = [1, 1]} : vector<16x128xf32> to vector<16x8xf32>
    %322 = vector.extract_strided_slice %270 {offsets = [0, 40], sizes = [16, 8], strides = [1, 1]} : vector<16x128xf32> to vector<16x8xf32>
    %323 = vector.extract_strided_slice %271 {offsets = [3, 0], sizes = [3, 8], strides = [1, 1]} : vector<15x8xf32> to vector<3x8xf32>
    %cst_99 = arith.constant dense<0.000000e+00> : vector<16x16xf32>
    %324 = tpu.matmul %320, %321, %cst_99 {dimension_numbers = #tpu.dot_dimension_numbers<[1], [1], [0], [0], [0, 0, 1, 0], [], []>} : vector<16x8xf32>, vector<16x8xf32>, vector<16x16xf32> -> vector<16x16xf32>
    %cst_100 = arith.constant dense<0.000000e+00> : vector<16x3xf32>
    %325 = tpu.matmul %320, %323, %cst_100 {dimension_numbers = #tpu.dot_dimension_numbers<[1], [1], [0], [0], [0, 0, 1, 0], [], []>} : vector<16x8xf32>, vector<3x8xf32>, vector<16x3xf32> -> vector<16x3xf32>
    %326 = vector.extract_strided_slice %325 {offsets = [0, 0], sizes = [16, 1], strides = [1, 1]} : vector<16x3xf32> to vector<16x1xf32>
    %327 = vector.broadcast %326 : vector<16x1xf32> to vector<16x16xf32>
    %328 = arith.mulf %3, %327 : vector<16x16xf32>
    %329 = arith.addf %324, %328 : vector<16x16xf32>
    %330 = vector.extract_strided_slice %325 {offsets = [0, 1], sizes = [16, 1], strides = [1, 1]} : vector<16x3xf32> to vector<16x1xf32>
    %331 = vector.broadcast %330 : vector<16x1xf32> to vector<16x16xf32>
    %332 = arith.mulf %5, %331 : vector<16x16xf32>
    %333 = arith.addf %329, %332 : vector<16x16xf32>
    %334 = vector.extract_strided_slice %325 {offsets = [0, 2], sizes = [16, 1], strides = [1, 1]} : vector<16x3xf32> to vector<16x1xf32>
    %335 = vector.broadcast %334 : vector<16x1xf32> to vector<16x16xf32>
    %336 = arith.mulf %7, %335 : vector<16x16xf32>
    %337 = arith.addf %333, %336 : vector<16x16xf32>
    %cst_101 = arith.constant 0.000000e+00 : f32
    %338 = vector.broadcast %cst_101 : f32 to vector<16x16xf32>
    %339 = arith.cmpf ogt, %1, %338 : vector<16x16xf32>
    %cst_102 = arith.constant -1.000000e+30 : f32
    %340 = vector.broadcast %cst_102 : f32 to vector<16x16xf32>
    %341 = arith.select %339, %337, %340 : vector<16x16xi1>, vector<16x16xf32>
    %cst_103 = arith.constant dense<0xFF800000> : vector<16xf32>
    %342 = vector.multi_reduction <maximumf>, %341, %cst_103 [1] : vector<16x16xf32> to vector<16xf32>
    %343 = vector.shape_cast %342 : vector<16xf32> to vector<16x1xf32>
    %344 = vector.broadcast %343 : vector<16x1xf32> to vector<16x16xf32>
    %345 = arith.subf %341, %344 : vector<16x16xf32>
    %346 = math.exp %345 : vector<16x16xf32>
    %347 = arith.mulf %346, %1 : vector<16x16xf32>
    %cst_104 = arith.constant dense<0.000000e+00> : vector<16xf32>
    %348 = vector.multi_reduction <add>, %347, %cst_104 [1] : vector<16x16xf32> to vector<16xf32>
    %349 = vector.shape_cast %348 : vector<16xf32> to vector<16x1xf32>
    %cst_105 = arith.constant 0.000000e+00 : f32
    %350 = vector.broadcast %cst_105 : f32 to vector<16x1xf32>
    %351 = arith.cmpf oeq, %349, %350 : vector<16x1xf32>
    %cst_106 = arith.constant 1.000000e+00 : f32
    %352 = vector.broadcast %cst_106 : f32 to vector<16x1xf32>
    %353 = arith.select %351, %352, %349 : vector<16x1xi1>, vector<16x1xf32>
    %cst_107 = arith.constant 1.000000e+00 : f32
    %354 = vector.broadcast %cst_107 : f32 to vector<16x1xf32>
    %355 = arith.divf %354, %353 : vector<16x1xf32>
    %356 = vector.broadcast %355 : vector<16x1xf32> to vector<16x16xf32>
    %357 = arith.mulf %347, %356 : vector<16x16xf32>
    %358 = arith.mulf %357, %3 : vector<16x16xf32>
    %cst_108 = arith.constant dense<0.000000e+00> : vector<16xf32>
    %359 = vector.multi_reduction <add>, %358, %cst_108 [1] : vector<16x16xf32> to vector<16xf32>
    %360 = vector.shape_cast %359 : vector<16xf32> to vector<16x1xf32>
    %361 = arith.mulf %357, %5 : vector<16x16xf32>
    %cst_109 = arith.constant dense<0.000000e+00> : vector<16xf32>
    %362 = vector.multi_reduction <add>, %361, %cst_109 [1] : vector<16x16xf32> to vector<16xf32>
    %363 = vector.shape_cast %362 : vector<16xf32> to vector<16x1xf32>
    %364 = arith.mulf %357, %7 : vector<16x16xf32>
    %cst_110 = arith.constant dense<0.000000e+00> : vector<16xf32>
    %365 = vector.multi_reduction <add>, %364, %cst_110 [1] : vector<16x16xf32> to vector<16xf32>
    %366 = vector.shape_cast %365 : vector<16xf32> to vector<16x1xf32>
    %367 = tpu.concatenate %360, %363, %366 in 1 : vector<16x1xf32>, vector<16x1xf32>, vector<16x1xf32> -> vector<16x3xf32>
    %368 = vector.extract_strided_slice %270 {offsets = [0, 48], sizes = [16, 8], strides = [1, 1]} : vector<16x128xf32> to vector<16x8xf32>
    %369 = vector.extract_strided_slice %270 {offsets = [0, 56], sizes = [16, 8], strides = [1, 1]} : vector<16x128xf32> to vector<16x8xf32>
    %370 = vector.extract_strided_slice %270 {offsets = [0, 64], sizes = [16, 8], strides = [1, 1]} : vector<16x128xf32> to vector<16x8xf32>
    %371 = vector.extract_strided_slice %271 {offsets = [6, 0], sizes = [3, 8], strides = [1, 1]} : vector<15x8xf32> to vector<3x8xf32>
    %cst_111 = arith.constant dense<0.000000e+00> : vector<16x16xf32>
    %372 = tpu.matmul %368, %369, %cst_111 {dimension_numbers = #tpu.dot_dimension_numbers<[1], [1], [0], [0], [0, 0, 1, 0], [], []>} : vector<16x8xf32>, vector<16x8xf32>, vector<16x16xf32> -> vector<16x16xf32>
    %cst_112 = arith.constant dense<0.000000e+00> : vector<16x3xf32>
    %373 = tpu.matmul %368, %371, %cst_112 {dimension_numbers = #tpu.dot_dimension_numbers<[1], [1], [0], [0], [0, 0, 1, 0], [], []>} : vector<16x8xf32>, vector<3x8xf32>, vector<16x3xf32> -> vector<16x3xf32>
    %374 = vector.extract_strided_slice %373 {offsets = [0, 0], sizes = [16, 1], strides = [1, 1]} : vector<16x3xf32> to vector<16x1xf32>
    %375 = vector.broadcast %374 : vector<16x1xf32> to vector<16x16xf32>
    %376 = arith.mulf %3, %375 : vector<16x16xf32>
    %377 = arith.addf %372, %376 : vector<16x16xf32>
    %378 = vector.extract_strided_slice %373 {offsets = [0, 1], sizes = [16, 1], strides = [1, 1]} : vector<16x3xf32> to vector<16x1xf32>
    %379 = vector.broadcast %378 : vector<16x1xf32> to vector<16x16xf32>
    %380 = arith.mulf %5, %379 : vector<16x16xf32>
    %381 = arith.addf %377, %380 : vector<16x16xf32>
    %382 = vector.extract_strided_slice %373 {offsets = [0, 2], sizes = [16, 1], strides = [1, 1]} : vector<16x3xf32> to vector<16x1xf32>
    %383 = vector.broadcast %382 : vector<16x1xf32> to vector<16x16xf32>
    %384 = arith.mulf %7, %383 : vector<16x16xf32>
    %385 = arith.addf %381, %384 : vector<16x16xf32>
    %cst_113 = arith.constant 0.000000e+00 : f32
    %386 = vector.broadcast %cst_113 : f32 to vector<16x16xf32>
    %387 = arith.cmpf ogt, %1, %386 : vector<16x16xf32>
    %cst_114 = arith.constant -1.000000e+30 : f32
    %388 = vector.broadcast %cst_114 : f32 to vector<16x16xf32>
    %389 = arith.select %387, %385, %388 : vector<16x16xi1>, vector<16x16xf32>
    %cst_115 = arith.constant dense<0xFF800000> : vector<16xf32>
    %390 = vector.multi_reduction <maximumf>, %389, %cst_115 [1] : vector<16x16xf32> to vector<16xf32>
    %391 = vector.shape_cast %390 : vector<16xf32> to vector<16x1xf32>
    %392 = vector.broadcast %391 : vector<16x1xf32> to vector<16x16xf32>
    %393 = arith.subf %389, %392 : vector<16x16xf32>
    %394 = math.exp %393 : vector<16x16xf32>
    %395 = arith.mulf %394, %1 : vector<16x16xf32>
    %cst_116 = arith.constant dense<0.000000e+00> : vector<16xf32>
    %396 = vector.multi_reduction <add>, %395, %cst_116 [1] : vector<16x16xf32> to vector<16xf32>
    %397 = vector.shape_cast %396 : vector<16xf32> to vector<16x1xf32>
    %cst_117 = arith.constant 0.000000e+00 : f32
    %398 = vector.broadcast %cst_117 : f32 to vector<16x1xf32>
    %399 = arith.cmpf oeq, %397, %398 : vector<16x1xf32>
    %cst_118 = arith.constant 1.000000e+00 : f32
    %400 = vector.broadcast %cst_118 : f32 to vector<16x1xf32>
    %401 = arith.select %399, %400, %397 : vector<16x1xi1>, vector<16x1xf32>
    %cst_119 = arith.constant 1.000000e+00 : f32
    %402 = vector.broadcast %cst_119 : f32 to vector<16x1xf32>
    %403 = arith.divf %402, %401 : vector<16x1xf32>
    %404 = vector.broadcast %403 : vector<16x1xf32> to vector<16x16xf32>
    %405 = arith.mulf %395, %404 : vector<16x16xf32>
    %406 = arith.mulf %405, %3 : vector<16x16xf32>
    %cst_120 = arith.constant dense<0.000000e+00> : vector<16xf32>
    %407 = vector.multi_reduction <add>, %406, %cst_120 [1] : vector<16x16xf32> to vector<16xf32>
    %408 = vector.shape_cast %407 : vector<16xf32> to vector<16x1xf32>
    %409 = arith.mulf %405, %5 : vector<16x16xf32>
    %cst_121 = arith.constant dense<0.000000e+00> : vector<16xf32>
    %410 = vector.multi_reduction <add>, %409, %cst_121 [1] : vector<16x16xf32> to vector<16xf32>
    %411 = vector.shape_cast %410 : vector<16xf32> to vector<16x1xf32>
    %412 = arith.mulf %405, %7 : vector<16x16xf32>
    %cst_122 = arith.constant dense<0.000000e+00> : vector<16xf32>
    %413 = vector.multi_reduction <add>, %412, %cst_122 [1] : vector<16x16xf32> to vector<16xf32>
    %414 = vector.shape_cast %413 : vector<16xf32> to vector<16x1xf32>
    %415 = tpu.concatenate %408, %411, %414 in 1 : vector<16x1xf32>, vector<16x1xf32>, vector<16x1xf32> -> vector<16x3xf32>
    %416 = vector.extract_strided_slice %270 {offsets = [0, 72], sizes = [16, 8], strides = [1, 1]} : vector<16x128xf32> to vector<16x8xf32>
    %417 = vector.extract_strided_slice %270 {offsets = [0, 80], sizes = [16, 8], strides = [1, 1]} : vector<16x128xf32> to vector<16x8xf32>
    %418 = vector.extract_strided_slice %270 {offsets = [0, 88], sizes = [16, 8], strides = [1, 1]} : vector<16x128xf32> to vector<16x8xf32>
    %419 = vector.extract_strided_slice %271 {offsets = [9, 0], sizes = [3, 8], strides = [1, 1]} : vector<15x8xf32> to vector<3x8xf32>
    %cst_123 = arith.constant dense<0.000000e+00> : vector<16x16xf32>
    %420 = tpu.matmul %416, %417, %cst_123 {dimension_numbers = #tpu.dot_dimension_numbers<[1], [1], [0], [0], [0, 0, 1, 0], [], []>} : vector<16x8xf32>, vector<16x8xf32>, vector<16x16xf32> -> vector<16x16xf32>
    %cst_124 = arith.constant dense<0.000000e+00> : vector<16x3xf32>
    %421 = tpu.matmul %416, %419, %cst_124 {dimension_numbers = #tpu.dot_dimension_numbers<[1], [1], [0], [0], [0, 0, 1, 0], [], []>} : vector<16x8xf32>, vector<3x8xf32>, vector<16x3xf32> -> vector<16x3xf32>
    %422 = vector.extract_strided_slice %421 {offsets = [0, 0], sizes = [16, 1], strides = [1, 1]} : vector<16x3xf32> to vector<16x1xf32>
    %423 = vector.broadcast %422 : vector<16x1xf32> to vector<16x16xf32>
    %424 = arith.mulf %3, %423 : vector<16x16xf32>
    %425 = arith.addf %420, %424 : vector<16x16xf32>
    %426 = vector.extract_strided_slice %421 {offsets = [0, 1], sizes = [16, 1], strides = [1, 1]} : vector<16x3xf32> to vector<16x1xf32>
    %427 = vector.broadcast %426 : vector<16x1xf32> to vector<16x16xf32>
    %428 = arith.mulf %5, %427 : vector<16x16xf32>
    %429 = arith.addf %425, %428 : vector<16x16xf32>
    %430 = vector.extract_strided_slice %421 {offsets = [0, 2], sizes = [16, 1], strides = [1, 1]} : vector<16x3xf32> to vector<16x1xf32>
    %431 = vector.broadcast %430 : vector<16x1xf32> to vector<16x16xf32>
    %432 = arith.mulf %7, %431 : vector<16x16xf32>
    %433 = arith.addf %429, %432 : vector<16x16xf32>
    %cst_125 = arith.constant 0.000000e+00 : f32
    %434 = vector.broadcast %cst_125 : f32 to vector<16x16xf32>
    %435 = arith.cmpf ogt, %1, %434 : vector<16x16xf32>
    %cst_126 = arith.constant -1.000000e+30 : f32
    %436 = vector.broadcast %cst_126 : f32 to vector<16x16xf32>
    %437 = arith.select %435, %433, %436 : vector<16x16xi1>, vector<16x16xf32>
    %cst_127 = arith.constant dense<0xFF800000> : vector<16xf32>
    %438 = vector.multi_reduction <maximumf>, %437, %cst_127 [1] : vector<16x16xf32> to vector<16xf32>
    %439 = vector.shape_cast %438 : vector<16xf32> to vector<16x1xf32>
    %440 = vector.broadcast %439 : vector<16x1xf32> to vector<16x16xf32>
    %441 = arith.subf %437, %440 : vector<16x16xf32>
    %442 = math.exp %441 : vector<16x16xf32>
    %443 = arith.mulf %442, %1 : vector<16x16xf32>
    %cst_128 = arith.constant dense<0.000000e+00> : vector<16xf32>
    %444 = vector.multi_reduction <add>, %443, %cst_128 [1] : vector<16x16xf32> to vector<16xf32>
    %445 = vector.shape_cast %444 : vector<16xf32> to vector<16x1xf32>
    %cst_129 = arith.constant 0.000000e+00 : f32
    %446 = vector.broadcast %cst_129 : f32 to vector<16x1xf32>
    %447 = arith.cmpf oeq, %445, %446 : vector<16x1xf32>
    %cst_130 = arith.constant 1.000000e+00 : f32
    %448 = vector.broadcast %cst_130 : f32 to vector<16x1xf32>
    %449 = arith.select %447, %448, %445 : vector<16x1xi1>, vector<16x1xf32>
    %cst_131 = arith.constant 1.000000e+00 : f32
    %450 = vector.broadcast %cst_131 : f32 to vector<16x1xf32>
    %451 = arith.divf %450, %449 : vector<16x1xf32>
    %452 = vector.broadcast %451 : vector<16x1xf32> to vector<16x16xf32>
    %453 = arith.mulf %443, %452 : vector<16x16xf32>
    %454 = arith.mulf %453, %3 : vector<16x16xf32>
    %cst_132 = arith.constant dense<0.000000e+00> : vector<16xf32>
    %455 = vector.multi_reduction <add>, %454, %cst_132 [1] : vector<16x16xf32> to vector<16xf32>
    %456 = vector.shape_cast %455 : vector<16xf32> to vector<16x1xf32>
    %457 = arith.mulf %453, %5 : vector<16x16xf32>
    %cst_133 = arith.constant dense<0.000000e+00> : vector<16xf32>
    %458 = vector.multi_reduction <add>, %457, %cst_133 [1] : vector<16x16xf32> to vector<16xf32>
    %459 = vector.shape_cast %458 : vector<16xf32> to vector<16x1xf32>
    %460 = arith.mulf %453, %7 : vector<16x16xf32>
    %cst_134 = arith.constant dense<0.000000e+00> : vector<16xf32>
    %461 = vector.multi_reduction <add>, %460, %cst_134 [1] : vector<16x16xf32> to vector<16xf32>
    %462 = vector.shape_cast %461 : vector<16xf32> to vector<16x1xf32>
    %463 = tpu.concatenate %456, %459, %462 in 1 : vector<16x1xf32>, vector<16x1xf32>, vector<16x1xf32> -> vector<16x3xf32>
    %464 = vector.extract_strided_slice %270 {offsets = [0, 96], sizes = [16, 8], strides = [1, 1]} : vector<16x128xf32> to vector<16x8xf32>
    %465 = vector.extract_strided_slice %270 {offsets = [0, 104], sizes = [16, 8], strides = [1, 1]} : vector<16x128xf32> to vector<16x8xf32>
    %466 = vector.extract_strided_slice %270 {offsets = [0, 112], sizes = [16, 8], strides = [1, 1]} : vector<16x128xf32> to vector<16x8xf32>
    %467 = vector.extract_strided_slice %271 {offsets = [12, 0], sizes = [3, 8], strides = [1, 1]} : vector<15x8xf32> to vector<3x8xf32>
    %cst_135 = arith.constant dense<0.000000e+00> : vector<16x16xf32>
    %468 = tpu.matmul %464, %465, %cst_135 {dimension_numbers = #tpu.dot_dimension_numbers<[1], [1], [0], [0], [0, 0, 1, 0], [], []>} : vector<16x8xf32>, vector<16x8xf32>, vector<16x16xf32> -> vector<16x16xf32>
    %cst_136 = arith.constant dense<0.000000e+00> : vector<16x3xf32>
    %469 = tpu.matmul %464, %467, %cst_136 {dimension_numbers = #tpu.dot_dimension_numbers<[1], [1], [0], [0], [0, 0, 1, 0], [], []>} : vector<16x8xf32>, vector<3x8xf32>, vector<16x3xf32> -> vector<16x3xf32>
    %470 = vector.extract_strided_slice %469 {offsets = [0, 0], sizes = [16, 1], strides = [1, 1]} : vector<16x3xf32> to vector<16x1xf32>
    %471 = vector.broadcast %470 : vector<16x1xf32> to vector<16x16xf32>
    %472 = arith.mulf %3, %471 : vector<16x16xf32>
    %473 = arith.addf %468, %472 : vector<16x16xf32>
    %474 = vector.extract_strided_slice %469 {offsets = [0, 1], sizes = [16, 1], strides = [1, 1]} : vector<16x3xf32> to vector<16x1xf32>
    %475 = vector.broadcast %474 : vector<16x1xf32> to vector<16x16xf32>
    %476 = arith.mulf %5, %475 : vector<16x16xf32>
    %477 = arith.addf %473, %476 : vector<16x16xf32>
    %478 = vector.extract_strided_slice %469 {offsets = [0, 2], sizes = [16, 1], strides = [1, 1]} : vector<16x3xf32> to vector<16x1xf32>
    %479 = vector.broadcast %478 : vector<16x1xf32> to vector<16x16xf32>
    %480 = arith.mulf %7, %479 : vector<16x16xf32>
    %481 = arith.addf %477, %480 : vector<16x16xf32>
    %cst_137 = arith.constant 0.000000e+00 : f32
    %482 = vector.broadcast %cst_137 : f32 to vector<16x16xf32>
    %483 = arith.cmpf ogt, %1, %482 : vector<16x16xf32>
    %cst_138 = arith.constant -1.000000e+30 : f32
    %484 = vector.broadcast %cst_138 : f32 to vector<16x16xf32>
    %485 = arith.select %483, %481, %484 : vector<16x16xi1>, vector<16x16xf32>
    %cst_139 = arith.constant dense<0xFF800000> : vector<16xf32>
    %486 = vector.multi_reduction <maximumf>, %485, %cst_139 [1] : vector<16x16xf32> to vector<16xf32>
    %487 = vector.shape_cast %486 : vector<16xf32> to vector<16x1xf32>
    %488 = vector.broadcast %487 : vector<16x1xf32> to vector<16x16xf32>
    %489 = arith.subf %485, %488 : vector<16x16xf32>
    %490 = math.exp %489 : vector<16x16xf32>
    %491 = arith.mulf %490, %1 : vector<16x16xf32>
    %cst_140 = arith.constant dense<0.000000e+00> : vector<16xf32>
    %492 = vector.multi_reduction <add>, %491, %cst_140 [1] : vector<16x16xf32> to vector<16xf32>
    %493 = vector.shape_cast %492 : vector<16xf32> to vector<16x1xf32>
    %cst_141 = arith.constant 0.000000e+00 : f32
    %494 = vector.broadcast %cst_141 : f32 to vector<16x1xf32>
    %495 = arith.cmpf oeq, %493, %494 : vector<16x1xf32>
    %cst_142 = arith.constant 1.000000e+00 : f32
    %496 = vector.broadcast %cst_142 : f32 to vector<16x1xf32>
    %497 = arith.select %495, %496, %493 : vector<16x1xi1>, vector<16x1xf32>
    %cst_143 = arith.constant 1.000000e+00 : f32
    %498 = vector.broadcast %cst_143 : f32 to vector<16x1xf32>
    %499 = arith.divf %498, %497 : vector<16x1xf32>
    %500 = vector.broadcast %499 : vector<16x1xf32> to vector<16x16xf32>
    %501 = arith.mulf %491, %500 : vector<16x16xf32>
    %502 = arith.mulf %501, %3 : vector<16x16xf32>
    %cst_144 = arith.constant dense<0.000000e+00> : vector<16xf32>
    %503 = vector.multi_reduction <add>, %502, %cst_144 [1] : vector<16x16xf32> to vector<16xf32>
    %504 = vector.shape_cast %503 : vector<16xf32> to vector<16x1xf32>
    %505 = arith.mulf %501, %5 : vector<16x16xf32>
    %cst_145 = arith.constant dense<0.000000e+00> : vector<16xf32>
    %506 = vector.multi_reduction <add>, %505, %cst_145 [1] : vector<16x16xf32> to vector<16xf32>
    %507 = vector.shape_cast %506 : vector<16xf32> to vector<16x1xf32>
    %508 = arith.mulf %501, %7 : vector<16x16xf32>
    %cst_146 = arith.constant dense<0.000000e+00> : vector<16xf32>
    %509 = vector.multi_reduction <add>, %508, %cst_146 [1] : vector<16x16xf32> to vector<16xf32>
    %510 = vector.shape_cast %509 : vector<16xf32> to vector<16x1xf32>
    %511 = tpu.concatenate %504, %507, %510 in 1 : vector<16x1xf32>, vector<16x1xf32>, vector<16x1xf32> -> vector<16x3xf32>
    %512 = tpu.concatenate %309, %357, %405, %453, %501 in 1 : vector<16x16xf32>, vector<16x16xf32>, vector<16x16xf32>, vector<16x16xf32>, vector<16x16xf32> -> vector<16x80xf32>
    %513 = tpu.concatenate %274, %322, %370, %418, %466 in 0 : vector<16x8xf32>, vector<16x8xf32>, vector<16x8xf32>, vector<16x8xf32>, vector<16x8xf32> -> vector<80x8xf32>
    %514 = tpu.concatenate %319, %367, %415, %463, %511 in 1 : vector<16x3xf32>, vector<16x3xf32>, vector<16x3xf32>, vector<16x3xf32>, vector<16x3xf32> -> vector<16x15xf32>
    %cst_147 = arith.constant dense<0.000000e+00> : vector<16x8xf32>
    %515 = tpu.matmul %512, %513, %cst_147 {dimension_numbers = #tpu.dot_dimension_numbers<[1], [0], [0], [1], [0, 0, 1, 1], [], []>} : vector<16x80xf32>, vector<80x8xf32>, vector<16x8xf32> -> vector<16x8xf32>
    %cst_148 = arith.constant dense<0.000000e+00> : vector<16x8xf32>
    %516 = tpu.matmul %514, %271, %cst_148 {dimension_numbers = #tpu.dot_dimension_numbers<[1], [0], [0], [1], [0, 0, 1, 1], [], []>} : vector<16x15xf32>, vector<15x8xf32>, vector<16x8xf32> -> vector<16x8xf32>
    %517 = arith.addf %515, %516 : vector<16x8xf32>
    %cst_149 = arith.constant 2.000000e-01 : f32
    %518 = vector.broadcast %cst_149 : f32 to vector<16x8xf32>
    %519 = arith.mulf %517, %518 : vector<16x8xf32>
    %520 = vector.extract_strided_slice %270 {offsets = [0, 120], sizes = [16, 8], strides = [1, 1]} : vector<16x128xf32> to vector<16x8xf32>
    %521 = arith.addf %519, %520 : vector<16x8xf32>
    %cst_150 = arith.constant 0.000000e+00 : f32
    %522 = vector.broadcast %cst_150 : f32 to vector<16x8xf32>
    %523 = arith.maximumf %521, %522 : vector<16x8xf32>
    %c0_151 = arith.constant 0 : index
    %c0_152 = arith.constant 0 : index
    %524 = vector.load %arg9[%c0_151, %c0_152] : memref<8x16xf32, #tpu.memory_space<vmem>>, vector<8x16xf32>
    %cst_153 = arith.constant dense<0.000000e+00> : vector<16x16xf32>
    %525 = tpu.matmul %523, %524, %cst_153 {dimension_numbers = #tpu.dot_dimension_numbers<[1], [0], [0], [1], [0, 0, 1, 1], [], []>} : vector<16x8xf32>, vector<8x16xf32>, vector<16x16xf32> -> vector<16x16xf32>
    %c0_154 = arith.constant 0 : index
    %c0_155 = arith.constant 0 : index
    %526 = vector.load %arg10[%c0_154, %c0_155] : memref<1x16xf32, #tpu.memory_space<vmem>>, vector<1x16xf32>
    %527 = vector.broadcast %526 : vector<1x16xf32> to vector<16x16xf32>
    %528 = arith.addf %525, %527 : vector<16x16xf32>
    %cst_156 = arith.constant 0.000000e+00 : f32
    %529 = vector.broadcast %cst_156 : f32 to vector<16x16xf32>
    %530 = arith.maximumf %528, %529 : vector<16x16xf32>
    %c0_157 = arith.constant 0 : index
    %c0_158 = arith.constant 0 : index
    %531 = vector.load %arg11[%c0_157, %c0_158] : memref<16x2xf32, #tpu.memory_space<vmem>>, vector<16x2xf32>
    %cst_159 = arith.constant dense<0.000000e+00> : vector<16x2xf32>
    %532 = tpu.matmul %530, %531, %cst_159 {dimension_numbers = #tpu.dot_dimension_numbers<[1], [0], [0], [1], [0, 0, 1, 1], [], []>} : vector<16x16xf32>, vector<16x2xf32>, vector<16x2xf32> -> vector<16x2xf32>
    %c0_160 = arith.constant 0 : index
    %c0_161 = arith.constant 0 : index
    %533 = vector.load %arg12[%c0_160, %c0_161] : memref<1x2xf32, #tpu.memory_space<vmem>>, vector<1x2xf32>
    %534 = vector.broadcast %533 : vector<1x2xf32> to vector<16x2xf32>
    %535 = arith.addf %532, %534 : vector<16x2xf32>
    %c0_162 = arith.constant 0 : index
    %c0_163 = arith.constant 0 : index
    %536 = vector.load %arg13[%c0_162, %c0_163] : memref<16x2xf32, #tpu.memory_space<vmem>>, vector<16x2xf32>
    tpu.vector_store %arg13[%c0_162, %c0_163], %535 {strides = array<i32>} : memref<16x2xf32, #tpu.memory_space<vmem>>, vector<16x2xf32>,
    return
  }
}

</mosaic_0001>

<llo_original>
// kernel: tpu_custom_call.1
$region0: #{tpu_custom_call.1}
  #allocation0 [shape = 'u32[]', space=smem, size = 0x4, offset = 0x4, fixed_abs, tag = 'smem constant byte address 0x4 - core index']
  #allocation1 [shape = 'u32[144,128]{1,0:T(1,128)}', space=vmem, size = 0x12000, scoped, tag = 'internal scratch']
  %s0 = inlined_call_operand.vmem [shape: f32[16,4], index: 0, kind: input, shape index: {}]
  %s1 = inlined_call_operand.vmem [shape: f32[16,16], index: 1, kind: input, shape index: {}]
  %s2 = inlined_call_operand.vmem [shape: f32[3,16,16], index: 2, kind: input, shape index: {}]
  %s3 = inlined_call_operand.hbm [shape: f32[4,256], index: 3, kind: input, shape index: {}]
  %s4 = inlined_call_operand.hbm [shape: f32[1,256], index: 4, kind: input, shape index: {}]
  %s5 = inlined_call_operand.hbm [shape: f32[15,16], index: 5, kind: input, shape index: {}]
  %s6 = inlined_call_operand.hbm [shape: f32[16,128], index: 6, kind: input, shape index: {}]
  %s7 = inlined_call_operand.hbm [shape: f32[1,128], index: 7, kind: input, shape index: {}]
  %s8 = inlined_call_operand.vmem [shape: f32[15,8], index: 8, kind: input, shape index: {}]
  %s9 = inlined_call_operand.hbm [shape: f32[8,16], index: 9, kind: input, shape index: {}]
  %s10 = inlined_call_operand.vmem [shape: f32[1,16], index: 10, kind: input, shape index: {}]
  %s11 = inlined_call_operand.vmem [shape: f32[16,2], index: 11, kind: input, shape index: {}]
  %s12 = inlined_call_operand.vmem [shape: f32[1,2], index: 12, kind: input, shape index: {}]
  %s13 = inlined_call_operand.vmem [shape: f32[16,2], index: 13, kind: output, shape index: {}]
  %s14 = sld [smem:[#allocation0]]
  $region86: #{tpu_custom_call.1} parent=0
    _
  %s16 = ssub.s32 1, %s14
  %s17 = scalar_select 0, %s16, %s14
  $region1: #{tpu_custom_call.1} parent=0
    #allocation2 [shape = 'u8[4096]{0}', space=vmem, size = 0x1000, scoped, tag = 'input window, operand 3, single buffered']
    #allocation3 [shape = 's32[1]{0}', space=sflag, size = 0x4, scoped, tag = 'scoped memory for tpu_custom_call.1']
    #allocation4 [shape = 'u8[1024]{0}', space=vmem, size = 0x400, scoped, tag = 'input window, operand 4, single buffered']
    #allocation5 [shape = 's32[1]{0}', space=sflag, size = 0x4, scoped, tag = 'scoped memory for tpu_custom_call.1']
    #allocation6 [shape = 'u8[8192]{0}', space=vmem, size = 0x2000, scoped, tag = 'input window, operand 5, single buffered']
    #allocation7 [shape = 'u8[8192]{0}', space=vmem, size = 0x2000, scoped, tag = 'input window, operand 6, single buffered']
    #allocation8 [shape = 's32[1]{0}', space=sflag, size = 0x4, scoped, tag = 'scoped memory for tpu_custom_call.1']
    #allocation9 [shape = 'u8[512]{0}', space=vmem, size = 0x400, scoped, tag = 'input window, operand 7, single buffered']
    #allocation10 [shape = 'u8[4096]{0}', space=vmem, size = 0x1000, scoped, tag = 'input window, operand 9, single buffered']
    #allocation11 [shape = 's32[1]{0}', space=sflag, size = 0x4, scoped, tag = 'scoped memory for tpu_custom_call.1']
    %18 = vsyncpa [#allocation3], 0
    %19 = vsyncpa [#allocation5], 0
    %20 = vsyncpa [#allocation8], 0
    %21 = vsyncpa [#allocation11], 0
    // Predicated region
    $region2: #{tpu_custom_call.1} parent=1 // pred_check
      _
    $region3: #{tpu_custom_call.1} parent=1 // pred_check_branch
      %23 = sbr.rel (0) target = $region5
    $region4: #{tpu_custom_call.1} parent=1 // pred_region
      _
    $region5: #{tpu_custom_call.1} parent=1 // pred_fallthru
      _
    // Predicated region
    $region6: #{tpu_custom_call.1} parent=1 // pred_check
      _
    $region7: #{tpu_custom_call.1} parent=1 // pred_check_branch
      %25 = sbr.rel (0) target = $region9
    $region8: #{tpu_custom_call.1} parent=1 // pred_region
      _
    $region9: #{tpu_custom_call.1} parent=1 // pred_fallthru
      _
    // Predicated region
    $region10: #{tpu_custom_call.1} parent=1 // pred_check
      _
    $region11: #{tpu_custom_call.1} parent=1 // pred_check_branch
      %27 = sbr.rel (0) target = $region13
    $region12: #{tpu_custom_call.1} parent=1 // pred_region
      _
    $region13: #{tpu_custom_call.1} parent=1 // pred_fallthru
      _
    // Predicated region
    $region14: #{tpu_custom_call.1} parent=1 // pred_check
      _
    $region15: #{tpu_custom_call.1} parent=1 // pred_check_branch
      %29 = sbr.rel (0) target = $region17
    $region16: #{tpu_custom_call.1} parent=1 // pred_region
      %s31 = ssub.s32 128, 128
      %32 = vsyncadd [#allocation3], %s31
      %s34 = sshll.u32 [#allocation2], 4
      %s35 = int_to_ptr.vmem [resolvable:$true] %s34
      %37 = dma.hbm_to_vmem [thread:$0]  %s3, 128, %s35, [#allocation3]
    $region17: #{tpu_custom_call.1} parent=1 // pred_fallthru
      _
    // Predicated region
    $region18: #{tpu_custom_call.1} parent=1 // pred_check
      _
    $region19: #{tpu_custom_call.1} parent=1 // pred_check_branch
      %39 = sbr.rel (0) target = $region21
    $region20: #{tpu_custom_call.1} parent=1 // pred_region
      %s41 = ssub.s32 32, 32
      %42 = vsyncadd [#allocation5], %s41
      %s44 = sshll.u32 [#allocation4], 4
      %s45 = int_to_ptr.vmem [resolvable:$true] %s44
      %47 = dma.hbm_to_vmem [thread:$0]  %s4, 32, %s45, [#allocation5]
    $region21: #{tpu_custom_call.1} parent=1 // pred_fallthru
      _
    // Predicated region
    $region22: #{tpu_custom_call.1} parent=1 // pred_check
      _
    $region23: #{tpu_custom_call.1} parent=1 // pred_check_branch
      %49 = sbr.rel (0) target = $region25
    $region24: #{tpu_custom_call.1} parent=1 // pred_region
      %s51 = ssub.s32 256, 256
      %52 = vsyncadd [#allocation5], %s51
      %s53 = sshll.u32 [#allocation6], 4
      %s54 = int_to_ptr.vmem [resolvable:$true] %s53
      %59 = dma.hbm_to_vmem [thread:$0]  %s5, 256, %s54, [#allocation5], 128, 128, 8
    $region25: #{tpu_custom_call.1} parent=1 // pred_fallthru
      _
    // Predicated region
    $region26: #{tpu_custom_call.1} parent=1 // pred_check
      _
    $region27: #{tpu_custom_call.1} parent=1 // pred_check_branch
      %61 = sbr.rel (0) target = $region29
    $region28: #{tpu_custom_call.1} parent=1 // pred_region
      %s63 = ssub.s32 256, 256
      %64 = vsyncadd [#allocation8], %s63
      %s65 = sshll.u32 [#allocation7], 4
      %s66 = int_to_ptr.vmem [resolvable:$true] %s65
      %71 = dma.hbm_to_vmem [thread:$0]  %s6, 256, %s66, [#allocation8], 128, 128, 8
    $region29: #{tpu_custom_call.1} parent=1 // pred_fallthru
      _
    // Predicated region
    $region30: #{tpu_custom_call.1} parent=1 // pred_check
      _
    $region31: #{tpu_custom_call.1} parent=1 // pred_check_branch
      %73 = sbr.rel (0) target = $region33
    $region32: #{tpu_custom_call.1} parent=1 // pred_region
      %s75 = ssub.s32 16, 16
      %76 = vsyncadd [#allocation8], %s75
      %s78 = sshll.u32 [#allocation9], 4
      %s79 = int_to_ptr.vmem [resolvable:$true] %s78
      %81 = dma.hbm_to_vmem [thread:$0]  %s7, 16, %s79, [#allocation8]
    $region33: #{tpu_custom_call.1} parent=1 // pred_fallthru
      _
    // Predicated region
    $region34: #{tpu_custom_call.1} parent=1 // pred_check
      _
    $region35: #{tpu_custom_call.1} parent=1 // pred_check_branch
      %83 = sbr.rel (0) target = $region37
    $region36: #{tpu_custom_call.1} parent=1 // pred_region
      _
    $region37: #{tpu_custom_call.1} parent=1 // pred_fallthru
      _
    // Predicated region
    $region38: #{tpu_custom_call.1} parent=1 // pred_check
      _
    $region39: #{tpu_custom_call.1} parent=1 // pred_check_branch
      %85 = sbr.rel (0) target = $region41
    $region40: #{tpu_custom_call.1} parent=1 // pred_region
      %s87 = ssub.s32 128, 128
      %88 = vsyncadd [#allocation11], %s87
      %s90 = sshll.u32 [#allocation10], 4
      %s91 = int_to_ptr.vmem [resolvable:$true] %s90
      %93 = dma.hbm_to_vmem [thread:$0]  %s9, 128, %s91, [#allocation11]
    $region41: #{tpu_custom_call.1} parent=1 // pred_fallthru
      _
    // Predicated region
    $region42: #{tpu_custom_call.1} parent=1 // pred_check
      _
    $region43: #{tpu_custom_call.1} parent=1 // pred_check_branch
      %95 = sbr.rel (0) target = $region45
    $region44: #{tpu_custom_call.1} parent=1 // pred_region
      _
    $region45: #{tpu_custom_call.1} parent=1 // pred_fallthru
      _
    // Predicated region
    $region46: #{tpu_custom_call.1} parent=1 // pred_check
      _
    $region47: #{tpu_custom_call.1} parent=1 // pred_check_branch
      %97 = sbr.rel (0) target = $region49
    $region48: #{tpu_custom_call.1} parent=1 // pred_region
      _
    $region49: #{tpu_custom_call.1} parent=1 // pred_fallthru
      _
    // Predicated region
    $region50: #{tpu_custom_call.1} parent=1 // pred_check
      _
    $region51: #{tpu_custom_call.1} parent=1 // pred_check_branch
      %99 = sbr.rel (0) target = $region53
    $region52: #{tpu_custom_call.1} parent=1 // pred_region
      _
    $region53: #{tpu_custom_call.1} parent=1 // pred_fallthru
      _
    // Predicated region
    $region54: #{tpu_custom_call.1} parent=1 // pred_check
      _
    $region55: #{tpu_custom_call.1} parent=1 // pred_check_branch
      %101 = sbr.rel (0) target = $region57
    $region56: #{tpu_custom_call.1} parent=1 // pred_region
      %102 = dma.done [#allocation3], 128
    $region57: #{tpu_custom_call.1} parent=1 // pred_fallthru
      _
    // Predicated region
    $region58: #{tpu_custom_call.1} parent=1 // pred_check
      _
    $region59: #{tpu_custom_call.1} parent=1 // pred_check_branch
      %104 = sbr.rel (0) target = $region61
    $region60: #{tpu_custom_call.1} parent=1 // pred_region
      %105 = dma.done [#allocation5], 32
    $region61: #{tpu_custom_call.1} parent=1 // pred_fallthru
      _
    // Predicated region
    $region62: #{tpu_custom_call.1} parent=1 // pred_check
      _
    $region63: #{tpu_custom_call.1} parent=1 // pred_check_branch
      %107 = sbr.rel (0) target = $region65
    $region64: #{tpu_custom_call.1} parent=1 // pred_region
      %108 = dma.done [#allocation5], 256
    $region65: #{tpu_custom_call.1} parent=1 // pred_fallthru
      _
    // Predicated region
    $region66: #{tpu_custom_call.1} parent=1 // pred_check
      _
    $region67: #{tpu_custom_call.1} parent=1 // pred_check_branch
      %110 = sbr.rel (0) target = $region69
    $region68: #{tpu_custom_call.1} parent=1 // pred_region
      %111 = dma.done [#allocation8], 256
    $region69: #{tpu_custom_call.1} parent=1 // pred_fallthru
      _
    // Predicated region
    $region70: #{tpu_custom_call.1} parent=1 // pred_check
      _
    $region71: #{tpu_custom_call.1} parent=1 // pred_check_branch
      %113 = sbr.rel (0) target = $region73
    $region72: #{tpu_custom_call.1} parent=1 // pred_region
      %114 = dma.done [#allocation8], 16
    $region73: #{tpu_custom_call.1} parent=1 // pred_fallthru
      _
    // Predicated region
    $region74: #{tpu_custom_call.1} parent=1 // pred_check
      _
    $region75: #{tpu_custom_call.1} parent=1 // pred_check_branch
      %116 = sbr.rel (0) target = $region77
    $region76: #{tpu_custom_call.1} parent=1 // pred_region
      %117 = dma.done [#allocation11], 128
    $region77: #{tpu_custom_call.1} parent=1 // pred_fallthru
      _
    %v118 = vld [vmem:[%s0] sm:$0xff]
    %v119 = vld [vmem:[%s0 + $0x8] sm:$0xff]
    %v120 = vld [vmem:[%s1] sm:$0xff]
    %v121 = vld [vmem:[%s1 + $0x8] sm:$0xff]
    %v122 = vld [vmem:[%s2] sm:$0xff]
    %v123 = vld [vmem:[%s2 + $0x8] sm:$0xff]
    %s124 = scalar_lea.vmem %s2, 16
    %v125 = vld [vmem:[%s124] sm:$0xff]
    %v126 = vld [vmem:[%s124 + $0x8] sm:$0xff]
    %s127 = scalar_lea.vmem %s2, 32
    %v128 = vld [vmem:[%s127] sm:$0xff]
    %v129 = vld [vmem:[%s127 + $0x8] sm:$0xff]
    %v130 = vld [vmem:[#allocation2] sm:$0xff]
    %v131 = vld [vmem:[#allocation4] sm:$0x3]
    %v133 = vlaneseq
    %v134 = vshrl.u32 %v133, 7
    %v135 = vsub.s32 0, %v134
    %v136 = vrot.slane %v131, %v135
    %v137 = vlaneseq
    %v138 = vshrl.u32 %v137, 7
    %v139 = vsub.s32 1, %v138
    %v140 = vrot.slane %v131, %v139
    %v144 = vcombine.high %v130, %v130
    %vm145 = vcmask 31744
    %v147 = vsel %vm145, %v118, 0
    %v150 = vsel %vm145, %v119, 0
    %vm152 = vcmask 1043456
    %v153 = vsel %vm152, %v130, 0
    %v155 = vsel %vm152, %v144, 0
    %157 = vmatprep.subr.mxu0 0.0
    %158 = vmatpush1.msra.mxu0 0.0
    %159 = vmatprep.subr.mxu0 0.0
    %160 = vmatpush1.msra.mxu0 0.0
    %161 = vmatprep.subr.mxu0 0.0
    %162 = vmatpush1.msra.mxu0 0.0
    %163 = vmatprep.subr.mxu0 0.0
    %164 = vmatpush1.msra.mxu0 0.0
    %165 = vmatprep.subr.mxu0 0.0
    %166 = vmatpush1.msra.mxu0 0.0
    %167 = vmatprep.subr.mxu0 0.0
    %168 = vmatpush1.msra.mxu0 0.0
    %169 = vmatprep.subr.mxu0 0.0
    %170 = vmatpush1.msra.mxu0 0.0
    %171 = vmatprep.subr.mxu0 0.0
    %172 = vmatpush1.msra.mxu0 0.0
    %173 = vmatprep.subr.mxu0 0.0
    %174 = vmatpush1.msra.mxu0 0.0
    %175 = vmatprep.subr.mxu0 0.0
    %176 = vmatpush1.msra.mxu0 0.0
    %177 = vmatprep.subr.mxu0 0.0
    %178 = vmatpush1.msra.mxu0 0.0
    %179 = vmatprep.subr.mxu0 0.0
    %180 = vmatpush1.msra.mxu0 0.0
    %181 = vmatprep.subr.mxu0 0.0
    %182 = vmatpush1.msra.mxu0 0.0
    %183 = vmatprep.subr.mxu0 0.0
    %184 = vmatpush1.msra.mxu0 0.0
    %185 = vmatprep.subr.mxu0 0.0
    %186 = vmatpush1.msra.mxu0 0.0
    %187 = vmatprep.subr.mxu0 %v155
    %188 = vmatpush1.msra.mxu0 %v153
    %189 = vmatprep.subr.mxu0 0.0
    %190 = vmatpush2.msra.mxu0 0.0
    %191 = vmatprep.subr.mxu0 0.0
    %192 = vmatpush2.msra.mxu0 0.0
    %193 = vmatprep.subr.mxu0 0.0
    %194 = vmatpush2.msra.mxu0 0.0
    %195 = vmatprep.subr.mxu0 0.0
    %196 = vmatpush2.msra.mxu0 0.0
    %197 = vmatprep.subr.mxu0 0.0
    %198 = vmatpush2.msra.mxu0 0.0
    %199 = vmatprep.subr.mxu0 0.0
    %200 = vmatpush2.msra.mxu0 0.0
    %201 = vmatprep.subr.mxu0 0.0
    %202 = vmatpush2.msra.mxu0 0.0
    %203 = vmatprep.subr.mxu0 0.0
    %204 = vmatpush2.msra.mxu0 0.0
    %205 = vmatprep.subr.mxu0 0.0
    %206 = vmatpush2.msra.mxu0 0.0
    %207 = vmatprep.subr.mxu0 0.0
    %208 = vmatpush2.msra.mxu0 0.0
    %209 = vmatprep.subr.mxu0 0.0
    %210 = vmatpush2.msra.mxu0 0.0
    %211 = vmatprep.subr.mxu0 0.0
    %212 = vmatpush2.msra.mxu0 0.0
    %213 = vmatprep.subr.mxu0 0.0
    %214 = vmatpush2.msra.mxu0 0.0
    %215 = vmatprep.subr.mxu0 0.0
    %216 = vmatpush2.msra.mxu0 0.0
    %217 = vmatprep.subr.mxu0 0.0
    %218 = vmatpush2.msra.mxu0 0.0
    %219 = vmatprep.subr.mxu0 0.0
    %220 = vmatpush2.msra.mxu0 0.0
    %221 = vmatprep.mubr.f32.mxu0 0.0
    %222 = vmatmul.mubr.f32.gmra.mxu0 %v147
    %v223 = vpop.f32.mrf.mxu0
    %v224 = vadd.f32 %v136, %v223
    %v225 = vpop.f32.mrf.mxu0
    %v226 = vadd.f32 %v140, %v225
    %227 = vmatprep.mubr.f32.mxu0 0.0
    %228 = vmatmul.mubr.f32.gmra.mxu0 %v150
    %v229 = vpop.f32.mrf.mxu0
    %v230 = vadd.f32 %v136, %v229
    %v231 = vpop.f32.mrf.mxu0
    %v232 = vadd.f32 %v140, %v231
    %233 = vdwg.mxu0
    %v234 = vld [vmem:[#allocation6] sm:$0xff]
    %v235 = vld [vmem:[#allocation6 + $0x8] sm:$0x7f]
    %vm236 = vcmask 130048
    %v238 = vsel %vm236, %v224, 0
    %v241 = vsel %vm236, %v230, 0
    %v244 = vsel %vm236, %v234, 0
    %246 = vmatprep.subr.mxu0 0.0
    %247 = vmatpush1.xpose.msra.mxu0 0.0
    %248 = vmatprep.subr.mxu0 0.0
    %249 = vmatpush1.xpose.msra.mxu0 0.0
    %250 = vmatprep.subr.mxu0 0.0
    %251 = vmatpush1.xpose.msra.mxu0 0.0
    %252 = vmatprep.subr.mxu0 0.0
    %253 = vmatpush1.xpose.msra.mxu0 0.0
    %254 = vmatprep.subr.mxu0 0.0
    %255 = vmatpush1.xpose.msra.mxu0 0.0
    %256 = vmatprep.subr.mxu0 0.0
    %257 = vmatpush1.xpose.msra.mxu0 0.0
    %258 = vmatprep.subr.mxu0 0.0
    %259 = vmatpush1.xpose.msra.mxu0 0.0
    %260 = vmatprep.subr.mxu0 0.0
    %261 = vmatpush1.xpose.msra.mxu0 0.0
    %262 = vmatprep.subr.mxu0 0.0
    %263 = vmatpush1.xpose.msra.mxu0 0.0
    %264 = vmatprep.subr.mxu0 0.0
    %265 = vmatpush1.xpose.msra.mxu0 0.0
    %266 = vmatprep.subr.mxu0 0.0
    %267 = vmatpush1.xpose.msra.mxu0 0.0
    %268 = vmatprep.subr.mxu0 0.0
    %269 = vmatpush1.xpose.msra.mxu0 0.0
    %270 = vmatprep.subr.mxu0 0.0
    %271 = vmatpush1.xpose.msra.mxu0 0.0
    %272 = vmatprep.subr.mxu0 0.0
    %273 = vmatpush1.xpose.msra.mxu0 0.0
    %274 = vmatprep.subr.mxu0 0.0
    %275 = vmatpush1.xpose.msra.mxu0 0.0
    %276 = vmatprep.subr.mxu0 0.0
    %277 = vmatpush1.xpose.msra.mxu0 %v244
    %278 = vmatprep.subr.mxu0 0.0
    %279 = vmatpush2.xpose.msra.mxu0 0.0
    %280 = vmatprep.subr.mxu0 0.0
    %281 = vmatpush2.xpose.msra.mxu0 0.0
    %282 = vmatprep.subr.mxu0 0.0
    %283 = vmatpush2.xpose.msra.mxu0 0.0
    %284 = vmatprep.subr.mxu0 0.0
    %285 = vmatpush2.xpose.msra.mxu0 0.0
    %286 = vmatprep.subr.mxu0 0.0
    %287 = vmatpush2.xpose.msra.mxu0 0.0
    %288 = vmatprep.subr.mxu0 0.0
    %289 = vmatpush2.xpose.msra.mxu0 0.0
    %290 = vmatprep.subr.mxu0 0.0
    %291 = vmatpush2.xpose.msra.mxu0 0.0
    %292 = vmatprep.subr.mxu0 0.0
    %293 = vmatpush2.xpose.msra.mxu0 0.0
    %294 = vmatprep.subr.mxu0 0.0
    %295 = vmatpush2.xpose.msra.mxu0 0.0
    %296 = vmatprep.subr.mxu0 0.0
    %297 = vmatpush2.xpose.msra.mxu0 0.0
    %298 = vmatprep.subr.mxu0 0.0
    %299 = vmatpush2.xpose.msra.mxu0 0.0
    %300 = vmatprep.subr.mxu0 0.0
    %301 = vmatpush2.xpose.msra.mxu0 0.0
    %302 = vmatprep.subr.mxu0 0.0
    %303 = vmatpush2.xpose.msra.mxu0 0.0
    %304 = vmatprep.subr.mxu0 0.0
    %305 = vmatpush2.xpose.msra.mxu0 0.0
    %306 = vmatprep.subr.mxu0 0.0
    %307 = vmatpush2.xpose.msra.mxu0 0.0
    %308 = vmatprep.subr.mxu0 0.0
    %309 = vmatpush2.xpose.msra.mxu0 0.0
    %310 = vmatprep.mubr.f32.mxu0 0.0
    %311 = vmatmul.mubr.f32.gmra.mxu0 %v238
    %v312 = vpop.f32.mrf.mxu0
    %v313 = vadd.f32 0.0, %v312
    %v314 = vpop.f32.mrf.mxu0
    %315 = vmatprep.mubr.f32.mxu0 0.0
    %316 = vmatmul.mubr.f32.gmra.mxu0 %v241
    %v317 = vpop.f32.mrf.mxu0
    %v318 = vadd.f32 0.0, %v317
    %v319 = vpop.f32.mrf.mxu0
    %320 = vdwg.mxu0
    %322 = vset.pattern.permute.xlu0 0
    %323 = vperm.xlu0 %322, %v313
    %v324 = vpop.permute.xlu0 %323
    %327 = vset.pattern.permute.xlu0 0
    %328 = vperm.xlu0 %327, %v318
    %v329 = vpop.permute.xlu0 %328
    %v331 = vmul.f32 %v122, %v324
    %v332 = vmul.f32 %v123, %v329
    %333 = vrot.lane.b32.xlu0 %v224, 112
    %v334 = vpop.permute.xlu0 %333
    %335 = vrot.lane.b32.xlu0 %v230, 112
    %v336 = vpop.permute.xlu0 %335
    %v337 = vsel %vm236, %v334, 0
    %v339 = vsel %vm236, %v336, 0
    %341 = vmatprep.subr.mxu0 0.0
    %342 = vmatpush1.xpose.msra.mxu0 0.0
    %343 = vmatprep.subr.mxu0 0.0
    %344 = vmatpush1.xpose.msra.mxu0 0.0
    %345 = vmatprep.subr.mxu0 0.0
    %346 = vmatpush1.xpose.msra.mxu0 0.0
    %347 = vmatprep.subr.mxu0 0.0
    %348 = vmatpush1.xpose.msra.mxu0 0.0
    %349 = vmatprep.subr.mxu0 0.0
    %350 = vmatpush1.xpose.msra.mxu0 0.0
    %351 = vmatprep.subr.mxu0 0.0
    %352 = vmatpush1.xpose.msra.mxu0 0.0
    %353 = vmatprep.subr.mxu0 0.0
    %354 = vmatpush1.xpose.msra.mxu0 0.0
    %355 = vmatprep.subr.mxu0 0.0
    %356 = vmatpush1.xpose.msra.mxu0 0.0
    %357 = vmatprep.subr.mxu0 0.0
    %358 = vmatpush1.xpose.msra.mxu0 0.0
    %359 = vmatprep.subr.mxu0 0.0
    %360 = vmatpush1.xpose.msra.mxu0 0.0
    %361 = vmatprep.subr.mxu0 0.0
    %362 = vmatpush1.xpose.msra.mxu0 0.0
    %363 = vmatprep.subr.mxu0 0.0
    %364 = vmatpush1.xpose.msra.mxu0 0.0
    %365 = vmatprep.subr.mxu0 0.0
    %366 = vmatpush1.xpose.msra.mxu0 0.0
    %367 = vmatprep.subr.mxu0 0.0
    %368 = vmatpush1.xpose.msra.mxu0 0.0
    %369 = vmatprep.subr.mxu0 0.0
    %370 = vmatpush1.xpose.msra.mxu0 %v339
    %371 = vmatprep.subr.mxu0 0.0
    %372 = vmatpush1.xpose.msra.mxu0 %v337
    %373 = vmatprep.subr.mxu0 0.0
    %374 = vmatpush2.xpose.msra.mxu0 0.0
    %375 = vmatprep.subr.mxu0 0.0
    %376 = vmatpush2.xpose.msra.mxu0 0.0
    %377 = vmatprep.subr.mxu0 0.0
    %378 = vmatpush2.xpose.msra.mxu0 0.0
    %379 = vmatprep.subr.mxu0 0.0
    %380 = vmatpush2.xpose.msra.mxu0 0.0
    %381 = vmatprep.subr.mxu0 0.0
    %382 = vmatpush2.xpose.msra.mxu0 0.0
    %383 = vmatprep.subr.mxu0 0.0
    %384 = vmatpush2.xpose.msra.mxu0 0.0
    %385 = vmatprep.subr.mxu0 0.0
    %386 = vmatpush2.xpose.msra.mxu0 0.0
    %387 = vmatprep.subr.mxu0 0.0
    %388 = vmatpush2.xpose.msra.mxu0 0.0
    %389 = vmatprep.subr.mxu0 0.0
    %390 = vmatpush2.xpose.msra.mxu0 0.0
    %391 = vmatprep.subr.mxu0 0.0
    %392 = vmatpush2.xpose.msra.mxu0 0.0
    %393 = vmatprep.subr.mxu0 0.0
    %394 = vmatpush2.xpose.msra.mxu0 0.0
    %395 = vmatprep.subr.mxu0 0.0
    %396 = vmatpush2.xpose.msra.mxu0 0.0
    %397 = vmatprep.subr.mxu0 0.0
    %398 = vmatpush2.xpose.msra.mxu0 0.0
    %399 = vmatprep.subr.mxu0 0.0
    %400 = vmatpush2.xpose.msra.mxu0 0.0
    %401 = vmatprep.subr.mxu0 0.0
    %402 = vmatpush2.xpose.msra.mxu0 0.0
    %403 = vmatprep.subr.mxu0 0.0
    %404 = vmatpush2.xpose.msra.mxu0 0.0
    %405 = vmatprep.mubr.f32.mxu0 0.0
    %406 = vmatmul.mubr.f32.gmra.mxu0 %v238
    %v407 = vpop.f32.mrf.mxu0
    %v408 = vadd.f32 %v331, %v407
    %v409 = vpop.f32.mrf.mxu0
    %410 = vmatprep.mubr.f32.mxu0 0.0
    %411 = vmatmul.mubr.f32.gmra.mxu0 %v241
    %v412 = vpop.f32.mrf.mxu0
    %v413 = vadd.f32 %v332, %v412
    %v414 = vpop.f32.mrf.mxu0
    %415 = vdwg.mxu0
    %416 = vset.pattern.permute.xlu0 1
    %417 = vperm.xlu0 %416, %v313
    %v418 = vpop.permute.xlu0 %417
    %420 = vset.pattern.permute.xlu0 1
    %421 = vperm.xlu0 %420, %v318
    %v422 = vpop.permute.xlu0 %421
    %v424 = vmul.f32 %v125, %v418
    %v425 = vmul.f32 %v126, %v422
    %v426 = vadd.f32 %v408, %v424
    %v427 = vadd.f32 %v413, %v425
    %428 = vset.pattern.permute.xlu0 2
    %429 = vperm.xlu0 %428, %v313
    %v430 = vpop.permute.xlu0 %429
    %432 = vset.pattern.permute.xlu0 2
    %433 = vperm.xlu0 %432, %v318
    %v434 = vpop.permute.xlu0 %433
    %v436 = vmul.f32 %v128, %v430
    %v437 = vmul.f32 %v129, %v434
    %v438 = vadd.f32 %v426, %v436
    %v439 = vadd.f32 %v427, %v437
    %vm440 = vcmp.gt.f32.partialorder %v120, 0.0
    %vm441 = vcmp.gt.f32.partialorder %v121, 0.0
    %v442 = vsel %vm440, %v438, -1e+30
    %v443 = vsel %vm441, %v439, -1e+30
    %v444 = vsel %vm236, %v442, -inf
    %445 = vmax.xlane.f32.xlu0 %v444
    %v446 = vpop.xlane.xlu0 %445
    %v447 = vsel %vm236, %v443, -inf
    %448 = vmax.xlane.f32.xlu0 %v447
    %v449 = vpop.xlane.xlu0 %448
    %v450 = vsub.f32 %v442, %v446
    %v451 = vsub.f32 %v443, %v449
    %v452 = vmul.f32 %v450, 1.442695
    %v453 = vpow.pop %v452
    %v454 = vmul.f32 %v451, 1.442695
    %v455 = vpow.pop %v454
    %v456 = vmul.f32 %v453, %v120
    %v457 = vmul.f32 %v455, %v121
    %v458 = vsel %vm236, %v456, 0.0
    %459 = vadd.xlane.f32.xlu0 %v458
    %v460 = vpop.xlane.xlu0 %459
    %v461 = vsel %vm236, %v457, 0.0
    %462 = vadd.xlane.f32.xlu0 %v461
    %v463 = vpop.xlane.xlu0 %462
    %vm464 = vcmp.eq.f32.partialorder %v460, 0.0
    %vm465 = vcmp.eq.f32.partialorder %v463, 0.0
    %v466 = vsel %vm464, 1.0, %v460
    %v467 = vsel %vm465, 1.0, %v463
    %v468 = vrcp.pop %v466
    %v469 = vmul.f32 1.0, %v468
    %v470 = vrcp.pop %v467
    %v471 = vmul.f32 1.0, %v470
    %v472 = vmul.f32 %v456, %v469
    %v473 = vmul.f32 %v457, %v471
    %v474 = vmul.f32 %v472, %v122
    %v475 = vmul.f32 %v473, %v123
    %v476 = vsel %vm236, %v474, 0.0
    %477 = vadd.xlane.f32.xlu0 %v476
    %v478 = vpop.xlane.xlu0 %477
    %v479 = vsel %vm236, %v475, 0.0
    %480 = vadd.xlane.f32.xlu0 %v479
    %v481 = vpop.xlane.xlu0 %480
    %v482 = vmul.f32 %v472, %v125
    %v483 = vmul.f32 %v473, %v126
    %v484 = vsel %vm236, %v482, 0.0
    %485 = vadd.xlane.f32.xlu0 %v484
    %v486 = vpop.xlane.xlu0 %485
    %v487 = vsel %vm236, %v483, 0.0
    %488 = vadd.xlane.f32.xlu0 %v487
    %v489 = vpop.xlane.xlu0 %488
    %v490 = vmul.f32 %v472, %v128
    %v491 = vmul.f32 %v473, %v129
    %v492 = vsel %vm236, %v490, 0.0
    %493 = vadd.xlane.f32.xlu0 %v492
    %v494 = vpop.xlane.xlu0 %493
    %v495 = vsel %vm236, %v491, 0.0
    %496 = vadd.xlane.f32.xlu0 %v495
    %v497 = vpop.xlane.xlu0 %496
    %vm498 = vcmask 7168
    %v499 = vsel %vm498, %v478, %v486
    %v500 = vsel %vm498, %v481, %v489
    %vm501 = vcmask 15360
    %v502 = vsel %vm501, %v499, %v494
    %v503 = vsel %vm501, %v500, %v497
    %504 = vrot.lane.b32.xlu0 %v224, 80
    %v505 = vpop.permute.xlu0 %504
    %506 = vrot.lane.b32.xlu0 %v230, 80
    %v507 = vpop.permute.xlu0 %506
    %v508 = vrot.slane %v234, 3
    %v509 = vsel %vm236, %v505, 0
    %v511 = vsel %vm236, %v507, 0
    %v513 = vsel %vm236, %v508, 0
    %515 = vmatprep.subr.mxu0 0.0
    %516 = vmatpush1.xpose.msra.mxu0 0.0
    %517 = vmatprep.subr.mxu0 0.0
    %518 = vmatpush1.xpose.msra.mxu0 0.0
    %519 = vmatprep.subr.mxu0 0.0
    %520 = vmatpush1.xpose.msra.mxu0 0.0
    %521 = vmatprep.subr.mxu0 0.0
    %522 = vmatpush1.xpose.msra.mxu0 0.0
    %523 = vmatprep.subr.mxu0 0.0
    %524 = vmatpush1.xpose.msra.mxu0 0.0
    %525 = vmatprep.subr.mxu0 0.0
    %526 = vmatpush1.xpose.msra.mxu0 0.0
    %527 = vmatprep.subr.mxu0 0.0
    %528 = vmatpush1.xpose.msra.mxu0 0.0
    %529 = vmatprep.subr.mxu0 0.0
    %530 = vmatpush1.xpose.msra.mxu0 0.0
    %531 = vmatprep.subr.mxu0 0.0
    %532 = vmatpush1.xpose.msra.mxu0 0.0
    %533 = vmatprep.subr.mxu0 0.0
    %534 = vmatpush1.xpose.msra.mxu0 0.0
    %535 = vmatprep.subr.mxu0 0.0
    %536 = vmatpush1.xpose.msra.mxu0 0.0
    %537 = vmatprep.subr.mxu0 0.0
    %538 = vmatpush1.xpose.msra.mxu0 0.0
    %539 = vmatprep.subr.mxu0 0.0
    %540 = vmatpush1.xpose.msra.mxu0 0.0
    %541 = vmatprep.subr.mxu0 0.0
    %542 = vmatpush1.xpose.msra.mxu0 0.0
    %543 = vmatprep.subr.mxu0 0.0
    %544 = vmatpush1.xpose.msra.mxu0 0.0
    %545 = vmatprep.subr.mxu0 0.0
    %546 = vmatpush1.xpose.msra.mxu0 %v513
    %547 = vmatprep.subr.mxu0 0.0
    %548 = vmatpush2.xpose.msra.mxu0 0.0
    %549 = vmatprep.subr.mxu0 0.0
    %550 = vmatpush2.xpose.msra.mxu0 0.0
    %551 = vmatprep.subr.mxu0 0.0
    %552 = vmatpush2.xpose.msra.mxu0 0.0
    %553 = vmatprep.subr.mxu0 0.0
    %554 = vmatpush2.xpose.msra.mxu0 0.0
    %555 = vmatprep.subr.mxu0 0.0
    %556 = vmatpush2.xpose.msra.mxu0 0.0
    %557 = vmatprep.subr.mxu0 0.0
    %558 = vmatpush2.xpose.msra.mxu0 0.0
    %559 = vmatprep.subr.mxu0 0.0
    %560 = vmatpush2.xpose.msra.mxu0 0.0
    %561 = vmatprep.subr.mxu0 0.0
    %562 = vmatpush2.xpose.msra.mxu0 0.0
    %563 = vmatprep.subr.mxu0 0.0
    %564 = vmatpush2.xpose.msra.mxu0 0.0
    %565 = vmatprep.subr.mxu0 0.0
    %566 = vmatpush2.xpose.msra.mxu0 0.0
    %567 = vmatprep.subr.mxu0 0.0
    %568 = vmatpush2.xpose.msra.mxu0 0.0
    %569 = vmatprep.subr.mxu0 0.0
    %570 = vmatpush2.xpose.msra.mxu0 0.0
    %571 = vmatprep.subr.mxu0 0.0
    %572 = vmatpush2.xpose.msra.mxu0 0.0
    %573 = vmatprep.subr.mxu0 0.0
    %574 = vmatpush2.xpose.msra.mxu0 0.0
    %575 = vmatprep.subr.mxu0 0.0
    %576 = vmatpush2.xpose.msra.mxu0 0.0
    %577 = vmatprep.subr.mxu0 0.0
    %578 = vmatpush2.xpose.msra.mxu0 0.0
    %579 = vmatprep.mubr.f32.mxu0 0.0
    %580 = vmatmul.mubr.f32.gmra.mxu0 %v509
    %v581 = vpop.f32.mrf.mxu0
    %v582 = vadd.f32 0.0, %v581
    %v583 = vpop.f32.mrf.mxu0
    %584 = vmatprep.mubr.f32.mxu0 0.0
    %585 = vmatmul.mubr.f32.gmra.mxu0 %v511
    %v586 = vpop.f32.mrf.mxu0
    %v587 = vadd.f32 0.0, %v586
    %v588 = vpop.f32.mrf.mxu0
    %589 = vdwg.mxu0
    %591 = vset.pattern.permute.xlu0 0
    %592 = vperm.xlu0 %591, %v582
    %v593 = vpop.permute.xlu0 %592
    %596 = vset.pattern.permute.xlu0 0
    %597 = vperm.xlu0 %596, %v587
    %v598 = vpop.permute.xlu0 %597
    %v600 = vmul.f32 %v122, %v593
    %v601 = vmul.f32 %v123, %v598
    %602 = vrot.lane.b32.xlu0 %v224, 64
    %v603 = vpop.permute.xlu0 %602
    %604 = vrot.lane.b32.xlu0 %v230, 64
    %v605 = vpop.permute.xlu0 %604
    %v606 = vsel %vm236, %v603, 0
    %v608 = vsel %vm236, %v605, 0
    %610 = vmatprep.subr.mxu0 0.0
    %611 = vmatpush1.xpose.msra.mxu0 0.0
    %612 = vmatprep.subr.mxu0 0.0
    %613 = vmatpush1.xpose.msra.mxu0 0.0
    %614 = vmatprep.subr.mxu0 0.0
    %615 = vmatpush1.xpose.msra.mxu0 0.0
    %616 = vmatprep.subr.mxu0 0.0
    %617 = vmatpush1.xpose.msra.mxu0 0.0
    %618 = vmatprep.subr.mxu0 0.0
    %619 = vmatpush1.xpose.msra.mxu0 0.0
    %620 = vmatprep.subr.mxu0 0.0
    %621 = vmatpush1.xpose.msra.mxu0 0.0
    %622 = vmatprep.subr.mxu0 0.0
    %623 = vmatpush1.xpose.msra.mxu0 0.0
    %624 = vmatprep.subr.mxu0 0.0
    %625 = vmatpush1.xpose.msra.mxu0 0.0
    %626 = vmatprep.subr.mxu0 0.0
    %627 = vmatpush1.xpose.msra.mxu0 0.0
    %628 = vmatprep.subr.mxu0 0.0
    %629 = vmatpush1.xpose.msra.mxu0 0.0
    %630 = vmatprep.subr.mxu0 0.0
    %631 = vmatpush1.xpose.msra.mxu0 0.0
    %632 = vmatprep.subr.mxu0 0.0
    %633 = vmatpush1.xpose.msra.mxu0 0.0
    %634 = vmatprep.subr.mxu0 0.0
    %635 = vmatpush1.xpose.msra.mxu0 0.0
    %636 = vmatprep.subr.mxu0 0.0
    %637 = vmatpush1.xpose.msra.mxu0 0.0
    %638 = vmatprep.subr.mxu0 0.0
    %639 = vmatpush1.xpose.msra.mxu0 %v608
    %640 = vmatprep.subr.mxu0 0.0
    %641 = vmatpush1.xpose.msra.mxu0 %v606
    %642 = vmatprep.subr.mxu0 0.0
    %643 = vmatpush2.xpose.msra.mxu0 0.0
    %644 = vmatprep.subr.mxu0 0.0
    %645 = vmatpush2.xpose.msra.mxu0 0.0
    %646 = vmatprep.subr.mxu0 0.0
    %647 = vmatpush2.xpose.msra.mxu0 0.0
    %648 = vmatprep.subr.mxu0 0.0
    %649 = vmatpush2.xpose.msra.mxu0 0.0
    %650 = vmatprep.subr.mxu0 0.0
    %651 = vmatpush2.xpose.msra.mxu0 0.0
    %652 = vmatprep.subr.mxu0 0.0
    %653 = vmatpush2.xpose.msra.mxu0 0.0
    %654 = vmatprep.subr.mxu0 0.0
    %655 = vmatpush2.xpose.msra.mxu0 0.0
    %656 = vmatprep.subr.mxu0 0.0
    %657 = vmatpush2.xpose.msra.mxu0 0.0
    %658 = vmatprep.subr.mxu0 0.0
    %659 = vmatpush2.xpose.msra.mxu0 0.0
    %660 = vmatprep.subr.mxu0 0.0
    %661 = vmatpush2.xpose.msra.mxu0 0.0
    %662 = vmatprep.subr.mxu0 0.0
    %663 = vmatpush2.xpose.msra.mxu0 0.0
    %664 = vmatprep.subr.mxu0 0.0
    %665 = vmatpush2.xpose.msra.mxu0 0.0
    %666 = vmatprep.subr.mxu0 0.0
    %667 = vmatpush2.xpose.msra.mxu0 0.0
    %668 = vmatprep.subr.mxu0 0.0
    %669 = vmatpush2.xpose.msra.mxu0 0.0
    %670 = vmatprep.subr.mxu0 0.0
    %671 = vmatpush2.xpose.msra.mxu0 0.0
    %672 = vmatprep.subr.mxu0 0.0
    %673 = vmatpush2.xpose.msra.mxu0 0.0
    %674 = vmatprep.mubr.f32.mxu0 0.0
    %675 = vmatmul.mubr.f32.gmra.mxu0 %v509
    %v676 = vpop.f32.mrf.mxu0
    %v677 = vadd.f32 %v600, %v676
    %v678 = vpop.f32.mrf.mxu0
    %679 = vmatprep.mubr.f32.mxu0 0.0
    %680 = vmatmul.mubr.f32.gmra.mxu0 %v511
    %v681 = vpop.f32.mrf.mxu0
    %v682 = vadd.f32 %v601, %v681
    %v683 = vpop.f32.mrf.mxu0
    %684 = vdwg.mxu0
    %685 = vset.pattern.permute.xlu0 1
    %686 = vperm.xlu0 %685, %v582
    %v687 = vpop.permute.xlu0 %686
    %689 = vset.pattern.permute.xlu0 1
    %690 = vperm.xlu0 %689, %v587
    %v691 = vpop.permute.xlu0 %690
    %v693 = vmul.f32 %v125, %v687
    %v694 = vmul.f32 %v126, %v691
    %v695 = vadd.f32 %v677, %v693
    %v696 = vadd.f32 %v682, %v694
    %697 = vset.pattern.permute.xlu0 2
    %698 = vperm.xlu0 %697, %v582
    %v699 = vpop.permute.xlu0 %698
    %701 = vset.pattern.permute.xlu0 2
    %702 = vperm.xlu0 %701, %v587
    %v703 = vpop.permute.xlu0 %702
    %v705 = vmul.f32 %v128, %v699
    %v706 = vmul.f32 %v129, %v703
    %v707 = vadd.f32 %v695, %v705
    %v708 = vadd.f32 %v696, %v706
    %v709 = vsel %vm440, %v707, -1e+30
    %v710 = vsel %vm441, %v708, -1e+30
    %v711 = vsel %vm236, %v709, -inf
    %712 = vmax.xlane.f32.xlu0 %v711
    %v713 = vpop.xlane.xlu0 %712
    %v714 = vsel %vm236, %v710, -inf
    %715 = vmax.xlane.f32.xlu0 %v714
    %v716 = vpop.xlane.xlu0 %715
    %v717 = vsub.f32 %v709, %v713
    %v718 = vsub.f32 %v710, %v716
    %v719 = vmul.f32 %v717, 1.442695
    %v720 = vpow.pop %v719
    %v721 = vmul.f32 %v718, 1.442695
    %v722 = vpow.pop %v721
    %v723 = vmul.f32 %v720, %v120
    %v724 = vmul.f32 %v722, %v121
    %v725 = vsel %vm236, %v723, 0.0
    %726 = vadd.xlane.f32.xlu0 %v725
    %v727 = vpop.xlane.xlu0 %726
    %v728 = vsel %vm236, %v724, 0.0
    %729 = vadd.xlane.f32.xlu0 %v728
    %v730 = vpop.xlane.xlu0 %729
    %vm731 = vcmp.eq.f32.partialorder %v727, 0.0
    %vm732 = vcmp.eq.f32.partialorder %v730, 0.0
    %v733 = vsel %vm731, 1.0, %v727
    %v734 = vsel %vm732, 1.0, %v730
    %v735 = vrcp.pop %v733
    %v736 = vmul.f32 1.0, %v735
    %v737 = vrcp.pop %v734
    %v738 = vmul.f32 1.0, %v737
    %v739 = vmul.f32 %v723, %v736
    %v740 = vmul.f32 %v724, %v738
    %v741 = vmul.f32 %v739, %v122
    %v742 = vmul.f32 %v740, %v123
    %v743 = vsel %vm236, %v741, 0.0
    %744 = vadd.xlane.f32.xlu0 %v743
    %v745 = vpop.xlane.xlu0 %744
    %v746 = vsel %vm236, %v742, 0.0
    %747 = vadd.xlane.f32.xlu0 %v746
    %v748 = vpop.xlane.xlu0 %747
    %v749 = vmul.f32 %v739, %v125
    %v750 = vmul.f32 %v740, %v126
    %v751 = vsel %vm236, %v749, 0.0
    %752 = vadd.xlane.f32.xlu0 %v751
    %v753 = vpop.xlane.xlu0 %752
    %v754 = vsel %vm236, %v750, 0.0
    %755 = vadd.xlane.f32.xlu0 %v754
    %v756 = vpop.xlane.xlu0 %755
    %v757 = vmul.f32 %v739, %v128
    %v758 = vmul.f32 %v740, %v129
    %v759 = vsel %vm236, %v757, 0.0
    %760 = vadd.xlane.f32.xlu0 %v759
    %v761 = vpop.xlane.xlu0 %760
    %v762 = vsel %vm236, %v758, 0.0
    %763 = vadd.xlane.f32.xlu0 %v762
    %v764 = vpop.xlane.xlu0 %763
    %v765 = vsel %vm498, %v745, %v753
    %v766 = vsel %vm498, %v748, %v756
    %v767 = vsel %vm501, %v765, %v761
    %v768 = vsel %vm501, %v766, %v764
    %769 = vrot.lane.b32.xlu0 %v224, 32
    %v770 = vpop.permute.xlu0 %769
    %771 = vrot.lane.b32.xlu0 %v230, 32
    %v772 = vpop.permute.xlu0 %771
    %vm774 = vcmask 1041408
    %v775 = vrot.slane %v234, 6
    %v776 = vrot.slane %v235, 6
    %v777 = vsel %vm774, %v775, %v776
    %v778 = vsel %vm236, %v770, 0
    %v780 = vsel %vm236, %v772, 0
    %v782 = vsel %vm236, %v777, 0
    %784 = vmatprep.subr.mxu0 0.0
    %785 = vmatpush1.xpose.msra.mxu0 0.0
    %786 = vmatprep.subr.mxu0 0.0
    %787 = vmatpush1.xpose.msra.mxu0 0.0
    %788 = vmatprep.subr.mxu0 0.0
    %789 = vmatpush1.xpose.msra.mxu0 0.0
    %790 = vmatprep.subr.mxu0 0.0
    %791 = vmatpush1.xpose.msra.mxu0 0.0
    %792 = vmatprep.subr.mxu0 0.0
    %793 = vmatpush1.xpose.msra.mxu0 0.0
    %794 = vmatprep.subr.mxu0 0.0
    %795 = vmatpush1.xpose.msra.mxu0 0.0
    %796 = vmatprep.subr.mxu0 0.0
    %797 = vmatpush1.xpose.msra.mxu0 0.0
    %798 = vmatprep.subr.mxu0 0.0
    %799 = vmatpush1.xpose.msra.mxu0 0.0
    %800 = vmatprep.subr.mxu0 0.0
    %801 = vmatpush1.xpose.msra.mxu0 0.0
    %802 = vmatprep.subr.mxu0 0.0
    %803 = vmatpush1.xpose.msra.mxu0 0.0
    %804 = vmatprep.subr.mxu0 0.0
    %805 = vmatpush1.xpose.msra.mxu0 0.0
    %806 = vmatprep.subr.mxu0 0.0
    %807 = vmatpush1.xpose.msra.mxu0 0.0
    %808 = vmatprep.subr.mxu0 0.0
    %809 = vmatpush1.xpose.msra.mxu0 0.0
    %810 = vmatprep.subr.mxu0 0.0
    %811 = vmatpush1.xpose.msra.mxu0 0.0
    %812 = vmatprep.subr.mxu0 0.0
    %813 = vmatpush1.xpose.msra.mxu0 0.0
    %814 = vmatprep.subr.mxu0 0.0
    %815 = vmatpush1.xpose.msra.mxu0 %v782
    %816 = vmatprep.subr.mxu0 0.0
    %817 = vmatpush2.xpose.msra.mxu0 0.0
    %818 = vmatprep.subr.mxu0 0.0
    %819 = vmatpush2.xpose.msra.mxu0 0.0
    %820 = vmatprep.subr.mxu0 0.0
    %821 = vmatpush2.xpose.msra.mxu0 0.0
    %822 = vmatprep.subr.mxu0 0.0
    %823 = vmatpush2.xpose.msra.mxu0 0.0
    %824 = vmatprep.subr.mxu0 0.0
    %825 = vmatpush2.xpose.msra.mxu0 0.0
    %826 = vmatprep.subr.mxu0 0.0
    %827 = vmatpush2.xpose.msra.mxu0 0.0
    %828 = vmatprep.subr.mxu0 0.0
    %829 = vmatpush2.xpose.msra.mxu0 0.0
    %830 = vmatprep.subr.mxu0 0.0
    %831 = vmatpush2.xpose.msra.mxu0 0.0
    %832 = vmatprep.subr.mxu0 0.0
    %833 = vmatpush2.xpose.msra.mxu0 0.0
    %834 = vmatprep.subr.mxu0 0.0
    %835 = vmatpush2.xpose.msra.mxu0 0.0
    %836 = vmatprep.subr.mxu0 0.0
    %837 = vmatpush2.xpose.msra.mxu0 0.0
    %838 = vmatprep.subr.mxu0 0.0
    %839 = vmatpush2.xpose.msra.mxu0 0.0
    %840 = vmatprep.subr.mxu0 0.0
    %841 = vmatpush2.xpose.msra.mxu0 0.0
    %842 = vmatprep.subr.mxu0 0.0
    %843 = vmatpush2.xpose.msra.mxu0 0.0
    %844 = vmatprep.subr.mxu0 0.0
    %845 = vmatpush2.xpose.msra.mxu0 0.0
    %846 = vmatprep.subr.mxu0 0.0
    %847 = vmatpush2.xpose.msra.mxu0 0.0
    %848 = vmatprep.mubr.f32.mxu0 0.0
    %849 = vmatmul.mubr.f32.gmra.mxu0 %v778
    %v850 = vpop.f32.mrf.mxu0
    %v851 = vadd.f32 0.0, %v850
    %v852 = vpop.f32.mrf.mxu0
    %853 = vmatprep.mubr.f32.mxu0 0.0
    %854 = vmatmul.mubr.f32.gmra.mxu0 %v780
    %v855 = vpop.f32.mrf.mxu0
    %v856 = vadd.f32 0.0, %v855
    %v857 = vpop.f32.mrf.mxu0
    %858 = vdwg.mxu0
    %860 = vset.pattern.permute.xlu0 0
    %861 = vperm.xlu0 %860, %v851
    %v862 = vpop.permute.xlu0 %861
    %865 = vset.pattern.permute.xlu0 0
    %866 = vperm.xlu0 %865, %v856
    %v867 = vpop.permute.xlu0 %866
    %v869 = vmul.f32 %v122, %v862
    %v870 = vmul.f32 %v123, %v867
    %871 = vrot.lane.b32.xlu0 %v224, 16
    %v872 = vpop.permute.xlu0 %871
    %873 = vrot.lane.b32.xlu0 %v230, 16
    %v874 = vpop.permute.xlu0 %873
    %v875 = vsel %vm236, %v872, 0
    %v877 = vsel %vm236, %v874, 0
    %879 = vmatprep.subr.mxu0 0.0
    %880 = vmatpush1.xpose.msra.mxu0 0.0
    %881 = vmatprep.subr.mxu0 0.0
    %882 = vmatpush1.xpose.msra.mxu0 0.0
    %883 = vmatprep.subr.mxu0 0.0
    %884 = vmatpush1.xpose.msra.mxu0 0.0
    %885 = vmatprep.subr.mxu0 0.0
    %886 = vmatpush1.xpose.msra.mxu0 0.0
    %887 = vmatprep.subr.mxu0 0.0
    %888 = vmatpush1.xpose.msra.mxu0 0.0
    %889 = vmatprep.subr.mxu0 0.0
    %890 = vmatpush1.xpose.msra.mxu0 0.0
    %891 = vmatprep.subr.mxu0 0.0
    %892 = vmatpush1.xpose.msra.mxu0 0.0
    %893 = vmatprep.subr.mxu0 0.0
    %894 = vmatpush1.xpose.msra.mxu0 0.0
    %895 = vmatprep.subr.mxu0 0.0
    %896 = vmatpush1.xpose.msra.mxu0 0.0
    %897 = vmatprep.subr.mxu0 0.0
    %898 = vmatpush1.xpose.msra.mxu0 0.0
    %899 = vmatprep.subr.mxu0 0.0
    %900 = vmatpush1.xpose.msra.mxu0 0.0
    %901 = vmatprep.subr.mxu0 0.0
    %902 = vmatpush1.xpose.msra.mxu0 0.0
    %903 = vmatprep.subr.mxu0 0.0
    %904 = vmatpush1.xpose.msra.mxu0 0.0
    %905 = vmatprep.subr.mxu0 0.0
    %906 = vmatpush1.xpose.msra.mxu0 0.0
    %907 = vmatprep.subr.mxu0 0.0
    %908 = vmatpush1.xpose.msra.mxu0 %v877
    %909 = vmatprep.subr.mxu0 0.0
    %910 = vmatpush1.xpose.msra.mxu0 %v875
    %911 = vmatprep.subr.mxu0 0.0
    %912 = vmatpush2.xpose.msra.mxu0 0.0
    %913 = vmatprep.subr.mxu0 0.0
    %914 = vmatpush2.xpose.msra.mxu0 0.0
    %915 = vmatprep.subr.mxu0 0.0
    %916 = vmatpush2.xpose.msra.mxu0 0.0
    %917 = vmatprep.subr.mxu0 0.0
    %918 = vmatpush2.xpose.msra.mxu0 0.0
    %919 = vmatprep.subr.mxu0 0.0
    %920 = vmatpush2.xpose.msra.mxu0 0.0
    %921 = vmatprep.subr.mxu0 0.0
    %922 = vmatpush2.xpose.msra.mxu0 0.0
    %923 = vmatprep.subr.mxu0 0.0
    %924 = vmatpush2.xpose.msra.mxu0 0.0
    %925 = vmatprep.subr.mxu0 0.0
    %926 = vmatpush2.xpose.msra.mxu0 0.0
    %927 = vmatprep.subr.mxu0 0.0
    %928 = vmatpush2.xpose.msra.mxu0 0.0
    %929 = vmatprep.subr.mxu0 0.0
    %930 = vmatpush2.xpose.msra.mxu0 0.0
    %931 = vmatprep.subr.mxu0 0.0
    %932 = vmatpush2.xpose.msra.mxu0 0.0
    %933 = vmatprep.subr.mxu0 0.0
    %934 = vmatpush2.xpose.msra.mxu0 0.0
    %935 = vmatprep.subr.mxu0 0.0
    %936 = vmatpush2.xpose.msra.mxu0 0.0
    %937 = vmatprep.subr.mxu0 0.0
    %938 = vmatpush2.xpose.msra.mxu0 0.0
    %939 = vmatprep.subr.mxu0 0.0
    %940 = vmatpush2.xpose.msra.mxu0 0.0
    %941 = vmatprep.subr.mxu0 0.0
    %942 = vmatpush2.xpose.msra.mxu0 0.0
    %943 = vmatprep.mubr.f32.mxu0 0.0
    %944 = vmatmul.mubr.f32.gmra.mxu0 %v778
    %v945 = vpop.f32.mrf.mxu0
    %v946 = vadd.f32 %v869, %v945
    %v947 = vpop.f32.mrf.mxu0
    %948 = vmatprep.mubr.f32.mxu0 0.0
    %949 = vmatmul.mubr.f32.gmra.mxu0 %v780
    %v950 = vpop.f32.mrf.mxu0
    %v951 = vadd.f32 %v870, %v950
    %v952 = vpop.f32.mrf.mxu0
    %953 = vdwg.mxu0
    %954 = vset.pattern.permute.xlu0 1
    %955 = vperm.xlu0 %954, %v851
    %v956 = vpop.permute.xlu0 %955
    %958 = vset.pattern.permute.xlu0 1
    %959 = vperm.xlu0 %958, %v856
    %v960 = vpop.permute.xlu0 %959
    %v962 = vmul.f32 %v125, %v956
    %v963 = vmul.f32 %v126, %v960
    %v964 = vadd.f32 %v946, %v962
    %v965 = vadd.f32 %v951, %v963
    %966 = vset.pattern.permute.xlu0 2
    %967 = vperm.xlu0 %966, %v851
    %v968 = vpop.permute.xlu0 %967
    %970 = vset.pattern.permute.xlu0 2
    %971 = vperm.xlu0 %970, %v856
    %v972 = vpop.permute.xlu0 %971
    %v974 = vmul.f32 %v128, %v968
    %v975 = vmul.f32 %v129, %v972
    %v976 = vadd.f32 %v964, %v974
    %v977 = vadd.f32 %v965, %v975
    %v978 = vsel %vm440, %v976, -1e+30
    %v979 = vsel %vm441, %v977, -1e+30
    %v980 = vsel %vm236, %v978, -inf
    %981 = vmax.xlane.f32.xlu0 %v980
    %v982 = vpop.xlane.xlu0 %981
    %v983 = vsel %vm236, %v979, -inf
    %984 = vmax.xlane.f32.xlu0 %v983
    %v985 = vpop.xlane.xlu0 %984
    %v986 = vsub.f32 %v978, %v982
    %v987 = vsub.f32 %v979, %v985
    %v988 = vmul.f32 %v986, 1.442695
    %v989 = vpow.pop %v988
    %v990 = vmul.f32 %v987, 1.442695
    %v991 = vpow.pop %v990
    %v992 = vmul.f32 %v989, %v120
    %v993 = vmul.f32 %v991, %v121
    %v994 = vsel %vm236, %v992, 0.0
    %995 = vadd.xlane.f32.xlu0 %v994
    %v996 = vpop.xlane.xlu0 %995
    %v997 = vsel %vm236, %v993, 0.0
    %998 = vadd.xlane.f32.xlu0 %v997
    %v999 = vpop.xlane.xlu0 %998
    %vm1000 = vcmp.eq.f32.partialorder %v996, 0.0
    %vm1001 = vcmp.eq.f32.partialorder %v999, 0.0
    %v1002 = vsel %vm1000, 1.0, %v996
    %v1003 = vsel %vm1001, 1.0, %v999
    %v1004 = vrcp.pop %v1002
    %v1005 = vmul.f32 1.0, %v1004
    %v1006 = vrcp.pop %v1003
    %v1007 = vmul.f32 1.0, %v1006
    %v1008 = vmul.f32 %v992, %v1005
    %v1009 = vmul.f32 %v993, %v1007
    %v1010 = vmul.f32 %v1008, %v122
    %v1011 = vmul.f32 %v1009, %v123
    %v1012 = vsel %vm236, %v1010, 0.0
    %1013 = vadd.xlane.f32.xlu0 %v1012
    %v1014 = vpop.xlane.xlu0 %1013
    %v1015 = vsel %vm236, %v1011, 0.0
    %1016 = vadd.xlane.f32.xlu0 %v1015
    %v1017 = vpop.xlane.xlu0 %1016
    %v1018 = vmul.f32 %v1008, %v125
    %v1019 = vmul.f32 %v1009, %v126
    %v1020 = vsel %vm236, %v1018, 0.0
    %1021 = vadd.xlane.f32.xlu0 %v1020
    %v1022 = vpop.xlane.xlu0 %1021
    %v1023 = vsel %vm236, %v1019, 0.0
    %1024 = vadd.xlane.f32.xlu0 %v1023
    %v1025 = vpop.xlane.xlu0 %1024
    %v1026 = vmul.f32 %v1008, %v128
    %v1027 = vmul.f32 %v1009, %v129
    %v1028 = vsel %vm236, %v1026, 0.0
    %1029 = vadd.xlane.f32.xlu0 %v1028
    %v1030 = vpop.xlane.xlu0 %1029
    %v1031 = vsel %vm236, %v1027, 0.0
    %1032 = vadd.xlane.f32.xlu0 %v1031
    %v1033 = vpop.xlane.xlu0 %1032
    %v1034 = vsel %vm498, %v1014, %v1022
    %v1035 = vsel %vm498, %v1017, %v1025
    %v1036 = vsel %vm501, %v1034, %v1030
    %v1037 = vsel %vm501, %v1035, %v1033
    %1040 = vrot.lane.b32.xlu0 %v226, 112
    %v1041 = vpop.permute.xlu0 %1040
    %1042 = vrot.lane.b32.xlu0 %v232, 112
    %v1043 = vpop.permute.xlu0 %1042
    %v1044 = vrot.slane %v235, 1
    %v1045 = vsel %vm236, %v1041, 0
    %v1047 = vsel %vm236, %v1043, 0
    %v1049 = vsel %vm236, %v1044, 0
    %1051 = vmatprep.subr.mxu0 0.0
    %1052 = vmatpush1.xpose.msra.mxu0 0.0
    %1053 = vmatprep.subr.mxu0 0.0
    %1054 = vmatpush1.xpose.msra.mxu0 0.0
    %1055 = vmatprep.subr.mxu0 0.0
    %1056 = vmatpush1.xpose.msra.mxu0 0.0
    %1057 = vmatprep.subr.mxu0 0.0
    %1058 = vmatpush1.xpose.msra.mxu0 0.0
    %1059 = vmatprep.subr.mxu0 0.0
    %1060 = vmatpush1.xpose.msra.mxu0 0.0
    %1061 = vmatprep.subr.mxu0 0.0
    %1062 = vmatpush1.xpose.msra.mxu0 0.0
    %1063 = vmatprep.subr.mxu0 0.0
    %1064 = vmatpush1.xpose.msra.mxu0 0.0
    %1065 = vmatprep.subr.mxu0 0.0
    %1066 = vmatpush1.xpose.msra.mxu0 0.0
    %1067 = vmatprep.subr.mxu0 0.0
    %1068 = vmatpush1.xpose.msra.mxu0 0.0
    %1069 = vmatprep.subr.mxu0 0.0
    %1070 = vmatpush1.xpose.msra.mxu0 0.0
    %1071 = vmatprep.subr.mxu0 0.0
    %1072 = vmatpush1.xpose.msra.mxu0 0.0
    %1073 = vmatprep.subr.mxu0 0.0
    %1074 = vmatpush1.xpose.msra.mxu0 0.0
    %1075 = vmatprep.subr.mxu0 0.0
    %1076 = vmatpush1.xpose.msra.mxu0 0.0
    %1077 = vmatprep.subr.mxu0 0.0
    %1078 = vmatpush1.xpose.msra.mxu0 0.0
    %1079 = vmatprep.subr.mxu0 0.0
    %1080 = vmatpush1.xpose.msra.mxu0 0.0
    %1081 = vmatprep.subr.mxu0 0.0
    %1082 = vmatpush1.xpose.msra.mxu0 %v1049
    %1083 = vmatprep.subr.mxu0 0.0
    %1084 = vmatpush2.xpose.msra.mxu0 0.0
    %1085 = vmatprep.subr.mxu0 0.0
    %1086 = vmatpush2.xpose.msra.mxu0 0.0
    %1087 = vmatprep.subr.mxu0 0.0
    %1088 = vmatpush2.xpose.msra.mxu0 0.0
    %1089 = vmatprep.subr.mxu0 0.0
    %1090 = vmatpush2.xpose.msra.mxu0 0.0
    %1091 = vmatprep.subr.mxu0 0.0
    %1092 = vmatpush2.xpose.msra.mxu0 0.0
    %1093 = vmatprep.subr.mxu0 0.0
    %1094 = vmatpush2.xpose.msra.mxu0 0.0
    %1095 = vmatprep.subr.mxu0 0.0
    %1096 = vmatpush2.xpose.msra.mxu0 0.0
    %1097 = vmatprep.subr.mxu0 0.0
    %1098 = vmatpush2.xpose.msra.mxu0 0.0
    %1099 = vmatprep.subr.mxu0 0.0
    %1100 = vmatpush2.xpose.msra.mxu0 0.0
    %1101 = vmatprep.subr.mxu0 0.0
    %1102 = vmatpush2.xpose.msra.mxu0 0.0
    %1103 = vmatprep.subr.mxu0 0.0
    %1104 = vmatpush2.xpose.msra.mxu0 0.0
    %1105 = vmatprep.subr.mxu0 0.0
    %1106 = vmatpush2.xpose.msra.mxu0 0.0
    %1107 = vmatprep.subr.mxu0 0.0
    %1108 = vmatpush2.xpose.msra.mxu0 0.0
    %1109 = vmatprep.subr.mxu0 0.0
    %1110 = vmatpush2.xpose.msra.mxu0 0.0
    %1111 = vmatprep.subr.mxu0 0.0
    %1112 = vmatpush2.xpose.msra.mxu0 0.0
    %1113 = vmatprep.subr.mxu0 0.0
    %1114 = vmatpush2.xpose.msra.mxu0 0.0
    %1115 = vmatprep.mubr.f32.mxu0 0.0
    %1116 = vmatmul.mubr.f32.gmra.mxu0 %v1045
    %v1117 = vpop.f32.mrf.mxu0
    %v1118 = vadd.f32 0.0, %v1117
    %v1119 = vpop.f32.mrf.mxu0
    %1120 = vmatprep.mubr.f32.mxu0 0.0
    %1121 = vmatmul.mubr.f32.gmra.mxu0 %v1047
    %v1122 = vpop.f32.mrf.mxu0
    %v1123 = vadd.f32 0.0, %v1122
    %v1124 = vpop.f32.mrf.mxu0
    %1125 = vdwg.mxu0
    %1127 = vset.pattern.permute.xlu0 0
    %1128 = vperm.xlu0 %1127, %v1118
    %v1129 = vpop.permute.xlu0 %1128
    %1132 = vset.pattern.permute.xlu0 0
    %1133 = vperm.xlu0 %1132, %v1123
    %v1134 = vpop.permute.xlu0 %1133
    %v1136 = vmul.f32 %v122, %v1129
    %v1137 = vmul.f32 %v123, %v1134
    %1138 = vrot.lane.b32.xlu0 %v226, 96
    %v1139 = vpop.permute.xlu0 %1138
    %1140 = vrot.lane.b32.xlu0 %v232, 96
    %v1141 = vpop.permute.xlu0 %1140
    %v1142 = vsel %vm236, %v1139, 0
    %v1144 = vsel %vm236, %v1141, 0
    %1146 = vmatprep.subr.mxu0 0.0
    %1147 = vmatpush1.xpose.msra.mxu0 0.0
    %1148 = vmatprep.subr.mxu0 0.0
    %1149 = vmatpush1.xpose.msra.mxu0 0.0
    %1150 = vmatprep.subr.mxu0 0.0
    %1151 = vmatpush1.xpose.msra.mxu0 0.0
    %1152 = vmatprep.subr.mxu0 0.0
    %1153 = vmatpush1.xpose.msra.mxu0 0.0
    %1154 = vmatprep.subr.mxu0 0.0
    %1155 = vmatpush1.xpose.msra.mxu0 0.0
    %1156 = vmatprep.subr.mxu0 0.0
    %1157 = vmatpush1.xpose.msra.mxu0 0.0
    %1158 = vmatprep.subr.mxu0 0.0
    %1159 = vmatpush1.xpose.msra.mxu0 0.0
    %1160 = vmatprep.subr.mxu0 0.0
    %1161 = vmatpush1.xpose.msra.mxu0 0.0
    %1162 = vmatprep.subr.mxu0 0.0
    %1163 = vmatpush1.xpose.msra.mxu0 0.0
    %1164 = vmatprep.subr.mxu0 0.0
    %1165 = vmatpush1.xpose.msra.mxu0 0.0
    %1166 = vmatprep.subr.mxu0 0.0
    %1167 = vmatpush1.xpose.msra.mxu0 0.0
    %1168 = vmatprep.subr.mxu0 0.0
    %1169 = vmatpush1.xpose.msra.mxu0 0.0
    %1170 = vmatprep.subr.mxu0 0.0
    %1171 = vmatpush1.xpose.msra.mxu0 0.0
    %1172 = vmatprep.subr.mxu0 0.0
    %1173 = vmatpush1.xpose.msra.mxu0 0.0
    %1174 = vmatprep.subr.mxu0 0.0
    %1175 = vmatpush1.xpose.msra.mxu0 %v1144
    %1176 = vmatprep.subr.mxu0 0.0
    %1177 = vmatpush1.xpose.msra.mxu0 %v1142
    %1178 = vmatprep.subr.mxu0 0.0
    %1179 = vmatpush2.xpose.msra.mxu0 0.0
    %1180 = vmatprep.subr.mxu0 0.0
    %1181 = vmatpush2.xpose.msra.mxu0 0.0
    %1182 = vmatprep.subr.mxu0 0.0
    %1183 = vmatpush2.xpose.msra.mxu0 0.0
    %1184 = vmatprep.subr.mxu0 0.0
    %1185 = vmatpush2.xpose.msra.mxu0 0.0
    %1186 = vmatprep.subr.mxu0 0.0
    %1187 = vmatpush2.xpose.msra.mxu0 0.0
    %1188 = vmatprep.subr.mxu0 0.0
    %1189 = vmatpush2.xpose.msra.mxu0 0.0
    %1190 = vmatprep.subr.mxu0 0.0
    %1191 = vmatpush2.xpose.msra.mxu0 0.0
    %1192 = vmatprep.subr.mxu0 0.0
    %1193 = vmatpush2.xpose.msra.mxu0 0.0
    %1194 = vmatprep.subr.mxu0 0.0
    %1195 = vmatpush2.xpose.msra.mxu0 0.0
    %1196 = vmatprep.subr.mxu0 0.0
    %1197 = vmatpush2.xpose.msra.mxu0 0.0
    %1198 = vmatprep.subr.mxu0 0.0
    %1199 = vmatpush2.xpose.msra.mxu0 0.0
    %1200 = vmatprep.subr.mxu0 0.0
    %1201 = vmatpush2.xpose.msra.mxu0 0.0
    %1202 = vmatprep.subr.mxu0 0.0
    %1203 = vmatpush2.xpose.msra.mxu0 0.0
    %1204 = vmatprep.subr.mxu0 0.0
    %1205 = vmatpush2.xpose.msra.mxu0 0.0
    %1206 = vmatprep.subr.mxu0 0.0
    %1207 = vmatpush2.xpose.msra.mxu0 0.0
    %1208 = vmatprep.subr.mxu0 0.0
    %1209 = vmatpush2.xpose.msra.mxu0 0.0
    %1210 = vmatprep.mubr.f32.mxu0 0.0
    %1211 = vmatmul.mubr.f32.gmra.mxu0 %v1045
    %v1212 = vpop.f32.mrf.mxu0
    %v1213 = vadd.f32 %v1136, %v1212
    %v1214 = vpop.f32.mrf.mxu0
    %1215 = vmatprep.mubr.f32.mxu0 0.0
    %1216 = vmatmul.mubr.f32.gmra.mxu0 %v1047
    %v1217 = vpop.f32.mrf.mxu0
    %v1218 = vadd.f32 %v1137, %v1217
    %v1219 = vpop.f32.mrf.mxu0
    %1220 = vdwg.mxu0
    %1221 = vset.pattern.permute.xlu0 1
    %1222 = vperm.xlu0 %1221, %v1118
    %v1223 = vpop.permute.xlu0 %1222
    %1225 = vset.pattern.permute.xlu0 1
    %1226 = vperm.xlu0 %1225, %v1123
    %v1227 = vpop.permute.xlu0 %1226
    %v1229 = vmul.f32 %v125, %v1223
    %v1230 = vmul.f32 %v126, %v1227
    %v1231 = vadd.f32 %v1213, %v1229
    %v1232 = vadd.f32 %v1218, %v1230
    %1233 = vset.pattern.permute.xlu0 2
    %1234 = vperm.xlu0 %1233, %v1118
    %v1235 = vpop.permute.xlu0 %1234
    %1237 = vset.pattern.permute.xlu0 2
    %1238 = vperm.xlu0 %1237, %v1123
    %v1239 = vpop.permute.xlu0 %1238
    %v1241 = vmul.f32 %v128, %v1235
    %v1242 = vmul.f32 %v129, %v1239
    %v1243 = vadd.f32 %v1231, %v1241
    %v1244 = vadd.f32 %v1232, %v1242
    %v1245 = vsel %vm440, %v1243, -1e+30
    %v1246 = vsel %vm441, %v1244, -1e+30
    %v1247 = vsel %vm236, %v1245, -inf
    %1248 = vmax.xlane.f32.xlu0 %v1247
    %v1249 = vpop.xlane.xlu0 %1248
    %v1250 = vsel %vm236, %v1246, -inf
    %1251 = vmax.xlane.f32.xlu0 %v1250
    %v1252 = vpop.xlane.xlu0 %1251
    %v1253 = vsub.f32 %v1245, %v1249
    %v1254 = vsub.f32 %v1246, %v1252
    %v1255 = vmul.f32 %v1253, 1.442695
    %v1256 = vpow.pop %v1255
    %v1257 = vmul.f32 %v1254, 1.442695
    %v1258 = vpow.pop %v1257
    %v1259 = vmul.f32 %v1256, %v120
    %v1260 = vmul.f32 %v1258, %v121
    %v1261 = vsel %vm236, %v1259, 0.0
    %1262 = vadd.xlane.f32.xlu0 %v1261
    %v1263 = vpop.xlane.xlu0 %1262
    %v1264 = vsel %vm236, %v1260, 0.0
    %1265 = vadd.xlane.f32.xlu0 %v1264
    %v1266 = vpop.xlane.xlu0 %1265
    %vm1267 = vcmp.eq.f32.partialorder %v1263, 0.0
    %vm1268 = vcmp.eq.f32.partialorder %v1266, 0.0
    %v1269 = vsel %vm1267, 1.0, %v1263
    %v1270 = vsel %vm1268, 1.0, %v1266
    %v1271 = vrcp.pop %v1269
    %v1272 = vmul.f32 1.0, %v1271
    %v1273 = vrcp.pop %v1270
    %v1274 = vmul.f32 1.0, %v1273
    %v1275 = vmul.f32 %v1259, %v1272
    %v1276 = vmul.f32 %v1260, %v1274
    %v1277 = vmul.f32 %v1275, %v122
    %v1278 = vmul.f32 %v1276, %v123
    %v1279 = vsel %vm236, %v1277, 0.0
    %1280 = vadd.xlane.f32.xlu0 %v1279
    %v1281 = vpop.xlane.xlu0 %1280
    %v1282 = vsel %vm236, %v1278, 0.0
    %1283 = vadd.xlane.f32.xlu0 %v1282
    %v1284 = vpop.xlane.xlu0 %1283
    %v1285 = vmul.f32 %v1275, %v125
    %v1286 = vmul.f32 %v1276, %v126
    %v1287 = vsel %vm236, %v1285, 0.0
    %1288 = vadd.xlane.f32.xlu0 %v1287
    %v1289 = vpop.xlane.xlu0 %1288
    %v1290 = vsel %vm236, %v1286, 0.0
    %1291 = vadd.xlane.f32.xlu0 %v1290
    %v1292 = vpop.xlane.xlu0 %1291
    %v1293 = vmul.f32 %v1275, %v128
    %v1294 = vmul.f32 %v1276, %v129
    %v1295 = vsel %vm236, %v1293, 0.0
    %1296 = vadd.xlane.f32.xlu0 %v1295
    %v1297 = vpop.xlane.xlu0 %1296
    %v1298 = vsel %vm236, %v1294, 0.0
    %1299 = vadd.xlane.f32.xlu0 %v1298
    %v1300 = vpop.xlane.xlu0 %1299
    %v1301 = vsel %vm498, %v1281, %v1289
    %v1302 = vsel %vm498, %v1284, %v1292
    %v1303 = vsel %vm501, %v1301, %v1297
    %v1304 = vsel %vm501, %v1302, %v1300
    %1305 = vrot.lane.b32.xlu0 %v226, 64
    %v1306 = vpop.permute.xlu0 %1305
    %1307 = vrot.lane.b32.xlu0 %v232, 64
    %v1308 = vpop.permute.xlu0 %1307
    %v1309 = vrot.slane %v235, 4
    %v1310 = vsel %vm236, %v1306, 0
    %v1312 = vsel %vm236, %v1308, 0
    %v1314 = vsel %vm236, %v1309, 0
    %1316 = vmatprep.subr.mxu0 0.0
    %1317 = vmatpush1.xpose.msra.mxu0 0.0
    %1318 = vmatprep.subr.mxu0 0.0
    %1319 = vmatpush1.xpose.msra.mxu0 0.0
    %1320 = vmatprep.subr.mxu0 0.0
    %1321 = vmatpush1.xpose.msra.mxu0 0.0
    %1322 = vmatprep.subr.mxu0 0.0
    %1323 = vmatpush1.xpose.msra.mxu0 0.0
    %1324 = vmatprep.subr.mxu0 0.0
    %1325 = vmatpush1.xpose.msra.mxu0 0.0
    %1326 = vmatprep.subr.mxu0 0.0
    %1327 = vmatpush1.xpose.msra.mxu0 0.0
    %1328 = vmatprep.subr.mxu0 0.0
    %1329 = vmatpush1.xpose.msra.mxu0 0.0
    %1330 = vmatprep.subr.mxu0 0.0
    %1331 = vmatpush1.xpose.msra.mxu0 0.0
    %1332 = vmatprep.subr.mxu0 0.0
    %1333 = vmatpush1.xpose.msra.mxu0 0.0
    %1334 = vmatprep.subr.mxu0 0.0
    %1335 = vmatpush1.xpose.msra.mxu0 0.0
    %1336 = vmatprep.subr.mxu0 0.0
    %1337 = vmatpush1.xpose.msra.mxu0 0.0
    %1338 = vmatprep.subr.mxu0 0.0
    %1339 = vmatpush1.xpose.msra.mxu0 0.0
    %1340 = vmatprep.subr.mxu0 0.0
    %1341 = vmatpush1.xpose.msra.mxu0 0.0
    %1342 = vmatprep.subr.mxu0 0.0
    %1343 = vmatpush1.xpose.msra.mxu0 0.0
    %1344 = vmatprep.subr.mxu0 0.0
    %1345 = vmatpush1.xpose.msra.mxu0 0.0
    %1346 = vmatprep.subr.mxu0 0.0
    %1347 = vmatpush1.xpose.msra.mxu0 %v1314
    %1348 = vmatprep.subr.mxu0 0.0
    %1349 = vmatpush2.xpose.msra.mxu0 0.0
    %1350 = vmatprep.subr.mxu0 0.0
    %1351 = vmatpush2.xpose.msra.mxu0 0.0
    %1352 = vmatprep.subr.mxu0 0.0
    %1353 = vmatpush2.xpose.msra.mxu0 0.0
    %1354 = vmatprep.subr.mxu0 0.0
    %1355 = vmatpush2.xpose.msra.mxu0 0.0
    %1356 = vmatprep.subr.mxu0 0.0
    %1357 = vmatpush2.xpose.msra.mxu0 0.0
    %1358 = vmatprep.subr.mxu0 0.0
    %1359 = vmatpush2.xpose.msra.mxu0 0.0
    %1360 = vmatprep.subr.mxu0 0.0
    %1361 = vmatpush2.xpose.msra.mxu0 0.0
    %1362 = vmatprep.subr.mxu0 0.0
    %1363 = vmatpush2.xpose.msra.mxu0 0.0
    %1364 = vmatprep.subr.mxu0 0.0
    %1365 = vmatpush2.xpose.msra.mxu0 0.0
    %1366 = vmatprep.subr.mxu0 0.0
    %1367 = vmatpush2.xpose.msra.mxu0 0.0
    %1368 = vmatprep.subr.mxu0 0.0
    %1369 = vmatpush2.xpose.msra.mxu0 0.0
    %1370 = vmatprep.subr.mxu0 0.0
    %1371 = vmatpush2.xpose.msra.mxu0 0.0
    %1372 = vmatprep.subr.mxu0 0.0
    %1373 = vmatpush2.xpose.msra.mxu0 0.0
    %1374 = vmatprep.subr.mxu0 0.0
    %1375 = vmatpush2.xpose.msra.mxu0 0.0
    %1376 = vmatprep.subr.mxu0 0.0
    %1377 = vmatpush2.xpose.msra.mxu0 0.0
    %1378 = vmatprep.subr.mxu0 0.0
    %1379 = vmatpush2.xpose.msra.mxu0 0.0
    %1380 = vmatprep.mubr.f32.mxu0 0.0
    %1381 = vmatmul.mubr.f32.gmra.mxu0 %v1310
    %v1382 = vpop.f32.mrf.mxu0
    %v1383 = vadd.f32 0.0, %v1382
    %v1384 = vpop.f32.mrf.mxu0
    %1385 = vmatprep.mubr.f32.mxu0 0.0
    %1386 = vmatmul.mubr.f32.gmra.mxu0 %v1312
    %v1387 = vpop.f32.mrf.mxu0
    %v1388 = vadd.f32 0.0, %v1387
    %v1389 = vpop.f32.mrf.mxu0
    %1390 = vdwg.mxu0
    %1392 = vset.pattern.permute.xlu0 0
    %1393 = vperm.xlu0 %1392, %v1383
    %v1394 = vpop.permute.xlu0 %1393
    %1397 = vset.pattern.permute.xlu0 0
    %1398 = vperm.xlu0 %1397, %v1388
    %v1399 = vpop.permute.xlu0 %1398
    %v1401 = vmul.f32 %v122, %v1394
    %v1402 = vmul.f32 %v123, %v1399
    %1403 = vrot.lane.b32.xlu0 %v226, 48
    %v1404 = vpop.permute.xlu0 %1403
    %1405 = vrot.lane.b32.xlu0 %v232, 48
    %v1406 = vpop.permute.xlu0 %1405
    %v1407 = vsel %vm236, %v1404, 0
    %v1409 = vsel %vm236, %v1406, 0
    %1411 = vmatprep.subr.mxu0 0.0
    %1412 = vmatpush1.xpose.msra.mxu0 0.0
    %1413 = vmatprep.subr.mxu0 0.0
    %1414 = vmatpush1.xpose.msra.mxu0 0.0
    %1415 = vmatprep.subr.mxu0 0.0
    %1416 = vmatpush1.xpose.msra.mxu0 0.0
    %1417 = vmatprep.subr.mxu0 0.0
    %1418 = vmatpush1.xpose.msra.mxu0 0.0
    %1419 = vmatprep.subr.mxu0 0.0
    %1420 = vmatpush1.xpose.msra.mxu0 0.0
    %1421 = vmatprep.subr.mxu0 0.0
    %1422 = vmatpush1.xpose.msra.mxu0 0.0
    %1423 = vmatprep.subr.mxu0 0.0
    %1424 = vmatpush1.xpose.msra.mxu0 0.0
    %1425 = vmatprep.subr.mxu0 0.0
    %1426 = vmatpush1.xpose.msra.mxu0 0.0
    %1427 = vmatprep.subr.mxu0 0.0
    %1428 = vmatpush1.xpose.msra.mxu0 0.0
    %1429 = vmatprep.subr.mxu0 0.0
    %1430 = vmatpush1.xpose.msra.mxu0 0.0
    %1431 = vmatprep.subr.mxu0 0.0
    %1432 = vmatpush1.xpose.msra.mxu0 0.0
    %1433 = vmatprep.subr.mxu0 0.0
    %1434 = vmatpush1.xpose.msra.mxu0 0.0
    %1435 = vmatprep.subr.mxu0 0.0
    %1436 = vmatpush1.xpose.msra.mxu0 0.0
    %1437 = vmatprep.subr.mxu0 0.0
    %1438 = vmatpush1.xpose.msra.mxu0 0.0
    %1439 = vmatprep.subr.mxu0 0.0
    %1440 = vmatpush1.xpose.msra.mxu0 %v1409
    %1441 = vmatprep.subr.mxu0 0.0
    %1442 = vmatpush1.xpose.msra.mxu0 %v1407
    %1443 = vmatprep.subr.mxu0 0.0
    %1444 = vmatpush2.xpose.msra.mxu0 0.0
    %1445 = vmatprep.subr.mxu0 0.0
    %1446 = vmatpush2.xpose.msra.mxu0 0.0
    %1447 = vmatprep.subr.mxu0 0.0
    %1448 = vmatpush2.xpose.msra.mxu0 0.0
    %1449 = vmatprep.subr.mxu0 0.0
    %1450 = vmatpush2.xpose.msra.mxu0 0.0
    %1451 = vmatprep.subr.mxu0 0.0
    %1452 = vmatpush2.xpose.msra.mxu0 0.0
    %1453 = vmatprep.subr.mxu0 0.0
    %1454 = vmatpush2.xpose.msra.mxu0 0.0
    %1455 = vmatprep.subr.mxu0 0.0
    %1456 = vmatpush2.xpose.msra.mxu0 0.0
    %1457 = vmatprep.subr.mxu0 0.0
    %1458 = vmatpush2.xpose.msra.mxu0 0.0
    %1459 = vmatprep.subr.mxu0 0.0
    %1460 = vmatpush2.xpose.msra.mxu0 0.0
    %1461 = vmatprep.subr.mxu0 0.0
    %1462 = vmatpush2.xpose.msra.mxu0 0.0
    %1463 = vmatprep.subr.mxu0 0.0
    %1464 = vmatpush2.xpose.msra.mxu0 0.0
    %1465 = vmatprep.subr.mxu0 0.0
    %1466 = vmatpush2.xpose.msra.mxu0 0.0
    %1467 = vmatprep.subr.mxu0 0.0
    %1468 = vmatpush2.xpose.msra.mxu0 0.0
    %1469 = vmatprep.subr.mxu0 0.0
    %1470 = vmatpush2.xpose.msra.mxu0 0.0
    %1471 = vmatprep.subr.mxu0 0.0
    %1472 = vmatpush2.xpose.msra.mxu0 0.0
    %1473 = vmatprep.subr.mxu0 0.0
    %1474 = vmatpush2.xpose.msra.mxu0 0.0
    %1475 = vmatprep.mubr.f32.mxu0 0.0
    %1476 = vmatmul.mubr.f32.gmra.mxu0 %v1310
    %v1477 = vpop.f32.mrf.mxu0
    %v1478 = vadd.f32 %v1401, %v1477
    %v1479 = vpop.f32.mrf.mxu0
    %1480 = vmatprep.mubr.f32.mxu0 0.0
    %1481 = vmatmul.mubr.f32.gmra.mxu0 %v1312
    %v1482 = vpop.f32.mrf.mxu0
    %v1483 = vadd.f32 %v1402, %v1482
    %v1484 = vpop.f32.mrf.mxu0
    %1485 = vdwg.mxu0
    %1486 = vset.pattern.permute.xlu0 1
    %1487 = vperm.xlu0 %1486, %v1383
    %v1488 = vpop.permute.xlu0 %1487
    %1490 = vset.pattern.permute.xlu0 1
    %1491 = vperm.xlu0 %1490, %v1388
    %v1492 = vpop.permute.xlu0 %1491
    %v1494 = vmul.f32 %v125, %v1488
    %v1495 = vmul.f32 %v126, %v1492
    %v1496 = vadd.f32 %v1478, %v1494
    %v1497 = vadd.f32 %v1483, %v1495
    %1498 = vset.pattern.permute.xlu0 2
    %1499 = vperm.xlu0 %1498, %v1383
    %v1500 = vpop.permute.xlu0 %1499
    %1502 = vset.pattern.permute.xlu0 2
    %1503 = vperm.xlu0 %1502, %v1388
    %v1504 = vpop.permute.xlu0 %1503
    %v1506 = vmul.f32 %v128, %v1500
    %v1507 = vmul.f32 %v129, %v1504
    %v1508 = vadd.f32 %v1496, %v1506
    %v1509 = vadd.f32 %v1497, %v1507
    %v1510 = vsel %vm440, %v1508, -1e+30
    %v1511 = vsel %vm441, %v1509, -1e+30
    %v1512 = vsel %vm236, %v1510, -inf
    %1513 = vmax.xlane.f32.xlu0 %v1512
    %v1514 = vpop.xlane.xlu0 %1513
    %v1515 = vsel %vm236, %v1511, -inf
    %1516 = vmax.xlane.f32.xlu0 %v1515
    %v1517 = vpop.xlane.xlu0 %1516
    %v1518 = vsub.f32 %v1510, %v1514
    %v1519 = vsub.f32 %v1511, %v1517
    %v1520 = vmul.f32 %v1518, 1.442695
    %v1521 = vpow.pop %v1520
    %v1522 = vmul.f32 %v1519, 1.442695
    %v1523 = vpow.pop %v1522
    %v1524 = vmul.f32 %v1521, %v120
    %v1525 = vmul.f32 %v1523, %v121
    %v1526 = vsel %vm236, %v1524, 0.0
    %1527 = vadd.xlane.f32.xlu0 %v1526
    %v1528 = vpop.xlane.xlu0 %1527
    %v1529 = vsel %vm236, %v1525, 0.0
    %1530 = vadd.xlane.f32.xlu0 %v1529
    %v1531 = vpop.xlane.xlu0 %1530
    %vm1532 = vcmp.eq.f32.partialorder %v1528, 0.0
    %vm1533 = vcmp.eq.f32.partialorder %v1531, 0.0
    %v1534 = vsel %vm1532, 1.0, %v1528
    %v1535 = vsel %vm1533, 1.0, %v1531
    %v1536 = vrcp.pop %v1534
    %v1537 = vmul.f32 1.0, %v1536
    %v1538 = vrcp.pop %v1535
    %v1539 = vmul.f32 1.0, %v1538
    %v1540 = vmul.f32 %v1524, %v1537
    %v1541 = vmul.f32 %v1525, %v1539
    %v1542 = vmul.f32 %v1540, %v122
    %v1543 = vmul.f32 %v1541, %v123
    %v1544 = vsel %vm236, %v1542, 0.0
    %1545 = vadd.xlane.f32.xlu0 %v1544
    %v1546 = vpop.xlane.xlu0 %1545
    %v1547 = vsel %vm236, %v1543, 0.0
    %1548 = vadd.xlane.f32.xlu0 %v1547
    %v1549 = vpop.xlane.xlu0 %1548
    %v1550 = vmul.f32 %v1540, %v125
    %v1551 = vmul.f32 %v1541, %v126
    %v1552 = vsel %vm236, %v1550, 0.0
    %1553 = vadd.xlane.f32.xlu0 %v1552
    %v1554 = vpop.xlane.xlu0 %1553
    %v1555 = vsel %vm236, %v1551, 0.0
    %1556 = vadd.xlane.f32.xlu0 %v1555
    %v1557 = vpop.xlane.xlu0 %1556
    %v1558 = vmul.f32 %v1540, %v128
    %v1559 = vmul.f32 %v1541, %v129
    %v1560 = vsel %vm236, %v1558, 0.0
    %1561 = vadd.xlane.f32.xlu0 %v1560
    %v1562 = vpop.xlane.xlu0 %1561
    %v1563 = vsel %vm236, %v1559, 0.0
    %1564 = vadd.xlane.f32.xlu0 %v1563
    %v1565 = vpop.xlane.xlu0 %1564
    %v1566 = vsel %vm498, %v1546, %v1554
    %v1567 = vsel %vm498, %v1549, %v1557
    %v1568 = vsel %vm501, %v1566, %v1562
    %v1569 = vsel %vm501, %v1567, %v1565
    %1572 = vrot.lane.b32.xlu0 %v739, 16
    %v1573 = vpop.permute.xlu0 %1572
    %1574 = vrot.lane.b32.xlu0 %v740, 16
    %v1575 = vpop.permute.xlu0 %1574
    %1580 = vrot.lane.b32.xlu0 %v1008, 32
    %v1581 = vpop.permute.xlu0 %1580
    %1582 = vrot.lane.b32.xlu0 %v1009, 32
    %v1583 = vpop.permute.xlu0 %1582
    %1588 = vrot.lane.b32.xlu0 %v1275, 48
    %v1589 = vpop.permute.xlu0 %1588
    %1590 = vrot.lane.b32.xlu0 %v1276, 48
    %v1591 = vpop.permute.xlu0 %1590
    %1596 = vrot.lane.b32.xlu0 %v1540, 64
    %v1597 = vpop.permute.xlu0 %1596
    %1598 = vrot.lane.b32.xlu0 %v1541, 64
    %v1599 = vpop.permute.xlu0 %1598
    %v1602 = vsel %vm236, %v472, %v1573
    %v1603 = vsel %vm236, %v473, %v1575
    %vm1604 = vcmask 261120
    %v1605 = vsel %vm1604, %v1602, %v1581
    %v1606 = vsel %vm1604, %v1603, %v1583
    %vm1607 = vcmask 392192
    %v1608 = vsel %vm1607, %v1605, %v1589
    %v1609 = vsel %vm1607, %v1606, %v1591
    %vm1610 = vcmask 523264
    %v1611 = vsel %vm1610, %v1608, %v1597
    %v1612 = vsel %vm1610, %v1609, %v1599
    %1613 = vrot.lane.b32.xlu0 %v226, 32
    %v1614 = vpop.permute.xlu0 %1613
    %1615 = vrot.lane.b32.xlu0 %v232, 32
    %v1616 = vpop.permute.xlu0 %1615
    %1619 = vrot.lane.b32.xlu0 %v767, 3
    %v1620 = vpop.permute.xlu0 %1619
    %1621 = vrot.lane.b32.xlu0 %v768, 3
    %v1622 = vpop.permute.xlu0 %1621
    %1627 = vrot.lane.b32.xlu0 %v1036, 6
    %v1628 = vpop.permute.xlu0 %1627
    %1629 = vrot.lane.b32.xlu0 %v1037, 6
    %v1630 = vpop.permute.xlu0 %1629
    %1635 = vrot.lane.b32.xlu0 %v1303, 9
    %v1636 = vpop.permute.xlu0 %1635
    %1637 = vrot.lane.b32.xlu0 %v1304, 9
    %v1638 = vpop.permute.xlu0 %1637
    %1643 = vrot.lane.b32.xlu0 %v1568, 12
    %v1644 = vpop.permute.xlu0 %1643
    %1645 = vrot.lane.b32.xlu0 %v1569, 12
    %v1646 = vpop.permute.xlu0 %1645
    %vm1649 = vcmask 23552
    %v1650 = vsel %vm1649, %v502, %v1620
    %v1651 = vsel %vm1649, %v503, %v1622
    %vm1652 = vcmask 48128
    %v1653 = vsel %vm1652, %v1650, %v1628
    %v1654 = vsel %vm1652, %v1651, %v1630
    %vm1655 = vcmask 72704
    %v1656 = vsel %vm1655, %v1653, %v1636
    %v1657 = vsel %vm1655, %v1654, %v1638
    %vm1658 = vcmask 97280
    %v1659 = vsel %vm1658, %v1656, %v1644
    %v1660 = vsel %vm1658, %v1657, %v1646
    %vm1661 = vcmask 121856
    %v1663 = vsel %vm1661, %v1659, 0
    %v1666 = vsel %vm1661, %v1660, 0
    %vm1668 = vcmask 1046528
    %v1669 = vsel %vm1668, %v235, 0
    %1671 = vmatprep.subr.mxu0 0.0
    %1672 = vmatpush1.msra.mxu0 0.0
    %1673 = vmatprep.subr.mxu0 0.0
    %1674 = vmatpush1.msra.mxu0 0.0
    %1675 = vmatprep.subr.mxu0 0.0
    %1676 = vmatpush1.msra.mxu0 0.0
    %1677 = vmatprep.subr.mxu0 0.0
    %1678 = vmatpush1.msra.mxu0 0.0
    %1679 = vmatprep.subr.mxu0 0.0
    %1680 = vmatpush1.msra.mxu0 0.0
    %1681 = vmatprep.subr.mxu0 0.0
    %1682 = vmatpush1.msra.mxu0 0.0
    %1683 = vmatprep.subr.mxu0 0.0
    %1684 = vmatpush1.msra.mxu0 0.0
    %1685 = vmatprep.subr.mxu0 0.0
    %1686 = vmatpush1.msra.mxu0 0.0
    %1687 = vmatprep.subr.mxu0 0.0
    %1688 = vmatpush1.msra.mxu0 0.0
    %1689 = vmatprep.subr.mxu0 0.0
    %1690 = vmatpush1.msra.mxu0 0.0
    %1691 = vmatprep.subr.mxu0 0.0
    %1692 = vmatpush1.msra.mxu0 0.0
    %1693 = vmatprep.subr.mxu0 0.0
    %1694 = vmatpush1.msra.mxu0 0.0
    %1695 = vmatprep.subr.mxu0 0.0
    %1696 = vmatpush1.msra.mxu0 0.0
    %1697 = vmatprep.subr.mxu0 0.0
    %1698 = vmatpush1.msra.mxu0 0.0
    %1699 = vmatprep.subr.mxu0 0.0
    %1700 = vmatpush1.msra.mxu0 %v1669
    %1701 = vmatprep.subr.mxu0 0.0
    %1702 = vmatpush1.msra.mxu0 %v234
    %1703 = vmatprep.subr.mxu0 0.0
    %1704 = vmatpush2.msra.mxu0 0.0
    %1705 = vmatprep.subr.mxu0 0.0
    %1706 = vmatpush2.msra.mxu0 0.0
    %1707 = vmatprep.subr.mxu0 0.0
    %1708 = vmatpush2.msra.mxu0 0.0
    %1709 = vmatprep.subr.mxu0 0.0
    %1710 = vmatpush2.msra.mxu0 0.0
    %1711 = vmatprep.subr.mxu0 0.0
    %1712 = vmatpush2.msra.mxu0 0.0
    %1713 = vmatprep.subr.mxu0 0.0
    %1714 = vmatpush2.msra.mxu0 0.0
    %1715 = vmatprep.subr.mxu0 0.0
    %1716 = vmatpush2.msra.mxu0 0.0
    %1717 = vmatprep.subr.mxu0 0.0
    %1718 = vmatpush2.msra.mxu0 0.0
    %1719 = vmatprep.subr.mxu0 0.0
    %1720 = vmatpush2.msra.mxu0 0.0
    %1721 = vmatprep.subr.mxu0 0.0
    %1722 = vmatpush2.msra.mxu0 0.0
    %1723 = vmatprep.subr.mxu0 0.0
    %1724 = vmatpush2.msra.mxu0 0.0
    %1725 = vmatprep.subr.mxu0 0.0
    %1726 = vmatpush2.msra.mxu0 0.0
    %1727 = vmatprep.subr.mxu0 0.0
    %1728 = vmatpush2.msra.mxu0 0.0
    %1729 = vmatprep.subr.mxu0 0.0
    %1730 = vmatpush2.msra.mxu0 0.0
    %1731 = vmatprep.subr.mxu0 0.0
    %1732 = vmatpush2.msra.mxu0 0.0
    %1733 = vmatprep.subr.mxu0 0.0
    %1734 = vmatpush2.msra.mxu0 0.0
    %1735 = vmatprep.mubr.f32.mxu0 0.0
    %1736 = vmatmul.mubr.f32.gmra.mxu0 %v1663
    %v1737 = vpop.f32.mrf.mxu0
    %v1738 = vadd.f32 0.0, %v1737
    %v1739 = vpop.f32.mrf.mxu0
    %1740 = vmatprep.mubr.f32.mxu0 0.0
    %1741 = vmatmul.mubr.f32.gmra.mxu0 %v1666
    %v1742 = vpop.f32.mrf.mxu0
    %v1743 = vadd.f32 0.0, %v1742
    %v1744 = vpop.f32.mrf.mxu0
    %1745 = vdwg.mxu0
    %1746 = vrot.lane.b32.xlu0 %v224, 96
    %v1747 = vpop.permute.xlu0 %1746
    %1748 = vrot.lane.b32.xlu0 %v230, 96
    %v1749 = vpop.permute.xlu0 %1748
    %1750 = vrot.lane.b32.xlu0 %v505, 96
    %v1751 = vpop.permute.xlu0 %1750
    %1752 = vrot.lane.b32.xlu0 %v507, 96
    %v1753 = vpop.permute.xlu0 %1752
    %1754 = vrot.lane.b32.xlu0 %v1614, 96
    %v1755 = vpop.permute.xlu0 %1754
    %1756 = vrot.lane.b32.xlu0 %v1616, 96
    %v1757 = vpop.permute.xlu0 %1756
    %1758 = vrot.lane.b32.xlu0 %v1041, 96
    %v1759 = vpop.permute.xlu0 %1758
    %1760 = vrot.lane.b32.xlu0 %v1043, 96
    %v1761 = vpop.permute.xlu0 %1760
    %1762 = vrot.lane.b32.xlu0 %v1306, 96
    %v1763 = vpop.permute.xlu0 %1762
    %1764 = vrot.lane.b32.xlu0 %v1308, 96
    %v1765 = vpop.permute.xlu0 %1764
    %vm1776 = vcmask 654336
    %v1778 = vsel %vm1776, %v1611, 0
    %v1781 = vsel %vm1776, %v1612, 0
    %1783 = vmatprep.subr.mxu0 0.0
    %1784 = vmatpush1.msra.mxu0 0.0
    %1785 = vmatprep.subr.mxu0 0.0
    %1786 = vmatpush1.msra.mxu0 0.0
    %1787 = vmatprep.subr.mxu0 0.0
    %1788 = vmatpush1.msra.mxu0 0.0
    %1789 = vmatprep.subr.mxu0 0.0
    %1790 = vmatpush1.msra.mxu0 0.0
    %1791 = vmatprep.subr.mxu0 0.0
    %1792 = vmatpush1.msra.mxu0 0.0
    %1793 = vmatprep.subr.mxu0 0.0
    %1794 = vmatpush1.msra.mxu0 0.0
    %1795 = vmatprep.subr.mxu0 0.0
    %1796 = vmatpush1.msra.mxu0 %v1765
    %1797 = vmatprep.subr.mxu0 0.0
    %1798 = vmatpush1.msra.mxu0 %v1763
    %1799 = vmatprep.subr.mxu0 0.0
    %1800 = vmatpush1.msra.mxu0 %v1761
    %1801 = vmatprep.subr.mxu0 0.0
    %1802 = vmatpush1.msra.mxu0 %v1759
    %1803 = vmatprep.subr.mxu0 0.0
    %1804 = vmatpush1.msra.mxu0 %v1757
    %1805 = vmatprep.subr.mxu0 0.0
    %1806 = vmatpush1.msra.mxu0 %v1755
    %1807 = vmatprep.subr.mxu0 0.0
    %1808 = vmatpush1.msra.mxu0 %v1753
    %1809 = vmatprep.subr.mxu0 0.0
    %1810 = vmatpush1.msra.mxu0 %v1751
    %1811 = vmatprep.subr.mxu0 0.0
    %1812 = vmatpush1.msra.mxu0 %v1749
    %1813 = vmatprep.subr.mxu0 0.0
    %1814 = vmatpush1.msra.mxu0 %v1747
    %1815 = vmatprep.subr.mxu0 0.0
    %1816 = vmatpush2.msra.mxu0 0.0
    %1817 = vmatprep.subr.mxu0 0.0
    %1818 = vmatpush2.msra.mxu0 0.0
    %1819 = vmatprep.subr.mxu0 0.0
    %1820 = vmatpush2.msra.mxu0 0.0
    %1821 = vmatprep.subr.mxu0 0.0
    %1822 = vmatpush2.msra.mxu0 0.0
    %1823 = vmatprep.subr.mxu0 0.0
    %1824 = vmatpush2.msra.mxu0 0.0
    %1825 = vmatprep.subr.mxu0 0.0
    %1826 = vmatpush2.msra.mxu0 0.0
    %1827 = vmatprep.subr.mxu0 0.0
    %1828 = vmatpush2.msra.mxu0 0.0
    %1829 = vmatprep.subr.mxu0 0.0
    %1830 = vmatpush2.msra.mxu0 0.0
    %1831 = vmatprep.subr.mxu0 0.0
    %1832 = vmatpush2.msra.mxu0 0.0
    %1833 = vmatprep.subr.mxu0 0.0
    %1834 = vmatpush2.msra.mxu0 0.0
    %1835 = vmatprep.subr.mxu0 0.0
    %1836 = vmatpush2.msra.mxu0 0.0
    %1837 = vmatprep.subr.mxu0 0.0
    %1838 = vmatpush2.msra.mxu0 0.0
    %1839 = vmatprep.subr.mxu0 0.0
    %1840 = vmatpush2.msra.mxu0 0.0
    %1841 = vmatprep.subr.mxu0 0.0
    %1842 = vmatpush2.msra.mxu0 0.0
    %1843 = vmatprep.subr.mxu0 0.0
    %1844 = vmatpush2.msra.mxu0 0.0
    %1845 = vmatprep.subr.mxu0 0.0
    %1846 = vmatpush2.msra.mxu0 0.0
    %1847 = vmatprep.mubr.f32.mxu0 0.0
    %1848 = vmatmul.mubr.f32.gmra.mxu0 %v1778
    %v1849 = vpop.f32.mrf.mxu0
    %v1850 = vadd.f32 %v1738, %v1849
    %v1851 = vpop.f32.mrf.mxu0
    %1852 = vmatprep.mubr.f32.mxu0 0.0
    %1853 = vmatmul.mubr.f32.gmra.mxu0 %v1781
    %v1854 = vpop.f32.mrf.mxu0
    %v1855 = vadd.f32 %v1743, %v1854
    %v1856 = vpop.f32.mrf.mxu0
    %1857 = vdwg.mxu0
    %v1858 = vmul.f32 %v1850, 0.2
    %v1859 = vmul.f32 %v1855, 0.2
    %1860 = vrot.lane.b32.xlu0 %v226, 16
    %v1861 = vpop.permute.xlu0 %1860
    %1862 = vrot.lane.b32.xlu0 %v232, 16
    %v1863 = vpop.permute.xlu0 %1862
    %v1866 = vadd.f32 %v1858, %v1861
    %v1867 = vadd.f32 %v1859, %v1863
    %v1868 = vmax.f32 %v1866, 0.0
    %v1869 = vmax.f32 %v1867, 0.0
    %v1870 = vld [vmem:[#allocation7] sm:$0xff]
    %v1871 = vld [vmem:[#allocation7 + $0x8] sm:$0xff]
    %v1872 = vld [vmem:[#allocation9] sm:$0x1]
    %v1874 = vlaneseq
    %v1875 = vshrl.u32 %v1874, 7
    %v1876 = vsub.s32 0, %v1875
    %v1877 = vrot.slane %v1872, %v1876
    %v1880 = vsel %vm236, %v1868, 0
    %v1883 = vsel %vm236, %v1869, 0
    %1885 = vmatprep.subr.mxu0 0.0
    %1886 = vmatpush1.msra.mxu0 0.0
    %1887 = vmatprep.subr.mxu0 0.0
    %1888 = vmatpush1.msra.mxu0 0.0
    %1889 = vmatprep.subr.mxu0 0.0
    %1890 = vmatpush1.msra.mxu0 0.0
    %1891 = vmatprep.subr.mxu0 0.0
    %1892 = vmatpush1.msra.mxu0 0.0
    %1893 = vmatprep.subr.mxu0 0.0
    %1894 = vmatpush1.msra.mxu0 0.0
    %1895 = vmatprep.subr.mxu0 0.0
    %1896 = vmatpush1.msra.mxu0 0.0
    %1897 = vmatprep.subr.mxu0 0.0
    %1898 = vmatpush1.msra.mxu0 0.0
    %1899 = vmatprep.subr.mxu0 0.0
    %1900 = vmatpush1.msra.mxu0 0.0
    %1901 = vmatprep.subr.mxu0 0.0
    %1902 = vmatpush1.msra.mxu0 0.0
    %1903 = vmatprep.subr.mxu0 0.0
    %1904 = vmatpush1.msra.mxu0 0.0
    %1905 = vmatprep.subr.mxu0 0.0
    %1906 = vmatpush1.msra.mxu0 0.0
    %1907 = vmatprep.subr.mxu0 0.0
    %1908 = vmatpush1.msra.mxu0 0.0
    %1909 = vmatprep.subr.mxu0 0.0
    %1910 = vmatpush1.msra.mxu0 0.0
    %1911 = vmatprep.subr.mxu0 0.0
    %1912 = vmatpush1.msra.mxu0 0.0
    %1913 = vmatprep.subr.mxu0 0.0
    %1914 = vmatpush1.msra.mxu0 %v1871
    %1915 = vmatprep.subr.mxu0 0.0
    %1916 = vmatpush1.msra.mxu0 %v1870
    %1917 = vmatprep.subr.mxu0 0.0
    %1918 = vmatpush2.msra.mxu0 0.0
    %1919 = vmatprep.subr.mxu0 0.0
    %1920 = vmatpush2.msra.mxu0 0.0
    %1921 = vmatprep.subr.mxu0 0.0
    %1922 = vmatpush2.msra.mxu0 0.0
    %1923 = vmatprep.subr.mxu0 0.0
    %1924 = vmatpush2.msra.mxu0 0.0
    %1925 = vmatprep.subr.mxu0 0.0
    %1926 = vmatpush2.msra.mxu0 0.0
    %1927 = vmatprep.subr.mxu0 0.0
    %1928 = vmatpush2.msra.mxu0 0.0
    %1929 = vmatprep.subr.mxu0 0.0
    %1930 = vmatpush2.msra.mxu0 0.0
    %1931 = vmatprep.subr.mxu0 0.0
    %1932 = vmatpush2.msra.mxu0 0.0
    %1933 = vmatprep.subr.mxu0 0.0
    %1934 = vmatpush2.msra.mxu0 0.0
    %1935 = vmatprep.subr.mxu0 0.0
    %1936 = vmatpush2.msra.mxu0 0.0
    %1937 = vmatprep.subr.mxu0 0.0
    %1938 = vmatpush2.msra.mxu0 0.0
    %1939 = vmatprep.subr.mxu0 0.0
    %1940 = vmatpush2.msra.mxu0 0.0
    %1941 = vmatprep.subr.mxu0 0.0
    %1942 = vmatpush2.msra.mxu0 0.0
    %1943 = vmatprep.subr.mxu0 0.0
    %1944 = vmatpush2.msra.mxu0 0.0
    %1945 = vmatprep.subr.mxu0 0.0
    %1946 = vmatpush2.msra.mxu0 0.0
    %1947 = vmatprep.subr.mxu0 0.0
    %1948 = vmatpush2.msra.mxu0 0.0
    %1949 = vmatprep.mubr.f32.mxu0 0.0
    %1950 = vmatmul.mubr.f32.gmra.mxu0 %v1880
    %v1951 = vpop.f32.mrf.mxu0
    %v1952 = vadd.f32 %v1877, %v1951
    %v1953 = vpop.f32.mrf.mxu0
    %1954 = vmatprep.mubr.f32.mxu0 0.0
    %1955 = vmatmul.mubr.f32.gmra.mxu0 %v1883
    %v1956 = vpop.f32.mrf.mxu0
    %v1957 = vadd.f32 %v1877, %v1956
    %v1958 = vpop.f32.mrf.mxu0
    %1959 = vdwg.mxu0
    %v1960 = vld [vmem:[%s8] sm:$0xff]
    %v1961 = vld [vmem:[%s8 + $0x8] sm:$0x7f]
    %vm1962 = vcmask 64512
    %v1964 = vsel %vm1962, %v1952, 0
    %v1967 = vsel %vm1962, %v1957, 0
    %v1970 = vsel %vm1962, %v1960, 0
    %1972 = vmatprep.subr.mxu0 0.0
    %1973 = vmatpush1.xpose.msra.mxu0 0.0
    %1974 = vmatprep.subr.mxu0 0.0
    %1975 = vmatpush1.xpose.msra.mxu0 0.0
    %1976 = vmatprep.subr.mxu0 0.0
    %1977 = vmatpush1.xpose.msra.mxu0 0.0
    %1978 = vmatprep.subr.mxu0 0.0
    %1979 = vmatpush1.xpose.msra.mxu0 0.0
    %1980 = vmatprep.subr.mxu0 0.0
    %1981 = vmatpush1.xpose.msra.mxu0 0.0
    %1982 = vmatprep.subr.mxu0 0.0
    %1983 = vmatpush1.xpose.msra.mxu0 0.0
    %1984 = vmatprep.subr.mxu0 0.0
    %1985 = vmatpush1.xpose.msra.mxu0 0.0
    %1986 = vmatprep.subr.mxu0 0.0
    %1987 = vmatpush1.xpose.msra.mxu0 0.0
    %1988 = vmatprep.subr.mxu0 0.0
    %1989 = vmatpush1.xpose.msra.mxu0 0.0
    %1990 = vmatprep.subr.mxu0 0.0
    %1991 = vmatpush1.xpose.msra.mxu0 0.0
    %1992 = vmatprep.subr.mxu0 0.0
    %1993 = vmatpush1.xpose.msra.mxu0 0.0
    %1994 = vmatprep.subr.mxu0 0.0
    %1995 = vmatpush1.xpose.msra.mxu0 0.0
    %1996 = vmatprep.subr.mxu0 0.0
    %1997 = vmatpush1.xpose.msra.mxu0 0.0
    %1998 = vmatprep.subr.mxu0 0.0
    %1999 = vmatpush1.xpose.msra.mxu0 0.0
    %2000 = vmatprep.subr.mxu0 0.0
    %2001 = vmatpush1.xpose.msra.mxu0 0.0
    %2002 = vmatprep.subr.mxu0 0.0
    %2003 = vmatpush1.xpose.msra.mxu0 %v1970
    %2004 = vmatprep.subr.mxu0 0.0
    %2005 = vmatpush2.xpose.msra.mxu0 0.0
    %2006 = vmatprep.subr.mxu0 0.0
    %2007 = vmatpush2.xpose.msra.mxu0 0.0
    %2008 = vmatprep.subr.mxu0 0.0
    %2009 = vmatpush2.xpose.msra.mxu0 0.0
    %2010 = vmatprep.subr.mxu0 0.0
    %2011 = vmatpush2.xpose.msra.mxu0 0.0
    %2012 = vmatprep.subr.mxu0 0.0
    %2013 = vmatpush2.xpose.msra.mxu0 0.0
    %2014 = vmatprep.subr.mxu0 0.0
    %2015 = vmatpush2.xpose.msra.mxu0 0.0
    %2016 = vmatprep.subr.mxu0 0.0
    %2017 = vmatpush2.xpose.msra.mxu0 0.0
    %2018 = vmatprep.subr.mxu0 0.0
    %2019 = vmatpush2.xpose.msra.mxu0 0.0
    %2020 = vmatprep.subr.mxu0 0.0
    %2021 = vmatpush2.xpose.msra.mxu0 0.0
    %2022 = vmatprep.subr.mxu0 0.0
    %2023 = vmatpush2.xpose.msra.mxu0 0.0
    %2024 = vmatprep.subr.mxu0 0.0
    %2025 = vmatpush2.xpose.msra.mxu0 0.0
    %2026 = vmatprep.subr.mxu0 0.0
    %2027 = vmatpush2.xpose.msra.mxu0 0.0
    %2028 = vmatprep.subr.mxu0 0.0
    %2029 = vmatpush2.xpose.msra.mxu0 0.0
    %2030 = vmatprep.subr.mxu0 0.0
    %2031 = vmatpush2.xpose.msra.mxu0 0.0
    %2032 = vmatprep.subr.mxu0 0.0
    %2033 = vmatpush2.xpose.msra.mxu0 0.0
    %2034 = vmatprep.subr.mxu0 0.0
    %2035 = vmatpush2.xpose.msra.mxu0 0.0
    %2036 = vmatprep.mubr.f32.mxu0 0.0
    %2037 = vmatmul.mubr.f32.gmra.mxu0 %v1964
    %v2038 = vpop.f32.mrf.mxu0
    %v2039 = vadd.f32 0.0, %v2038
    %v2040 = vpop.f32.mrf.mxu0
    %2041 = vmatprep.mubr.f32.mxu0 0.0
    %2042 = vmatmul.mubr.f32.gmra.mxu0 %v1967
    %v2043 = vpop.f32.mrf.mxu0
    %v2044 = vadd.f32 0.0, %v2043
    %v2045 = vpop.f32.mrf.mxu0
    %2046 = vdwg.mxu0
    %2048 = vset.pattern.permute.xlu0 0
    %2049 = vperm.xlu0 %2048, %v2039
    %v2050 = vpop.permute.xlu0 %2049
    %2053 = vset.pattern.permute.xlu0 0
    %2054 = vperm.xlu0 %2053, %v2044
    %v2055 = vpop.permute.xlu0 %2054
    %v2057 = vmul.f32 %v122, %v2050
    %v2058 = vmul.f32 %v123, %v2055
    %2059 = vrot.lane.b32.xlu0 %v1952, 120
    %v2060 = vpop.permute.xlu0 %2059
    %2061 = vrot.lane.b32.xlu0 %v1957, 120
    %v2062 = vpop.permute.xlu0 %2061
    %v2063 = vsel %vm1962, %v2060, 0
    %v2065 = vsel %vm1962, %v2062, 0
    %2067 = vmatprep.subr.mxu0 0.0
    %2068 = vmatpush1.xpose.msra.mxu0 0.0
    %2069 = vmatprep.subr.mxu0 0.0
    %2070 = vmatpush1.xpose.msra.mxu0 0.0
    %2071 = vmatprep.subr.mxu0 0.0
    %2072 = vmatpush1.xpose.msra.mxu0 0.0
    %2073 = vmatprep.subr.mxu0 0.0
    %2074 = vmatpush1.xpose.msra.mxu0 0.0
    %2075 = vmatprep.subr.mxu0 0.0
    %2076 = vmatpush1.xpose.msra.mxu0 0.0
    %2077 = vmatprep.subr.mxu0 0.0
    %2078 = vmatpush1.xpose.msra.mxu0 0.0
    %2079 = vmatprep.subr.mxu0 0.0
    %2080 = vmatpush1.xpose.msra.mxu0 0.0
    %2081 = vmatprep.subr.mxu0 0.0
    %2082 = vmatpush1.xpose.msra.mxu0 0.0
    %2083 = vmatprep.subr.mxu0 0.0
    %2084 = vmatpush1.xpose.msra.mxu0 0.0
    %2085 = vmatprep.subr.mxu0 0.0
    %2086 = vmatpush1.xpose.msra.mxu0 0.0
    %2087 = vmatprep.subr.mxu0 0.0
    %2088 = vmatpush1.xpose.msra.mxu0 0.0
    %2089 = vmatprep.subr.mxu0 0.0
    %2090 = vmatpush1.xpose.msra.mxu0 0.0
    %2091 = vmatprep.subr.mxu0 0.0
    %2092 = vmatpush1.xpose.msra.mxu0 0.0
    %2093 = vmatprep.subr.mxu0 0.0
    %2094 = vmatpush1.xpose.msra.mxu0 0.0
    %2095 = vmatprep.subr.mxu0 0.0
    %2096 = vmatpush1.xpose.msra.mxu0 %v2065
    %2097 = vmatprep.subr.mxu0 0.0
    %2098 = vmatpush1.xpose.msra.mxu0 %v2063
    %2099 = vmatprep.subr.mxu0 0.0
    %2100 = vmatpush2.xpose.msra.mxu0 0.0
    %2101 = vmatprep.subr.mxu0 0.0
    %2102 = vmatpush2.xpose.msra.mxu0 0.0
    %2103 = vmatprep.subr.mxu0 0.0
    %2104 = vmatpush2.xpose.msra.mxu0 0.0
    %2105 = vmatprep.subr.mxu0 0.0
    %2106 = vmatpush2.xpose.msra.mxu0 0.0
    %2107 = vmatprep.subr.mxu0 0.0
    %2108 = vmatpush2.xpose.msra.mxu0 0.0
    %2109 = vmatprep.subr.mxu0 0.0
    %2110 = vmatpush2.xpose.msra.mxu0 0.0
    %2111 = vmatprep.subr.mxu0 0.0
    %2112 = vmatpush2.xpose.msra.mxu0 0.0
    %2113 = vmatprep.subr.mxu0 0.0
    %2114 = vmatpush2.xpose.msra.mxu0 0.0
    %2115 = vmatprep.subr.mxu0 0.0
    %2116 = vmatpush2.xpose.msra.mxu0 0.0
    %2117 = vmatprep.subr.mxu0 0.0
    %2118 = vmatpush2.xpose.msra.mxu0 0.0
    %2119 = vmatprep.subr.mxu0 0.0
    %2120 = vmatpush2.xpose.msra.mxu0 0.0
    %2121 = vmatprep.subr.mxu0 0.0
    %2122 = vmatpush2.xpose.msra.mxu0 0.0
    %2123 = vmatprep.subr.mxu0 0.0
    %2124 = vmatpush2.xpose.msra.mxu0 0.0
    %2125 = vmatprep.subr.mxu0 0.0
    %2126 = vmatpush2.xpose.msra.mxu0 0.0
    %2127 = vmatprep.subr.mxu0 0.0
    %2128 = vmatpush2.xpose.msra.mxu0 0.0
    %2129 = vmatprep.subr.mxu0 0.0
    %2130 = vmatpush2.xpose.msra.mxu0 0.0
    %2131 = vmatprep.mubr.f32.mxu0 0.0
    %2132 = vmatmul.mubr.f32.gmra.mxu0 %v1964
    %v2133 = vpop.f32.mrf.mxu0
    %v2134 = vadd.f32 %v2057, %v2133
    %v2135 = vpop.f32.mrf.mxu0
    %2136 = vmatprep.mubr.f32.mxu0 0.0
    %2137 = vmatmul.mubr.f32.gmra.mxu0 %v1967
    %v2138 = vpop.f32.mrf.mxu0
    %v2139 = vadd.f32 %v2058, %v2138
    %v2140 = vpop.f32.mrf.mxu0
    %2141 = vdwg.mxu0
    %2142 = vset.pattern.permute.xlu0 1
    %2143 = vperm.xlu0 %2142, %v2039
    %v2144 = vpop.permute.xlu0 %2143
    %2146 = vset.pattern.permute.xlu0 1
    %2147 = vperm.xlu0 %2146, %v2044
    %v2148 = vpop.permute.xlu0 %2147
    %v2150 = vmul.f32 %v125, %v2144
    %v2151 = vmul.f32 %v126, %v2148
    %v2152 = vadd.f32 %v2134, %v2150
    %v2153 = vadd.f32 %v2139, %v2151
    %2154 = vset.pattern.permute.xlu0 2
    %2155 = vperm.xlu0 %2154, %v2039
    %v2156 = vpop.permute.xlu0 %2155
    %2158 = vset.pattern.permute.xlu0 2
    %2159 = vperm.xlu0 %2158, %v2044
    %v2160 = vpop.permute.xlu0 %2159
    %v2162 = vmul.f32 %v128, %v2156
    %v2163 = vmul.f32 %v129, %v2160
    %v2164 = vadd.f32 %v2152, %v2162
    %v2165 = vadd.f32 %v2153, %v2163
    %v2166 = vsel %vm440, %v2164, -1e+30
    %v2167 = vsel %vm441, %v2165, -1e+30
    %v2168 = vsel %vm236, %v2166, -inf
    %2169 = vmax.xlane.f32.xlu0 %v2168
    %v2170 = vpop.xlane.xlu0 %2169
    %v2171 = vsel %vm236, %v2167, -inf
    %2172 = vmax.xlane.f32.xlu0 %v2171
    %v2173 = vpop.xlane.xlu0 %2172
    %v2174 = vsub.f32 %v2166, %v2170
    %v2175 = vsub.f32 %v2167, %v2173
    %v2176 = vmul.f32 %v2174, 1.442695
    %v2177 = vpow.pop %v2176
    %v2178 = vmul.f32 %v2175, 1.442695
    %v2179 = vpow.pop %v2178
    %v2180 = vmul.f32 %v2177, %v120
    %v2181 = vmul.f32 %v2179, %v121
    %v2182 = vsel %vm236, %v2180, 0.0
    %2183 = vadd.xlane.f32.xlu0 %v2182
    %v2184 = vpop.xlane.xlu0 %2183
    %v2185 = vsel %vm236, %v2181, 0.0
    %2186 = vadd.xlane.f32.xlu0 %v2185
    %v2187 = vpop.xlane.xlu0 %2186
    %vm2188 = vcmp.eq.f32.partialorder %v2184, 0.0
    %vm2189 = vcmp.eq.f32.partialorder %v2187, 0.0
    %v2190 = vsel %vm2188, 1.0, %v2184
    %v2191 = vsel %vm2189, 1.0, %v2187
    %v2192 = vrcp.pop %v2190
    %v2193 = vmul.f32 1.0, %v2192
    %v2194 = vrcp.pop %v2191
    %v2195 = vmul.f32 1.0, %v2194
    %v2196 = vmul.f32 %v2180, %v2193
    %v2197 = vmul.f32 %v2181, %v2195
    %v2198 = vmul.f32 %v2196, %v122
    %v2199 = vmul.f32 %v2197, %v123
    %v2200 = vsel %vm236, %v2198, 0.0
    %2201 = vadd.xlane.f32.xlu0 %v2200
    %v2202 = vpop.xlane.xlu0 %2201
    %v2203 = vsel %vm236, %v2199, 0.0
    %2204 = vadd.xlane.f32.xlu0 %v2203
    %v2205 = vpop.xlane.xlu0 %2204
    %v2206 = vmul.f32 %v2196, %v125
    %v2207 = vmul.f32 %v2197, %v126
    %v2208 = vsel %vm236, %v2206, 0.0
    %2209 = vadd.xlane.f32.xlu0 %v2208
    %v2210 = vpop.xlane.xlu0 %2209
    %v2211 = vsel %vm236, %v2207, 0.0
    %2212 = vadd.xlane.f32.xlu0 %v2211
    %v2213 = vpop.xlane.xlu0 %2212
    %v2214 = vmul.f32 %v2196, %v128
    %v2215 = vmul.f32 %v2197, %v129
    %v2216 = vsel %vm236, %v2214, 0.0
    %2217 = vadd.xlane.f32.xlu0 %v2216
    %v2218 = vpop.xlane.xlu0 %2217
    %v2219 = vsel %vm236, %v2215, 0.0
    %2220 = vadd.xlane.f32.xlu0 %v2219
    %v2221 = vpop.xlane.xlu0 %2220
    %v2222 = vsel %vm498, %v2202, %v2210
    %v2223 = vsel %vm498, %v2205, %v2213
    %v2224 = vsel %vm501, %v2222, %v2218
    %v2225 = vsel %vm501, %v2223, %v2221
    %2226 = vrot.lane.b32.xlu0 %v1952, 104
    %v2227 = vpop.permute.xlu0 %2226
    %2228 = vrot.lane.b32.xlu0 %v1957, 104
    %v2229 = vpop.permute.xlu0 %2228
    %v2230 = vrot.slane %v1960, 3
    %v2231 = vsel %vm1962, %v2227, 0
    %v2233 = vsel %vm1962, %v2229, 0
    %v2235 = vsel %vm1962, %v2230, 0
    %2237 = vmatprep.subr.mxu0 0.0
    %2238 = vmatpush1.xpose.msra.mxu0 0.0
    %2239 = vmatprep.subr.mxu0 0.0
    %2240 = vmatpush1.xpose.msra.mxu0 0.0
    %2241 = vmatprep.subr.mxu0 0.0
    %2242 = vmatpush1.xpose.msra.mxu0 0.0
    %2243 = vmatprep.subr.mxu0 0.0
    %2244 = vmatpush1.xpose.msra.mxu0 0.0
    %2245 = vmatprep.subr.mxu0 0.0
    %2246 = vmatpush1.xpose.msra.mxu0 0.0
    %2247 = vmatprep.subr.mxu0 0.0
    %2248 = vmatpush1.xpose.msra.mxu0 0.0
    %2249 = vmatprep.subr.mxu0 0.0
    %2250 = vmatpush1.xpose.msra.mxu0 0.0
    %2251 = vmatprep.subr.mxu0 0.0
    %2252 = vmatpush1.xpose.msra.mxu0 0.0
    %2253 = vmatprep.subr.mxu0 0.0
    %2254 = vmatpush1.xpose.msra.mxu0 0.0
    %2255 = vmatprep.subr.mxu0 0.0
    %2256 = vmatpush1.xpose.msra.mxu0 0.0
    %2257 = vmatprep.subr.mxu0 0.0
    %2258 = vmatpush1.xpose.msra.mxu0 0.0
    %2259 = vmatprep.subr.mxu0 0.0
    %2260 = vmatpush1.xpose.msra.mxu0 0.0
    %2261 = vmatprep.subr.mxu0 0.0
    %2262 = vmatpush1.xpose.msra.mxu0 0.0
    %2263 = vmatprep.subr.mxu0 0.0
    %2264 = vmatpush1.xpose.msra.mxu0 0.0
    %2265 = vmatprep.subr.mxu0 0.0
    %2266 = vmatpush1.xpose.msra.mxu0 0.0
    %2267 = vmatprep.subr.mxu0 0.0
    %2268 = vmatpush1.xpose.msra.mxu0 %v2235
    %2269 = vmatprep.subr.mxu0 0.0
    %2270 = vmatpush2.xpose.msra.mxu0 0.0
    %2271 = vmatprep.subr.mxu0 0.0
    %2272 = vmatpush2.xpose.msra.mxu0 0.0
    %2273 = vmatprep.subr.mxu0 0.0
    %2274 = vmatpush2.xpose.msra.mxu0 0.0
    %2275 = vmatprep.subr.mxu0 0.0
    %2276 = vmatpush2.xpose.msra.mxu0 0.0
    %2277 = vmatprep.subr.mxu0 0.0
    %2278 = vmatpush2.xpose.msra.mxu0 0.0
    %2279 = vmatprep.subr.mxu0 0.0
    %2280 = vmatpush2.xpose.msra.mxu0 0.0
    %2281 = vmatprep.subr.mxu0 0.0
    %2282 = vmatpush2.xpose.msra.mxu0 0.0
    %2283 = vmatprep.subr.mxu0 0.0
    %2284 = vmatpush2.xpose.msra.mxu0 0.0
    %2285 = vmatprep.subr.mxu0 0.0
    %2286 = vmatpush2.xpose.msra.mxu0 0.0
    %2287 = vmatprep.subr.mxu0 0.0
    %2288 = vmatpush2.xpose.msra.mxu0 0.0
    %2289 = vmatprep.subr.mxu0 0.0
    %2290 = vmatpush2.xpose.msra.mxu0 0.0
    %2291 = vmatprep.subr.mxu0 0.0
    %2292 = vmatpush2.xpose.msra.mxu0 0.0
    %2293 = vmatprep.subr.mxu0 0.0
    %2294 = vmatpush2.xpose.msra.mxu0 0.0
    %2295 = vmatprep.subr.mxu0 0.0
    %2296 = vmatpush2.xpose.msra.mxu0 0.0
    %2297 = vmatprep.subr.mxu0 0.0
    %2298 = vmatpush2.xpose.msra.mxu0 0.0
    %2299 = vmatprep.subr.mxu0 0.0
    %2300 = vmatpush2.xpose.msra.mxu0 0.0
    %2301 = vmatprep.mubr.f32.mxu0 0.0
    %2302 = vmatmul.mubr.f32.gmra.mxu0 %v2231
    %v2303 = vpop.f32.mrf.mxu0
    %v2304 = vadd.f32 0.0, %v2303
    %v2305 = vpop.f32.mrf.mxu0
    %2306 = vmatprep.mubr.f32.mxu0 0.0
    %2307 = vmatmul.mubr.f32.gmra.mxu0 %v2233
    %v2308 = vpop.f32.mrf.mxu0
    %v2309 = vadd.f32 0.0, %v2308
    %v2310 = vpop.f32.mrf.mxu0
    %2311 = vdwg.mxu0
    %2313 = vset.pattern.permute.xlu0 0
    %2314 = vperm.xlu0 %2313, %v2304
    %v2315 = vpop.permute.xlu0 %2314
    %2318 = vset.pattern.permute.xlu0 0
    %2319 = vperm.xlu0 %2318, %v2309
    %v2320 = vpop.permute.xlu0 %2319
    %v2322 = vmul.f32 %v122, %v2315
    %v2323 = vmul.f32 %v123, %v2320
    %2324 = vrot.lane.b32.xlu0 %v1952, 96
    %v2325 = vpop.permute.xlu0 %2324
    %2326 = vrot.lane.b32.xlu0 %v1957, 96
    %v2327 = vpop.permute.xlu0 %2326
    %v2328 = vsel %vm1962, %v2325, 0
    %v2330 = vsel %vm1962, %v2327, 0
    %2332 = vmatprep.subr.mxu0 0.0
    %2333 = vmatpush1.xpose.msra.mxu0 0.0
    %2334 = vmatprep.subr.mxu0 0.0
    %2335 = vmatpush1.xpose.msra.mxu0 0.0
    %2336 = vmatprep.subr.mxu0 0.0
    %2337 = vmatpush1.xpose.msra.mxu0 0.0
    %2338 = vmatprep.subr.mxu0 0.0
    %2339 = vmatpush1.xpose.msra.mxu0 0.0
    %2340 = vmatprep.subr.mxu0 0.0
    %2341 = vmatpush1.xpose.msra.mxu0 0.0
    %2342 = vmatprep.subr.mxu0 0.0
    %2343 = vmatpush1.xpose.msra.mxu0 0.0
    %2344 = vmatprep.subr.mxu0 0.0
    %2345 = vmatpush1.xpose.msra.mxu0 0.0
    %2346 = vmatprep.subr.mxu0 0.0
    %2347 = vmatpush1.xpose.msra.mxu0 0.0
    %2348 = vmatprep.subr.mxu0 0.0
    %2349 = vmatpush1.xpose.msra.mxu0 0.0
    %2350 = vmatprep.subr.mxu0 0.0
    %2351 = vmatpush1.xpose.msra.mxu0 0.0
    %2352 = vmatprep.subr.mxu0 0.0
    %2353 = vmatpush1.xpose.msra.mxu0 0.0
    %2354 = vmatprep.subr.mxu0 0.0
    %2355 = vmatpush1.xpose.msra.mxu0 0.0
    %2356 = vmatprep.subr.mxu0 0.0
    %2357 = vmatpush1.xpose.msra.mxu0 0.0
    %2358 = vmatprep.subr.mxu0 0.0
    %2359 = vmatpush1.xpose.msra.mxu0 0.0
    %2360 = vmatprep.subr.mxu0 0.0
    %2361 = vmatpush1.xpose.msra.mxu0 %v2330
    %2362 = vmatprep.subr.mxu0 0.0
    %2363 = vmatpush1.xpose.msra.mxu0 %v2328
    %2364 = vmatprep.subr.mxu0 0.0
    %2365 = vmatpush2.xpose.msra.mxu0 0.0
    %2366 = vmatprep.subr.mxu0 0.0
    %2367 = vmatpush2.xpose.msra.mxu0 0.0
    %2368 = vmatprep.subr.mxu0 0.0
    %2369 = vmatpush2.xpose.msra.mxu0 0.0
    %2370 = vmatprep.subr.mxu0 0.0
    %2371 = vmatpush2.xpose.msra.mxu0 0.0
    %2372 = vmatprep.subr.mxu0 0.0
    %2373 = vmatpush2.xpose.msra.mxu0 0.0
    %2374 = vmatprep.subr.mxu0 0.0
    %2375 = vmatpush2.xpose.msra.mxu0 0.0
    %2376 = vmatprep.subr.mxu0 0.0
    %2377 = vmatpush2.xpose.msra.mxu0 0.0
    %2378 = vmatprep.subr.mxu0 0.0
    %2379 = vmatpush2.xpose.msra.mxu0 0.0
    %2380 = vmatprep.subr.mxu0 0.0
    %2381 = vmatpush2.xpose.msra.mxu0 0.0
    %2382 = vmatprep.subr.mxu0 0.0
    %2383 = vmatpush2.xpose.msra.mxu0 0.0
    %2384 = vmatprep.subr.mxu0 0.0
    %2385 = vmatpush2.xpose.msra.mxu0 0.0
    %2386 = vmatprep.subr.mxu0 0.0
    %2387 = vmatpush2.xpose.msra.mxu0 0.0
    %2388 = vmatprep.subr.mxu0 0.0
    %2389 = vmatpush2.xpose.msra.mxu0 0.0
    %2390 = vmatprep.subr.mxu0 0.0
    %2391 = vmatpush2.xpose.msra.mxu0 0.0
    %2392 = vmatprep.subr.mxu0 0.0
    %2393 = vmatpush2.xpose.msra.mxu0 0.0
    %2394 = vmatprep.subr.mxu0 0.0
    %2395 = vmatpush2.xpose.msra.mxu0 0.0
    %2396 = vmatprep.mubr.f32.mxu0 0.0
    %2397 = vmatmul.mubr.f32.gmra.mxu0 %v2231
    %v2398 = vpop.f32.mrf.mxu0
    %v2399 = vadd.f32 %v2322, %v2398
    %v2400 = vpop.f32.mrf.mxu0
    %2401 = vmatprep.mubr.f32.mxu0 0.0
    %2402 = vmatmul.mubr.f32.gmra.mxu0 %v2233
    %v2403 = vpop.f32.mrf.mxu0
    %v2404 = vadd.f32 %v2323, %v2403
    %v2405 = vpop.f32.mrf.mxu0
    %2406 = vdwg.mxu0
    %2407 = vset.pattern.permute.xlu0 1
    %2408 = vperm.xlu0 %2407, %v2304
    %v2409 = vpop.permute.xlu0 %2408
    %2411 = vset.pattern.permute.xlu0 1
    %2412 = vperm.xlu0 %2411, %v2309
    %v2413 = vpop.permute.xlu0 %2412
    %v2415 = vmul.f32 %v125, %v2409
    %v2416 = vmul.f32 %v126, %v2413
    %v2417 = vadd.f32 %v2399, %v2415
    %v2418 = vadd.f32 %v2404, %v2416
    %2419 = vset.pattern.permute.xlu0 2
    %2420 = vperm.xlu0 %2419, %v2304
    %v2421 = vpop.permute.xlu0 %2420
    %2423 = vset.pattern.permute.xlu0 2
    %2424 = vperm.xlu0 %2423, %v2309
    %v2425 = vpop.permute.xlu0 %2424
    %v2427 = vmul.f32 %v128, %v2421
    %v2428 = vmul.f32 %v129, %v2425
    %v2429 = vadd.f32 %v2417, %v2427
    %v2430 = vadd.f32 %v2418, %v2428
    %v2431 = vsel %vm440, %v2429, -1e+30
    %v2432 = vsel %vm441, %v2430, -1e+30
    %v2433 = vsel %vm236, %v2431, -inf
    %2434 = vmax.xlane.f32.xlu0 %v2433
    %v2435 = vpop.xlane.xlu0 %2434
    %v2436 = vsel %vm236, %v2432, -inf
    %2437 = vmax.xlane.f32.xlu0 %v2436
    %v2438 = vpop.xlane.xlu0 %2437
    %v2439 = vsub.f32 %v2431, %v2435
    %v2440 = vsub.f32 %v2432, %v2438
    %v2441 = vmul.f32 %v2439, 1.442695
    %v2442 = vpow.pop %v2441
    %v2443 = vmul.f32 %v2440, 1.442695
    %v2444 = vpow.pop %v2443
    %v2445 = vmul.f32 %v2442, %v120
    %v2446 = vmul.f32 %v2444, %v121
    %v2447 = vsel %vm236, %v2445, 0.0
    %2448 = vadd.xlane.f32.xlu0 %v2447
    %v2449 = vpop.xlane.xlu0 %2448
    %v2450 = vsel %vm236, %v2446, 0.0
    %2451 = vadd.xlane.f32.xlu0 %v2450
    %v2452 = vpop.xlane.xlu0 %2451
    %vm2453 = vcmp.eq.f32.partialorder %v2449, 0.0
    %vm2454 = vcmp.eq.f32.partialorder %v2452, 0.0
    %v2455 = vsel %vm2453, 1.0, %v2449
    %v2456 = vsel %vm2454, 1.0, %v2452
    %v2457 = vrcp.pop %v2455
    %v2458 = vmul.f32 1.0, %v2457
    %v2459 = vrcp.pop %v2456
    %v2460 = vmul.f32 1.0, %v2459
    %v2461 = vmul.f32 %v2445, %v2458
    %v2462 = vmul.f32 %v2446, %v2460
    %v2463 = vmul.f32 %v2461, %v122
    %v2464 = vmul.f32 %v2462, %v123
    %v2465 = vsel %vm236, %v2463, 0.0
    %2466 = vadd.xlane.f32.xlu0 %v2465
    %v2467 = vpop.xlane.xlu0 %2466
    %v2468 = vsel %vm236, %v2464, 0.0
    %2469 = vadd.xlane.f32.xlu0 %v2468
    %v2470 = vpop.xlane.xlu0 %2469
    %v2471 = vmul.f32 %v2461, %v125
    %v2472 = vmul.f32 %v2462, %v126
    %v2473 = vsel %vm236, %v2471, 0.0
    %2474 = vadd.xlane.f32.xlu0 %v2473
    %v2475 = vpop.xlane.xlu0 %2474
    %v2476 = vsel %vm236, %v2472, 0.0
    %2477 = vadd.xlane.f32.xlu0 %v2476
    %v2478 = vpop.xlane.xlu0 %2477
    %v2479 = vmul.f32 %v2461, %v128
    %v2480 = vmul.f32 %v2462, %v129
    %v2481 = vsel %vm236, %v2479, 0.0
    %2482 = vadd.xlane.f32.xlu0 %v2481
    %v2483 = vpop.xlane.xlu0 %2482
    %v2484 = vsel %vm236, %v2480, 0.0
    %2485 = vadd.xlane.f32.xlu0 %v2484
    %v2486 = vpop.xlane.xlu0 %2485
    %v2487 = vsel %vm498, %v2467, %v2475
    %v2488 = vsel %vm498, %v2470, %v2478
    %v2489 = vsel %vm501, %v2487, %v2483
    %v2490 = vsel %vm501, %v2488, %v2486
    %2491 = vrot.lane.b32.xlu0 %v1952, 80
    %v2492 = vpop.permute.xlu0 %2491
    %2493 = vrot.lane.b32.xlu0 %v1957, 80
    %v2494 = vpop.permute.xlu0 %2493
    %v2496 = vrot.slane %v1960, 6
    %v2497 = vrot.slane %v1961, 6
    %v2498 = vsel %vm774, %v2496, %v2497
    %v2499 = vsel %vm1962, %v2492, 0
    %v2501 = vsel %vm1962, %v2494, 0
    %v2503 = vsel %vm1962, %v2498, 0
    %2505 = vmatprep.subr.mxu0 0.0
    %2506 = vmatpush1.xpose.msra.mxu0 0.0
    %2507 = vmatprep.subr.mxu0 0.0
    %2508 = vmatpush1.xpose.msra.mxu0 0.0
    %2509 = vmatprep.subr.mxu0 0.0
    %2510 = vmatpush1.xpose.msra.mxu0 0.0
    %2511 = vmatprep.subr.mxu0 0.0
    %2512 = vmatpush1.xpose.msra.mxu0 0.0
    %2513 = vmatprep.subr.mxu0 0.0
    %2514 = vmatpush1.xpose.msra.mxu0 0.0
    %2515 = vmatprep.subr.mxu0 0.0
    %2516 = vmatpush1.xpose.msra.mxu0 0.0
    %2517 = vmatprep.subr.mxu0 0.0
    %2518 = vmatpush1.xpose.msra.mxu0 0.0
    %2519 = vmatprep.subr.mxu0 0.0
    %2520 = vmatpush1.xpose.msra.mxu0 0.0
    %2521 = vmatprep.subr.mxu0 0.0
    %2522 = vmatpush1.xpose.msra.mxu0 0.0
    %2523 = vmatprep.subr.mxu0 0.0
    %2524 = vmatpush1.xpose.msra.mxu0 0.0
    %2525 = vmatprep.subr.mxu0 0.0
    %2526 = vmatpush1.xpose.msra.mxu0 0.0
    %2527 = vmatprep.subr.mxu0 0.0
    %2528 = vmatpush1.xpose.msra.mxu0 0.0
    %2529 = vmatprep.subr.mxu0 0.0
    %2530 = vmatpush1.xpose.msra.mxu0 0.0
    %2531 = vmatprep.subr.mxu0 0.0
    %2532 = vmatpush1.xpose.msra.mxu0 0.0
    %2533 = vmatprep.subr.mxu0 0.0
    %2534 = vmatpush1.xpose.msra.mxu0 0.0
    %2535 = vmatprep.subr.mxu0 0.0
    %2536 = vmatpush1.xpose.msra.mxu0 %v2503
    %2537 = vmatprep.subr.mxu0 0.0
    %2538 = vmatpush2.xpose.msra.mxu0 0.0
    %2539 = vmatprep.subr.mxu0 0.0
    %2540 = vmatpush2.xpose.msra.mxu0 0.0
    %2541 = vmatprep.subr.mxu0 0.0
    %2542 = vmatpush2.xpose.msra.mxu0 0.0
    %2543 = vmatprep.subr.mxu0 0.0
    %2544 = vmatpush2.xpose.msra.mxu0 0.0
    %2545 = vmatprep.subr.mxu0 0.0
    %2546 = vmatpush2.xpose.msra.mxu0 0.0
    %2547 = vmatprep.subr.mxu0 0.0
    %2548 = vmatpush2.xpose.msra.mxu0 0.0
    %2549 = vmatprep.subr.mxu0 0.0
    %2550 = vmatpush2.xpose.msra.mxu0 0.0
    %2551 = vmatprep.subr.mxu0 0.0
    %2552 = vmatpush2.xpose.msra.mxu0 0.0
    %2553 = vmatprep.subr.mxu0 0.0
    %2554 = vmatpush2.xpose.msra.mxu0 0.0
    %2555 = vmatprep.subr.mxu0 0.0
    %2556 = vmatpush2.xpose.msra.mxu0 0.0
    %2557 = vmatprep.subr.mxu0 0.0
    %2558 = vmatpush2.xpose.msra.mxu0 0.0
    %2559 = vmatprep.subr.mxu0 0.0
    %2560 = vmatpush2.xpose.msra.mxu0 0.0
    %2561 = vmatprep.subr.mxu0 0.0
    %2562 = vmatpush2.xpose.msra.mxu0 0.0
    %2563 = vmatprep.subr.mxu0 0.0
    %2564 = vmatpush2.xpose.msra.mxu0 0.0
    %2565 = vmatprep.subr.mxu0 0.0
    %2566 = vmatpush2.xpose.msra.mxu0 0.0
    %2567 = vmatprep.subr.mxu0 0.0
    %2568 = vmatpush2.xpose.msra.mxu0 0.0
    %2569 = vmatprep.mubr.f32.mxu0 0.0
    %2570 = vmatmul.mubr.f32.gmra.mxu0 %v2499
    %v2571 = vpop.f32.mrf.mxu0
    %v2572 = vadd.f32 0.0, %v2571
    %v2573 = vpop.f32.mrf.mxu0
    %2574 = vmatprep.mubr.f32.mxu0 0.0
    %2575 = vmatmul.mubr.f32.gmra.mxu0 %v2501
    %v2576 = vpop.f32.mrf.mxu0
    %v2577 = vadd.f32 0.0, %v2576
    %v2578 = vpop.f32.mrf.mxu0
    %2579 = vdwg.mxu0
    %2581 = vset.pattern.permute.xlu0 0
    %2582 = vperm.xlu0 %2581, %v2572
    %v2583 = vpop.permute.xlu0 %2582
    %2586 = vset.pattern.permute.xlu0 0
    %2587 = vperm.xlu0 %2586, %v2577
    %v2588 = vpop.permute.xlu0 %2587
    %v2590 = vmul.f32 %v122, %v2583
    %v2591 = vmul.f32 %v123, %v2588
    %2592 = vrot.lane.b32.xlu0 %v1952, 72
    %v2593 = vpop.permute.xlu0 %2592
    %2594 = vrot.lane.b32.xlu0 %v1957, 72
    %v2595 = vpop.permute.xlu0 %2594
    %v2596 = vsel %vm1962, %v2593, 0
    %v2598 = vsel %vm1962, %v2595, 0
    %2600 = vmatprep.subr.mxu0 0.0
    %2601 = vmatpush1.xpose.msra.mxu0 0.0
    %2602 = vmatprep.subr.mxu0 0.0
    %2603 = vmatpush1.xpose.msra.mxu0 0.0
    %2604 = vmatprep.subr.mxu0 0.0
    %2605 = vmatpush1.xpose.msra.mxu0 0.0
    %2606 = vmatprep.subr.mxu0 0.0
    %2607 = vmatpush1.xpose.msra.mxu0 0.0
    %2608 = vmatprep.subr.mxu0 0.0
    %2609 = vmatpush1.xpose.msra.mxu0 0.0
    %2610 = vmatprep.subr.mxu0 0.0
    %2611 = vmatpush1.xpose.msra.mxu0 0.0
    %2612 = vmatprep.subr.mxu0 0.0
    %2613 = vmatpush1.xpose.msra.mxu0 0.0
    %2614 = vmatprep.subr.mxu0 0.0
    %2615 = vmatpush1.xpose.msra.mxu0 0.0
    %2616 = vmatprep.subr.mxu0 0.0
    %2617 = vmatpush1.xpose.msra.mxu0 0.0
    %2618 = vmatprep.subr.mxu0 0.0
    %2619 = vmatpush1.xpose.msra.mxu0 0.0
    %2620 = vmatprep.subr.mxu0 0.0
    %2621 = vmatpush1.xpose.msra.mxu0 0.0
    %2622 = vmatprep.subr.mxu0 0.0
    %2623 = vmatpush1.xpose.msra.mxu0 0.0
    %2624 = vmatprep.subr.mxu0 0.0
    %2625 = vmatpush1.xpose.msra.mxu0 0.0
    %2626 = vmatprep.subr.mxu0 0.0
    %2627 = vmatpush1.xpose.msra.mxu0 0.0
    %2628 = vmatprep.subr.mxu0 0.0
    %2629 = vmatpush1.xpose.msra.mxu0 %v2598
    %2630 = vmatprep.subr.mxu0 0.0
    %2631 = vmatpush1.xpose.msra.mxu0 %v2596
    %2632 = vmatprep.subr.mxu0 0.0
    %2633 = vmatpush2.xpose.msra.mxu0 0.0
    %2634 = vmatprep.subr.mxu0 0.0
    %2635 = vmatpush2.xpose.msra.mxu0 0.0
    %2636 = vmatprep.subr.mxu0 0.0
    %2637 = vmatpush2.xpose.msra.mxu0 0.0
    %2638 = vmatprep.subr.mxu0 0.0
    %2639 = vmatpush2.xpose.msra.mxu0 0.0
    %2640 = vmatprep.subr.mxu0 0.0
    %2641 = vmatpush2.xpose.msra.mxu0 0.0
    %2642 = vmatprep.subr.mxu0 0.0
    %2643 = vmatpush2.xpose.msra.mxu0 0.0
    %2644 = vmatprep.subr.mxu0 0.0
    %2645 = vmatpush2.xpose.msra.mxu0 0.0
    %2646 = vmatprep.subr.mxu0 0.0
    %2647 = vmatpush2.xpose.msra.mxu0 0.0
    %2648 = vmatprep.subr.mxu0 0.0
    %2649 = vmatpush2.xpose.msra.mxu0 0.0
    %2650 = vmatprep.subr.mxu0 0.0
    %2651 = vmatpush2.xpose.msra.mxu0 0.0
    %2652 = vmatprep.subr.mxu0 0.0
    %2653 = vmatpush2.xpose.msra.mxu0 0.0
    %2654 = vmatprep.subr.mxu0 0.0
    %2655 = vmatpush2.xpose.msra.mxu0 0.0
    %2656 = vmatprep.subr.mxu0 0.0
    %2657 = vmatpush2.xpose.msra.mxu0 0.0
    %2658 = vmatprep.subr.mxu0 0.0
    %2659 = vmatpush2.xpose.msra.mxu0 0.0
    %2660 = vmatprep.subr.mxu0 0.0
    %2661 = vmatpush2.xpose.msra.mxu0 0.0
    %2662 = vmatprep.subr.mxu0 0.0
    %2663 = vmatpush2.xpose.msra.mxu0 0.0
    %2664 = vmatprep.mubr.f32.mxu0 0.0
    %2665 = vmatmul.mubr.f32.gmra.mxu0 %v2499
    %v2666 = vpop.f32.mrf.mxu0
    %v2667 = vadd.f32 %v2590, %v2666
    %v2668 = vpop.f32.mrf.mxu0
    %2669 = vmatprep.mubr.f32.mxu0 0.0
    %2670 = vmatmul.mubr.f32.gmra.mxu0 %v2501
    %v2671 = vpop.f32.mrf.mxu0
    %v2672 = vadd.f32 %v2591, %v2671
    %v2673 = vpop.f32.mrf.mxu0
    %2674 = vdwg.mxu0
    %2675 = vset.pattern.permute.xlu0 1
    %2676 = vperm.xlu0 %2675, %v2572
    %v2677 = vpop.permute.xlu0 %2676
    %2679 = vset.pattern.permute.xlu0 1
    %2680 = vperm.xlu0 %2679, %v2577
    %v2681 = vpop.permute.xlu0 %2680
    %v2683 = vmul.f32 %v125, %v2677
    %v2684 = vmul.f32 %v126, %v2681
    %v2685 = vadd.f32 %v2667, %v2683
    %v2686 = vadd.f32 %v2672, %v2684
    %2687 = vset.pattern.permute.xlu0 2
    %2688 = vperm.xlu0 %2687, %v2572
    %v2689 = vpop.permute.xlu0 %2688
    %2691 = vset.pattern.permute.xlu0 2
    %2692 = vperm.xlu0 %2691, %v2577
    %v2693 = vpop.permute.xlu0 %2692
    %v2695 = vmul.f32 %v128, %v2689
    %v2696 = vmul.f32 %v129, %v2693
    %v2697 = vadd.f32 %v2685, %v2695
    %v2698 = vadd.f32 %v2686, %v2696
    %v2699 = vsel %vm440, %v2697, -1e+30
    %v2700 = vsel %vm441, %v2698, -1e+30
    %v2701 = vsel %vm236, %v2699, -inf
    %2702 = vmax.xlane.f32.xlu0 %v2701
    %v2703 = vpop.xlane.xlu0 %2702
    %v2704 = vsel %vm236, %v2700, -inf
    %2705 = vmax.xlane.f32.xlu0 %v2704
    %v2706 = vpop.xlane.xlu0 %2705
    %v2707 = vsub.f32 %v2699, %v2703
    %v2708 = vsub.f32 %v2700, %v2706
    %v2709 = vmul.f32 %v2707, 1.442695
    %v2710 = vpow.pop %v2709
    %v2711 = vmul.f32 %v2708, 1.442695
    %v2712 = vpow.pop %v2711
    %v2713 = vmul.f32 %v2710, %v120
    %v2714 = vmul.f32 %v2712, %v121
    %v2715 = vsel %vm236, %v2713, 0.0
    %2716 = vadd.xlane.f32.xlu0 %v2715
    %v2717 = vpop.xlane.xlu0 %2716
    %v2718 = vsel %vm236, %v2714, 0.0
    %2719 = vadd.xlane.f32.xlu0 %v2718
    %v2720 = vpop.xlane.xlu0 %2719
    %vm2721 = vcmp.eq.f32.partialorder %v2717, 0.0
    %vm2722 = vcmp.eq.f32.partialorder %v2720, 0.0
    %v2723 = vsel %vm2721, 1.0, %v2717
    %v2724 = vsel %vm2722, 1.0, %v2720
    %v2725 = vrcp.pop %v2723
    %v2726 = vmul.f32 1.0, %v2725
    %v2727 = vrcp.pop %v2724
    %v2728 = vmul.f32 1.0, %v2727
    %v2729 = vmul.f32 %v2713, %v2726
    %v2730 = vmul.f32 %v2714, %v2728
    %v2731 = vmul.f32 %v2729, %v122
    %v2732 = vmul.f32 %v2730, %v123
    %v2733 = vsel %vm236, %v2731, 0.0
    %2734 = vadd.xlane.f32.xlu0 %v2733
    %v2735 = vpop.xlane.xlu0 %2734
    %v2736 = vsel %vm236, %v2732, 0.0
    %2737 = vadd.xlane.f32.xlu0 %v2736
    %v2738 = vpop.xlane.xlu0 %2737
    %v2739 = vmul.f32 %v2729, %v125
    %v2740 = vmul.f32 %v2730, %v126
    %v2741 = vsel %vm236, %v2739, 0.0
    %2742 = vadd.xlane.f32.xlu0 %v2741
    %v2743 = vpop.xlane.xlu0 %2742
    %v2744 = vsel %vm236, %v2740, 0.0
    %2745 = vadd.xlane.f32.xlu0 %v2744
    %v2746 = vpop.xlane.xlu0 %2745
    %v2747 = vmul.f32 %v2729, %v128
    %v2748 = vmul.f32 %v2730, %v129
    %v2749 = vsel %vm236, %v2747, 0.0
    %2750 = vadd.xlane.f32.xlu0 %v2749
    %v2751 = vpop.xlane.xlu0 %2750
    %v2752 = vsel %vm236, %v2748, 0.0
    %2753 = vadd.xlane.f32.xlu0 %v2752
    %v2754 = vpop.xlane.xlu0 %2753
    %v2755 = vsel %vm498, %v2735, %v2743
    %v2756 = vsel %vm498, %v2738, %v2746
    %v2757 = vsel %vm501, %v2755, %v2751
    %v2758 = vsel %vm501, %v2756, %v2754
    %2759 = vrot.lane.b32.xlu0 %v1952, 56
    %v2760 = vpop.permute.xlu0 %2759
    %2761 = vrot.lane.b32.xlu0 %v1957, 56
    %v2762 = vpop.permute.xlu0 %2761
    %v2763 = vrot.slane %v1961, 1
    %v2764 = vsel %vm1962, %v2760, 0
    %v2766 = vsel %vm1962, %v2762, 0
    %v2768 = vsel %vm1962, %v2763, 0
    %2770 = vmatprep.subr.mxu0 0.0
    %2771 = vmatpush1.xpose.msra.mxu0 0.0
    %2772 = vmatprep.subr.mxu0 0.0
    %2773 = vmatpush1.xpose.msra.mxu0 0.0
    %2774 = vmatprep.subr.mxu0 0.0
    %2775 = vmatpush1.xpose.msra.mxu0 0.0
    %2776 = vmatprep.subr.mxu0 0.0
    %2777 = vmatpush1.xpose.msra.mxu0 0.0
    %2778 = vmatprep.subr.mxu0 0.0
    %2779 = vmatpush1.xpose.msra.mxu0 0.0
    %2780 = vmatprep.subr.mxu0 0.0
    %2781 = vmatpush1.xpose.msra.mxu0 0.0
    %2782 = vmatprep.subr.mxu0 0.0
    %2783 = vmatpush1.xpose.msra.mxu0 0.0
    %2784 = vmatprep.subr.mxu0 0.0
    %2785 = vmatpush1.xpose.msra.mxu0 0.0
    %2786 = vmatprep.subr.mxu0 0.0
    %2787 = vmatpush1.xpose.msra.mxu0 0.0
    %2788 = vmatprep.subr.mxu0 0.0
    %2789 = vmatpush1.xpose.msra.mxu0 0.0
    %2790 = vmatprep.subr.mxu0 0.0
    %2791 = vmatpush1.xpose.msra.mxu0 0.0
    %2792 = vmatprep.subr.mxu0 0.0
    %2793 = vmatpush1.xpose.msra.mxu0 0.0
    %2794 = vmatprep.subr.mxu0 0.0
    %2795 = vmatpush1.xpose.msra.mxu0 0.0
    %2796 = vmatprep.subr.mxu0 0.0
    %2797 = vmatpush1.xpose.msra.mxu0 0.0
    %2798 = vmatprep.subr.mxu0 0.0
    %2799 = vmatpush1.xpose.msra.mxu0 0.0
    %2800 = vmatprep.subr.mxu0 0.0
    %2801 = vmatpush1.xpose.msra.mxu0 %v2768
    %2802 = vmatprep.subr.mxu0 0.0
    %2803 = vmatpush2.xpose.msra.mxu0 0.0
    %2804 = vmatprep.subr.mxu0 0.0
    %2805 = vmatpush2.xpose.msra.mxu0 0.0
    %2806 = vmatprep.subr.mxu0 0.0
    %2807 = vmatpush2.xpose.msra.mxu0 0.0
    %2808 = vmatprep.subr.mxu0 0.0
    %2809 = vmatpush2.xpose.msra.mxu0 0.0
    %2810 = vmatprep.subr.mxu0 0.0
    %2811 = vmatpush2.xpose.msra.mxu0 0.0
    %2812 = vmatprep.subr.mxu0 0.0
    %2813 = vmatpush2.xpose.msra.mxu0 0.0
    %2814 = vmatprep.subr.mxu0 0.0
    %2815 = vmatpush2.xpose.msra.mxu0 0.0
    %2816 = vmatprep.subr.mxu0 0.0
    %2817 = vmatpush2.xpose.msra.mxu0 0.0
    %2818 = vmatprep.subr.mxu0 0.0
    %2819 = vmatpush2.xpose.msra.mxu0 0.0
    %2820 = vmatprep.subr.mxu0 0.0
    %2821 = vmatpush2.xpose.msra.mxu0 0.0
    %2822 = vmatprep.subr.mxu0 0.0
    %2823 = vmatpush2.xpose.msra.mxu0 0.0
    %2824 = vmatprep.subr.mxu0 0.0
    %2825 = vmatpush2.xpose.msra.mxu0 0.0
    %2826 = vmatprep.subr.mxu0 0.0
    %2827 = vmatpush2.xpose.msra.mxu0 0.0
    %2828 = vmatprep.subr.mxu0 0.0
    %2829 = vmatpush2.xpose.msra.mxu0 0.0
    %2830 = vmatprep.subr.mxu0 0.0
    %2831 = vmatpush2.xpose.msra.mxu0 0.0
    %2832 = vmatprep.subr.mxu0 0.0
    %2833 = vmatpush2.xpose.msra.mxu0 0.0
    %2834 = vmatprep.mubr.f32.mxu0 0.0
    %2835 = vmatmul.mubr.f32.gmra.mxu0 %v2764
    %v2836 = vpop.f32.mrf.mxu0
    %v2837 = vadd.f32 0.0, %v2836
    %v2838 = vpop.f32.mrf.mxu0
    %2839 = vmatprep.mubr.f32.mxu0 0.0
    %2840 = vmatmul.mubr.f32.gmra.mxu0 %v2766
    %v2841 = vpop.f32.mrf.mxu0
    %v2842 = vadd.f32 0.0, %v2841
    %v2843 = vpop.f32.mrf.mxu0
    %2844 = vdwg.mxu0
    %2846 = vset.pattern.permute.xlu0 0
    %2847 = vperm.xlu0 %2846, %v2837
    %v2848 = vpop.permute.xlu0 %2847
    %2851 = vset.pattern.permute.xlu0 0
    %2852 = vperm.xlu0 %2851, %v2842
    %v2853 = vpop.permute.xlu0 %2852
    %v2855 = vmul.f32 %v122, %v2848
    %v2856 = vmul.f32 %v123, %v2853
    %2857 = vrot.lane.b32.xlu0 %v1952, 48
    %v2858 = vpop.permute.xlu0 %2857
    %2859 = vrot.lane.b32.xlu0 %v1957, 48
    %v2860 = vpop.permute.xlu0 %2859
    %v2861 = vsel %vm1962, %v2858, 0
    %v2863 = vsel %vm1962, %v2860, 0
    %2865 = vmatprep.subr.mxu0 0.0
    %2866 = vmatpush1.xpose.msra.mxu0 0.0
    %2867 = vmatprep.subr.mxu0 0.0
    %2868 = vmatpush1.xpose.msra.mxu0 0.0
    %2869 = vmatprep.subr.mxu0 0.0
    %2870 = vmatpush1.xpose.msra.mxu0 0.0
    %2871 = vmatprep.subr.mxu0 0.0
    %2872 = vmatpush1.xpose.msra.mxu0 0.0
    %2873 = vmatprep.subr.mxu0 0.0
    %2874 = vmatpush1.xpose.msra.mxu0 0.0
    %2875 = vmatprep.subr.mxu0 0.0
    %2876 = vmatpush1.xpose.msra.mxu0 0.0
    %2877 = vmatprep.subr.mxu0 0.0
    %2878 = vmatpush1.xpose.msra.mxu0 0.0
    %2879 = vmatprep.subr.mxu0 0.0
    %2880 = vmatpush1.xpose.msra.mxu0 0.0
    %2881 = vmatprep.subr.mxu0 0.0
    %2882 = vmatpush1.xpose.msra.mxu0 0.0
    %2883 = vmatprep.subr.mxu0 0.0
    %2884 = vmatpush1.xpose.msra.mxu0 0.0
    %2885 = vmatprep.subr.mxu0 0.0
    %2886 = vmatpush1.xpose.msra.mxu0 0.0
    %2887 = vmatprep.subr.mxu0 0.0
    %2888 = vmatpush1.xpose.msra.mxu0 0.0
    %2889 = vmatprep.subr.mxu0 0.0
    %2890 = vmatpush1.xpose.msra.mxu0 0.0
    %2891 = vmatprep.subr.mxu0 0.0
    %2892 = vmatpush1.xpose.msra.mxu0 0.0
    %2893 = vmatprep.subr.mxu0 0.0
    %2894 = vmatpush1.xpose.msra.mxu0 %v2863
    %2895 = vmatprep.subr.mxu0 0.0
    %2896 = vmatpush1.xpose.msra.mxu0 %v2861
    %2897 = vmatprep.subr.mxu0 0.0
    %2898 = vmatpush2.xpose.msra.mxu0 0.0
    %2899 = vmatprep.subr.mxu0 0.0
    %2900 = vmatpush2.xpose.msra.mxu0 0.0
    %2901 = vmatprep.subr.mxu0 0.0
    %2902 = vmatpush2.xpose.msra.mxu0 0.0
    %2903 = vmatprep.subr.mxu0 0.0
    %2904 = vmatpush2.xpose.msra.mxu0 0.0
    %2905 = vmatprep.subr.mxu0 0.0
    %2906 = vmatpush2.xpose.msra.mxu0 0.0
    %2907 = vmatprep.subr.mxu0 0.0
    %2908 = vmatpush2.xpose.msra.mxu0 0.0
    %2909 = vmatprep.subr.mxu0 0.0
    %2910 = vmatpush2.xpose.msra.mxu0 0.0
    %2911 = vmatprep.subr.mxu0 0.0
    %2912 = vmatpush2.xpose.msra.mxu0 0.0
    %2913 = vmatprep.subr.mxu0 0.0
    %2914 = vmatpush2.xpose.msra.mxu0 0.0
    %2915 = vmatprep.subr.mxu0 0.0
    %2916 = vmatpush2.xpose.msra.mxu0 0.0
    %2917 = vmatprep.subr.mxu0 0.0
    %2918 = vmatpush2.xpose.msra.mxu0 0.0
    %2919 = vmatprep.subr.mxu0 0.0
    %2920 = vmatpush2.xpose.msra.mxu0 0.0
    %2921 = vmatprep.subr.mxu0 0.0
    %2922 = vmatpush2.xpose.msra.mxu0 0.0
    %2923 = vmatprep.subr.mxu0 0.0
    %2924 = vmatpush2.xpose.msra.mxu0 0.0
    %2925 = vmatprep.subr.mxu0 0.0
    %2926 = vmatpush2.xpose.msra.mxu0 0.0
    %2927 = vmatprep.subr.mxu0 0.0
    %2928 = vmatpush2.xpose.msra.mxu0 0.0
    %2929 = vmatprep.mubr.f32.mxu0 0.0
    %2930 = vmatmul.mubr.f32.gmra.mxu0 %v2764
    %v2931 = vpop.f32.mrf.mxu0
    %v2932 = vadd.f32 %v2855, %v2931
    %v2933 = vpop.f32.mrf.mxu0
    %2934 = vmatprep.mubr.f32.mxu0 0.0
    %2935 = vmatmul.mubr.f32.gmra.mxu0 %v2766
    %v2936 = vpop.f32.mrf.mxu0
    %v2937 = vadd.f32 %v2856, %v2936
    %v2938 = vpop.f32.mrf.mxu0
    %2939 = vdwg.mxu0
    %2940 = vset.pattern.permute.xlu0 1
    %2941 = vperm.xlu0 %2940, %v2837
    %v2942 = vpop.permute.xlu0 %2941
    %2944 = vset.pattern.permute.xlu0 1
    %2945 = vperm.xlu0 %2944, %v2842
    %v2946 = vpop.permute.xlu0 %2945
    %v2948 = vmul.f32 %v125, %v2942
    %v2949 = vmul.f32 %v126, %v2946
    %v2950 = vadd.f32 %v2932, %v2948
    %v2951 = vadd.f32 %v2937, %v2949
    %2952 = vset.pattern.permute.xlu0 2
    %2953 = vperm.xlu0 %2952, %v2837
    %v2954 = vpop.permute.xlu0 %2953
    %2956 = vset.pattern.permute.xlu0 2
    %2957 = vperm.xlu0 %2956, %v2842
    %v2958 = vpop.permute.xlu0 %2957
    %v2960 = vmul.f32 %v128, %v2954
    %v2961 = vmul.f32 %v129, %v2958
    %v2962 = vadd.f32 %v2950, %v2960
    %v2963 = vadd.f32 %v2951, %v2961
    %v2964 = vsel %vm440, %v2962, -1e+30
    %v2965 = vsel %vm441, %v2963, -1e+30
    %v2966 = vsel %vm236, %v2964, -inf
    %2967 = vmax.xlane.f32.xlu0 %v2966
    %v2968 = vpop.xlane.xlu0 %2967
    %v2969 = vsel %vm236, %v2965, -inf
    %2970 = vmax.xlane.f32.xlu0 %v2969
    %v2971 = vpop.xlane.xlu0 %2970
    %v2972 = vsub.f32 %v2964, %v2968
    %v2973 = vsub.f32 %v2965, %v2971
    %v2974 = vmul.f32 %v2972, 1.442695
    %v2975 = vpow.pop %v2974
    %v2976 = vmul.f32 %v2973, 1.442695
    %v2977 = vpow.pop %v2976
    %v2978 = vmul.f32 %v2975, %v120
    %v2979 = vmul.f32 %v2977, %v121
    %v2980 = vsel %vm236, %v2978, 0.0
    %2981 = vadd.xlane.f32.xlu0 %v2980
    %v2982 = vpop.xlane.xlu0 %2981
    %v2983 = vsel %vm236, %v2979, 0.0
    %2984 = vadd.xlane.f32.xlu0 %v2983
    %v2985 = vpop.xlane.xlu0 %2984
    %vm2986 = vcmp.eq.f32.partialorder %v2982, 0.0
    %vm2987 = vcmp.eq.f32.partialorder %v2985, 0.0
    %v2988 = vsel %vm2986, 1.0, %v2982
    %v2989 = vsel %vm2987, 1.0, %v2985
    %v2990 = vrcp.pop %v2988
    %v2991 = vmul.f32 1.0, %v2990
    %v2992 = vrcp.pop %v2989
    %v2993 = vmul.f32 1.0, %v2992
    %v2994 = vmul.f32 %v2978, %v2991
    %v2995 = vmul.f32 %v2979, %v2993
    %v2996 = vmul.f32 %v2994, %v122
    %v2997 = vmul.f32 %v2995, %v123
    %v2998 = vsel %vm236, %v2996, 0.0
    %2999 = vadd.xlane.f32.xlu0 %v2998
    %v3000 = vpop.xlane.xlu0 %2999
    %v3001 = vsel %vm236, %v2997, 0.0
    %3002 = vadd.xlane.f32.xlu0 %v3001
    %v3003 = vpop.xlane.xlu0 %3002
    %v3004 = vmul.f32 %v2994, %v125
    %v3005 = vmul.f32 %v2995, %v126
    %v3006 = vsel %vm236, %v3004, 0.0
    %3007 = vadd.xlane.f32.xlu0 %v3006
    %v3008 = vpop.xlane.xlu0 %3007
    %v3009 = vsel %vm236, %v3005, 0.0
    %3010 = vadd.xlane.f32.xlu0 %v3009
    %v3011 = vpop.xlane.xlu0 %3010
    %v3012 = vmul.f32 %v2994, %v128
    %v3013 = vmul.f32 %v2995, %v129
    %v3014 = vsel %vm236, %v3012, 0.0
    %3015 = vadd.xlane.f32.xlu0 %v3014
    %v3016 = vpop.xlane.xlu0 %3015
    %v3017 = vsel %vm236, %v3013, 0.0
    %3018 = vadd.xlane.f32.xlu0 %v3017
    %v3019 = vpop.xlane.xlu0 %3018
    %v3020 = vsel %vm498, %v3000, %v3008
    %v3021 = vsel %vm498, %v3003, %v3011
    %v3022 = vsel %vm501, %v3020, %v3016
    %v3023 = vsel %vm501, %v3021, %v3019
    %3024 = vrot.lane.b32.xlu0 %v1952, 32
    %v3025 = vpop.permute.xlu0 %3024
    %3026 = vrot.lane.b32.xlu0 %v1957, 32
    %v3027 = vpop.permute.xlu0 %3026
    %v3028 = vrot.slane %v1961, 4
    %v3029 = vsel %vm1962, %v3025, 0
    %v3031 = vsel %vm1962, %v3027, 0
    %v3033 = vsel %vm1962, %v3028, 0
    %3035 = vmatprep.subr.mxu0 0.0
    %3036 = vmatpush1.xpose.msra.mxu0 0.0
    %3037 = vmatprep.subr.mxu0 0.0
    %3038 = vmatpush1.xpose.msra.mxu0 0.0
    %3039 = vmatprep.subr.mxu0 0.0
    %3040 = vmatpush1.xpose.msra.mxu0 0.0
    %3041 = vmatprep.subr.mxu0 0.0
    %3042 = vmatpush1.xpose.msra.mxu0 0.0
    %3043 = vmatprep.subr.mxu0 0.0
    %3044 = vmatpush1.xpose.msra.mxu0 0.0
    %3045 = vmatprep.subr.mxu0 0.0
    %3046 = vmatpush1.xpose.msra.mxu0 0.0
    %3047 = vmatprep.subr.mxu0 0.0
    %3048 = vmatpush1.xpose.msra.mxu0 0.0
    %3049 = vmatprep.subr.mxu0 0.0
    %3050 = vmatpush1.xpose.msra.mxu0 0.0
    %3051 = vmatprep.subr.mxu0 0.0
    %3052 = vmatpush1.xpose.msra.mxu0 0.0
    %3053 = vmatprep.subr.mxu0 0.0
    %3054 = vmatpush1.xpose.msra.mxu0 0.0
    %3055 = vmatprep.subr.mxu0 0.0
    %3056 = vmatpush1.xpose.msra.mxu0 0.0
    %3057 = vmatprep.subr.mxu0 0.0
    %3058 = vmatpush1.xpose.msra.mxu0 0.0
    %3059 = vmatprep.subr.mxu0 0.0
    %3060 = vmatpush1.xpose.msra.mxu0 0.0
    %3061 = vmatprep.subr.mxu0 0.0
    %3062 = vmatpush1.xpose.msra.mxu0 0.0
    %3063 = vmatprep.subr.mxu0 0.0
    %3064 = vmatpush1.xpose.msra.mxu0 0.0
    %3065 = vmatprep.subr.mxu0 0.0
    %3066 = vmatpush1.xpose.msra.mxu0 %v3033
    %3067 = vmatprep.subr.mxu0 0.0
    %3068 = vmatpush2.xpose.msra.mxu0 0.0
    %3069 = vmatprep.subr.mxu0 0.0
    %3070 = vmatpush2.xpose.msra.mxu0 0.0
    %3071 = vmatprep.subr.mxu0 0.0
    %3072 = vmatpush2.xpose.msra.mxu0 0.0
    %3073 = vmatprep.subr.mxu0 0.0
    %3074 = vmatpush2.xpose.msra.mxu0 0.0
    %3075 = vmatprep.subr.mxu0 0.0
    %3076 = vmatpush2.xpose.msra.mxu0 0.0
    %3077 = vmatprep.subr.mxu0 0.0
    %3078 = vmatpush2.xpose.msra.mxu0 0.0
    %3079 = vmatprep.subr.mxu0 0.0
    %3080 = vmatpush2.xpose.msra.mxu0 0.0
    %3081 = vmatprep.subr.mxu0 0.0
    %3082 = vmatpush2.xpose.msra.mxu0 0.0
    %3083 = vmatprep.subr.mxu0 0.0
    %3084 = vmatpush2.xpose.msra.mxu0 0.0
    %3085 = vmatprep.subr.mxu0 0.0
    %3086 = vmatpush2.xpose.msra.mxu0 0.0
    %3087 = vmatprep.subr.mxu0 0.0
    %3088 = vmatpush2.xpose.msra.mxu0 0.0
    %3089 = vmatprep.subr.mxu0 0.0
    %3090 = vmatpush2.xpose.msra.mxu0 0.0
    %3091 = vmatprep.subr.mxu0 0.0
    %3092 = vmatpush2.xpose.msra.mxu0 0.0
    %3093 = vmatprep.subr.mxu0 0.0
    %3094 = vmatpush2.xpose.msra.mxu0 0.0
    %3095 = vmatprep.subr.mxu0 0.0
    %3096 = vmatpush2.xpose.msra.mxu0 0.0
    %3097 = vmatprep.subr.mxu0 0.0
    %3098 = vmatpush2.xpose.msra.mxu0 0.0
    %3099 = vmatprep.mubr.f32.mxu0 0.0
    %3100 = vmatmul.mubr.f32.gmra.mxu0 %v3029
    %v3101 = vpop.f32.mrf.mxu0
    %v3102 = vadd.f32 0.0, %v3101
    %v3103 = vpop.f32.mrf.mxu0
    %3104 = vmatprep.mubr.f32.mxu0 0.0
    %3105 = vmatmul.mubr.f32.gmra.mxu0 %v3031
    %v3106 = vpop.f32.mrf.mxu0
    %v3107 = vadd.f32 0.0, %v3106
    %v3108 = vpop.f32.mrf.mxu0
    %3109 = vdwg.mxu0
    %3111 = vset.pattern.permute.xlu0 0
    %3112 = vperm.xlu0 %3111, %v3102
    %v3113 = vpop.permute.xlu0 %3112
    %3116 = vset.pattern.permute.xlu0 0
    %3117 = vperm.xlu0 %3116, %v3107
    %v3118 = vpop.permute.xlu0 %3117
    %v3120 = vmul.f32 %v122, %v3113
    %v3121 = vmul.f32 %v123, %v3118
    %3122 = vrot.lane.b32.xlu0 %v1952, 24
    %v3123 = vpop.permute.xlu0 %3122
    %3124 = vrot.lane.b32.xlu0 %v1957, 24
    %v3125 = vpop.permute.xlu0 %3124
    %v3126 = vsel %vm1962, %v3123, 0
    %v3128 = vsel %vm1962, %v3125, 0
    %3130 = vmatprep.subr.mxu0 0.0
    %3131 = vmatpush1.xpose.msra.mxu0 0.0
    %3132 = vmatprep.subr.mxu0 0.0
    %3133 = vmatpush1.xpose.msra.mxu0 0.0
    %3134 = vmatprep.subr.mxu0 0.0
    %3135 = vmatpush1.xpose.msra.mxu0 0.0
    %3136 = vmatprep.subr.mxu0 0.0
    %3137 = vmatpush1.xpose.msra.mxu0 0.0
    %3138 = vmatprep.subr.mxu0 0.0
    %3139 = vmatpush1.xpose.msra.mxu0 0.0
    %3140 = vmatprep.subr.mxu0 0.0
    %3141 = vmatpush1.xpose.msra.mxu0 0.0
    %3142 = vmatprep.subr.mxu0 0.0
    %3143 = vmatpush1.xpose.msra.mxu0 0.0
    %3144 = vmatprep.subr.mxu0 0.0
    %3145 = vmatpush1.xpose.msra.mxu0 0.0
    %3146 = vmatprep.subr.mxu0 0.0
    %3147 = vmatpush1.xpose.msra.mxu0 0.0
    %3148 = vmatprep.subr.mxu0 0.0
    %3149 = vmatpush1.xpose.msra.mxu0 0.0
    %3150 = vmatprep.subr.mxu0 0.0
    %3151 = vmatpush1.xpose.msra.mxu0 0.0
    %3152 = vmatprep.subr.mxu0 0.0
    %3153 = vmatpush1.xpose.msra.mxu0 0.0
    %3154 = vmatprep.subr.mxu0 0.0
    %3155 = vmatpush1.xpose.msra.mxu0 0.0
    %3156 = vmatprep.subr.mxu0 0.0
    %3157 = vmatpush1.xpose.msra.mxu0 0.0
    %3158 = vmatprep.subr.mxu0 0.0
    %3159 = vmatpush1.xpose.msra.mxu0 %v3128
    %3160 = vmatprep.subr.mxu0 0.0
    %3161 = vmatpush1.xpose.msra.mxu0 %v3126
    %3162 = vmatprep.subr.mxu0 0.0
    %3163 = vmatpush2.xpose.msra.mxu0 0.0
    %3164 = vmatprep.subr.mxu0 0.0
    %3165 = vmatpush2.xpose.msra.mxu0 0.0
    %3166 = vmatprep.subr.mxu0 0.0
    %3167 = vmatpush2.xpose.msra.mxu0 0.0
    %3168 = vmatprep.subr.mxu0 0.0
    %3169 = vmatpush2.xpose.msra.mxu0 0.0
    %3170 = vmatprep.subr.mxu0 0.0
    %3171 = vmatpush2.xpose.msra.mxu0 0.0
    %3172 = vmatprep.subr.mxu0 0.0
    %3173 = vmatpush2.xpose.msra.mxu0 0.0
    %3174 = vmatprep.subr.mxu0 0.0
    %3175 = vmatpush2.xpose.msra.mxu0 0.0
    %3176 = vmatprep.subr.mxu0 0.0
    %3177 = vmatpush2.xpose.msra.mxu0 0.0
    %3178 = vmatprep.subr.mxu0 0.0
    %3179 = vmatpush2.xpose.msra.mxu0 0.0
    %3180 = vmatprep.subr.mxu0 0.0
    %3181 = vmatpush2.xpose.msra.mxu0 0.0
    %3182 = vmatprep.subr.mxu0 0.0
    %3183 = vmatpush2.xpose.msra.mxu0 0.0
    %3184 = vmatprep.subr.mxu0 0.0
    %3185 = vmatpush2.xpose.msra.mxu0 0.0
    %3186 = vmatprep.subr.mxu0 0.0
    %3187 = vmatpush2.xpose.msra.mxu0 0.0
    %3188 = vmatprep.subr.mxu0 0.0
    %3189 = vmatpush2.xpose.msra.mxu0 0.0
    %3190 = vmatprep.subr.mxu0 0.0
    %3191 = vmatpush2.xpose.msra.mxu0 0.0
    %3192 = vmatprep.subr.mxu0 0.0
    %3193 = vmatpush2.xpose.msra.mxu0 0.0
    %3194 = vmatprep.mubr.f32.mxu0 0.0
    %3195 = vmatmul.mubr.f32.gmra.mxu0 %v3029
    %v3196 = vpop.f32.mrf.mxu0
    %v3197 = vadd.f32 %v3120, %v3196
    %v3198 = vpop.f32.mrf.mxu0
    %3199 = vmatprep.mubr.f32.mxu0 0.0
    %3200 = vmatmul.mubr.f32.gmra.mxu0 %v3031
    %v3201 = vpop.f32.mrf.mxu0
    %v3202 = vadd.f32 %v3121, %v3201
    %v3203 = vpop.f32.mrf.mxu0
    %3204 = vdwg.mxu0
    %3205 = vset.pattern.permute.xlu0 1
    %3206 = vperm.xlu0 %3205, %v3102
    %v3207 = vpop.permute.xlu0 %3206
    %3209 = vset.pattern.permute.xlu0 1
    %3210 = vperm.xlu0 %3209, %v3107
    %v3211 = vpop.permute.xlu0 %3210
    %v3213 = vmul.f32 %v125, %v3207
    %v3214 = vmul.f32 %v126, %v3211
    %v3215 = vadd.f32 %v3197, %v3213
    %v3216 = vadd.f32 %v3202, %v3214
    %3217 = vset.pattern.permute.xlu0 2
    %3218 = vperm.xlu0 %3217, %v3102
    %v3219 = vpop.permute.xlu0 %3218
    %3221 = vset.pattern.permute.xlu0 2
    %3222 = vperm.xlu0 %3221, %v3107
    %v3223 = vpop.permute.xlu0 %3222
    %v3225 = vmul.f32 %v128, %v3219
    %v3226 = vmul.f32 %v129, %v3223
    %v3227 = vadd.f32 %v3215, %v3225
    %v3228 = vadd.f32 %v3216, %v3226
    %v3229 = vsel %vm440, %v3227, -1e+30
    %v3230 = vsel %vm441, %v3228, -1e+30
    %v3231 = vsel %vm236, %v3229, -inf
    %3232 = vmax.xlane.f32.xlu0 %v3231
    %v3233 = vpop.xlane.xlu0 %3232
    %v3234 = vsel %vm236, %v3230, -inf
    %3235 = vmax.xlane.f32.xlu0 %v3234
    %v3236 = vpop.xlane.xlu0 %3235
    %v3237 = vsub.f32 %v3229, %v3233
    %v3238 = vsub.f32 %v3230, %v3236
    %v3239 = vmul.f32 %v3237, 1.442695
    %v3240 = vpow.pop %v3239
    %v3241 = vmul.f32 %v3238, 1.442695
    %v3242 = vpow.pop %v3241
    %v3243 = vmul.f32 %v3240, %v120
    %v3244 = vmul.f32 %v3242, %v121
    %v3245 = vsel %vm236, %v3243, 0.0
    %3246 = vadd.xlane.f32.xlu0 %v3245
    %v3247 = vpop.xlane.xlu0 %3246
    %v3248 = vsel %vm236, %v3244, 0.0
    %3249 = vadd.xlane.f32.xlu0 %v3248
    %v3250 = vpop.xlane.xlu0 %3249
    %vm3251 = vcmp.eq.f32.partialorder %v3247, 0.0
    %vm3252 = vcmp.eq.f32.partialorder %v3250, 0.0
    %v3253 = vsel %vm3251, 1.0, %v3247
    %v3254 = vsel %vm3252, 1.0, %v3250
    %v3255 = vrcp.pop %v3253
    %v3256 = vmul.f32 1.0, %v3255
    %v3257 = vrcp.pop %v3254
    %v3258 = vmul.f32 1.0, %v3257
    %v3259 = vmul.f32 %v3243, %v3256
    %v3260 = vmul.f32 %v3244, %v3258
    %v3261 = vmul.f32 %v3259, %v122
    %v3262 = vmul.f32 %v3260, %v123
    %v3263 = vsel %vm236, %v3261, 0.0
    %3264 = vadd.xlane.f32.xlu0 %v3263
    %v3265 = vpop.xlane.xlu0 %3264
    %v3266 = vsel %vm236, %v3262, 0.0
    %3267 = vadd.xlane.f32.xlu0 %v3266
    %v3268 = vpop.xlane.xlu0 %3267
    %v3269 = vmul.f32 %v3259, %v125
    %v3270 = vmul.f32 %v3260, %v126
    %v3271 = vsel %vm236, %v3269, 0.0
    %3272 = vadd.xlane.f32.xlu0 %v3271
    %v3273 = vpop.xlane.xlu0 %3272
    %v3274 = vsel %vm236, %v3270, 0.0
    %3275 = vadd.xlane.f32.xlu0 %v3274
    %v3276 = vpop.xlane.xlu0 %3275
    %v3277 = vmul.f32 %v3259, %v128
    %v3278 = vmul.f32 %v3260, %v129
    %v3279 = vsel %vm236, %v3277, 0.0
    %3280 = vadd.xlane.f32.xlu0 %v3279
    %v3281 = vpop.xlane.xlu0 %3280
    %v3282 = vsel %vm236, %v3278, 0.0
    %3283 = vadd.xlane.f32.xlu0 %v3282
    %v3284 = vpop.xlane.xlu0 %3283
    %v3285 = vsel %vm498, %v3265, %v3273
    %v3286 = vsel %vm498, %v3268, %v3276
    %v3287 = vsel %vm501, %v3285, %v3281
    %v3288 = vsel %vm501, %v3286, %v3284
    %3291 = vrot.lane.b32.xlu0 %v2461, 16
    %v3292 = vpop.permute.xlu0 %3291
    %3293 = vrot.lane.b32.xlu0 %v2462, 16
    %v3294 = vpop.permute.xlu0 %3293
    %3299 = vrot.lane.b32.xlu0 %v2729, 32
    %v3300 = vpop.permute.xlu0 %3299
    %3301 = vrot.lane.b32.xlu0 %v2730, 32
    %v3302 = vpop.permute.xlu0 %3301
    %3307 = vrot.lane.b32.xlu0 %v2994, 48
    %v3308 = vpop.permute.xlu0 %3307
    %3309 = vrot.lane.b32.xlu0 %v2995, 48
    %v3310 = vpop.permute.xlu0 %3309
    %3315 = vrot.lane.b32.xlu0 %v3259, 64
    %v3316 = vpop.permute.xlu0 %3315
    %3317 = vrot.lane.b32.xlu0 %v3260, 64
    %v3318 = vpop.permute.xlu0 %3317
    %v3321 = vsel %vm236, %v2196, %v3292
    %v3322 = vsel %vm236, %v2197, %v3294
    %v3323 = vsel %vm1604, %v3321, %v3300
    %v3324 = vsel %vm1604, %v3322, %v3302
    %v3325 = vsel %vm1607, %v3323, %v3308
    %v3326 = vsel %vm1607, %v3324, %v3310
    %v3327 = vsel %vm1610, %v3325, %v3316
    %v3328 = vsel %vm1610, %v3326, %v3318
    %3331 = vrot.lane.b32.xlu0 %v2489, 3
    %v3332 = vpop.permute.xlu0 %3331
    %3333 = vrot.lane.b32.xlu0 %v2490, 3
    %v3334 = vpop.permute.xlu0 %3333
    %3339 = vrot.lane.b32.xlu0 %v2757, 6
    %v3340 = vpop.permute.xlu0 %3339
    %3341 = vrot.lane.b32.xlu0 %v2758, 6
    %v3342 = vpop.permute.xlu0 %3341
    %3347 = vrot.lane.b32.xlu0 %v3022, 9
    %v3348 = vpop.permute.xlu0 %3347
    %3349 = vrot.lane.b32.xlu0 %v3023, 9
    %v3350 = vpop.permute.xlu0 %3349
    %3355 = vrot.lane.b32.xlu0 %v3287, 12
    %v3356 = vpop.permute.xlu0 %3355
    %3357 = vrot.lane.b32.xlu0 %v3288, 12
    %v3358 = vpop.permute.xlu0 %3357
    %v3361 = vsel %vm1649, %v2224, %v3332
    %v3362 = vsel %vm1649, %v2225, %v3334
    %v3363 = vsel %vm1652, %v3361, %v3340
    %v3364 = vsel %vm1652, %v3362, %v3342
    %v3365 = vsel %vm1655, %v3363, %v3348
    %v3366 = vsel %vm1655, %v3364, %v3350
    %v3367 = vsel %vm1658, %v3365, %v3356
    %v3368 = vsel %vm1658, %v3366, %v3358
    %v3370 = vsel %vm1661, %v3367, 0
    %v3373 = vsel %vm1661, %v3368, 0
    %v3375 = vsel %vm1668, %v1961, 0
    %3377 = vmatprep.subr.mxu0 0.0
    %3378 = vmatpush1.msra.mxu0 0.0
    %3379 = vmatprep.subr.mxu0 0.0
    %3380 = vmatpush1.msra.mxu0 0.0
    %3381 = vmatprep.subr.mxu0 0.0
    %3382 = vmatpush1.msra.mxu0 0.0
    %3383 = vmatprep.subr.mxu0 0.0
    %3384 = vmatpush1.msra.mxu0 0.0
    %3385 = vmatprep.subr.mxu0 0.0
    %3386 = vmatpush1.msra.mxu0 0.0
    %3387 = vmatprep.subr.mxu0 0.0
    %3388 = vmatpush1.msra.mxu0 0.0
    %3389 = vmatprep.subr.mxu0 0.0
    %3390 = vmatpush1.msra.mxu0 0.0
    %3391 = vmatprep.subr.mxu0 0.0
    %3392 = vmatpush1.msra.mxu0 0.0
    %3393 = vmatprep.subr.mxu0 0.0
    %3394 = vmatpush1.msra.mxu0 0.0
    %3395 = vmatprep.subr.mxu0 0.0
    %3396 = vmatpush1.msra.mxu0 0.0
    %3397 = vmatprep.subr.mxu0 0.0
    %3398 = vmatpush1.msra.mxu0 0.0
    %3399 = vmatprep.subr.mxu0 0.0
    %3400 = vmatpush1.msra.mxu0 0.0
    %3401 = vmatprep.subr.mxu0 0.0
    %3402 = vmatpush1.msra.mxu0 0.0
    %3403 = vmatprep.subr.mxu0 0.0
    %3404 = vmatpush1.msra.mxu0 0.0
    %3405 = vmatprep.subr.mxu0 0.0
    %3406 = vmatpush1.msra.mxu0 %v3375
    %3407 = vmatprep.subr.mxu0 0.0
    %3408 = vmatpush1.msra.mxu0 %v1960
    %3409 = vmatprep.subr.mxu0 0.0
    %3410 = vmatpush2.msra.mxu0 0.0
    %3411 = vmatprep.subr.mxu0 0.0
    %3412 = vmatpush2.msra.mxu0 0.0
    %3413 = vmatprep.subr.mxu0 0.0
    %3414 = vmatpush2.msra.mxu0 0.0
    %3415 = vmatprep.subr.mxu0 0.0
    %3416 = vmatpush2.msra.mxu0 0.0
    %3417 = vmatprep.subr.mxu0 0.0
    %3418 = vmatpush2.msra.mxu0 0.0
    %3419 = vmatprep.subr.mxu0 0.0
    %3420 = vmatpush2.msra.mxu0 0.0
    %3421 = vmatprep.subr.mxu0 0.0
    %3422 = vmatpush2.msra.mxu0 0.0
    %3423 = vmatprep.subr.mxu0 0.0
    %3424 = vmatpush2.msra.mxu0 0.0
    %3425 = vmatprep.subr.mxu0 0.0
    %3426 = vmatpush2.msra.mxu0 0.0
    %3427 = vmatprep.subr.mxu0 0.0
    %3428 = vmatpush2.msra.mxu0 0.0
    %3429 = vmatprep.subr.mxu0 0.0
    %3430 = vmatpush2.msra.mxu0 0.0
    %3431 = vmatprep.subr.mxu0 0.0
    %3432 = vmatpush2.msra.mxu0 0.0
    %3433 = vmatprep.subr.mxu0 0.0
    %3434 = vmatpush2.msra.mxu0 0.0
    %3435 = vmatprep.subr.mxu0 0.0
    %3436 = vmatpush2.msra.mxu0 0.0
    %3437 = vmatprep.subr.mxu0 0.0
    %3438 = vmatpush2.msra.mxu0 0.0
    %3439 = vmatprep.subr.mxu0 0.0
    %3440 = vmatpush2.msra.mxu0 0.0
    %3441 = vmatprep.mubr.f32.mxu0 0.0
    %3442 = vmatmul.mubr.f32.gmra.mxu0 %v3370
    %v3443 = vpop.f32.mrf.mxu0
    %v3444 = vadd.f32 0.0, %v3443
    %v3445 = vpop.f32.mrf.mxu0
    %3446 = vmatprep.mubr.f32.mxu0 0.0
    %3447 = vmatmul.mubr.f32.gmra.mxu0 %v3373
    %v3448 = vpop.f32.mrf.mxu0
    %v3449 = vadd.f32 0.0, %v3448
    %v3450 = vpop.f32.mrf.mxu0
    %3451 = vdwg.mxu0
    %3452 = vrot.lane.b32.xlu0 %v1952, 112
    %v3453 = vpop.permute.xlu0 %3452
    %3454 = vrot.lane.b32.xlu0 %v1957, 112
    %v3455 = vpop.permute.xlu0 %3454
    %3456 = vrot.lane.b32.xlu0 %v2227, 112
    %v3457 = vpop.permute.xlu0 %3456
    %3458 = vrot.lane.b32.xlu0 %v2229, 112
    %v3459 = vpop.permute.xlu0 %3458
    %3460 = vrot.lane.b32.xlu0 %v2492, 112
    %v3461 = vpop.permute.xlu0 %3460
    %3462 = vrot.lane.b32.xlu0 %v2494, 112
    %v3463 = vpop.permute.xlu0 %3462
    %3464 = vrot.lane.b32.xlu0 %v2760, 112
    %v3465 = vpop.permute.xlu0 %3464
    %3466 = vrot.lane.b32.xlu0 %v2762, 112
    %v3467 = vpop.permute.xlu0 %3466
    %3468 = vrot.lane.b32.xlu0 %v3025, 112
    %v3469 = vpop.permute.xlu0 %3468
    %3470 = vrot.lane.b32.xlu0 %v3027, 112
    %v3471 = vpop.permute.xlu0 %3470
    %v3483 = vsel %vm1776, %v3327, 0
    %v3486 = vsel %vm1776, %v3328, 0
    %3488 = vmatprep.subr.mxu0 0.0
    %3489 = vmatpush1.msra.mxu0 0.0
    %3490 = vmatprep.subr.mxu0 0.0
    %3491 = vmatpush1.msra.mxu0 0.0
    %3492 = vmatprep.subr.mxu0 0.0
    %3493 = vmatpush1.msra.mxu0 0.0
    %3494 = vmatprep.subr.mxu0 0.0
    %3495 = vmatpush1.msra.mxu0 0.0
    %3496 = vmatprep.subr.mxu0 0.0
    %3497 = vmatpush1.msra.mxu0 0.0
    %3498 = vmatprep.subr.mxu0 0.0
    %3499 = vmatpush1.msra.mxu0 0.0
    %3500 = vmatprep.subr.mxu0 0.0
    %3501 = vmatpush1.msra.mxu0 %v3471
    %3502 = vmatprep.subr.mxu0 0.0
    %3503 = vmatpush1.msra.mxu0 %v3469
    %3504 = vmatprep.subr.mxu0 0.0
    %3505 = vmatpush1.msra.mxu0 %v3467
    %3506 = vmatprep.subr.mxu0 0.0
    %3507 = vmatpush1.msra.mxu0 %v3465
    %3508 = vmatprep.subr.mxu0 0.0
    %3509 = vmatpush1.msra.mxu0 %v3463
    %3510 = vmatprep.subr.mxu0 0.0
    %3511 = vmatpush1.msra.mxu0 %v3461
    %3512 = vmatprep.subr.mxu0 0.0
    %3513 = vmatpush1.msra.mxu0 %v3459
    %3514 = vmatprep.subr.mxu0 0.0
    %3515 = vmatpush1.msra.mxu0 %v3457
    %3516 = vmatprep.subr.mxu0 0.0
    %3517 = vmatpush1.msra.mxu0 %v3455
    %3518 = vmatprep.subr.mxu0 0.0
    %3519 = vmatpush1.msra.mxu0 %v3453
    %3520 = vmatprep.subr.mxu0 0.0
    %3521 = vmatpush2.msra.mxu0 0.0
    %3522 = vmatprep.subr.mxu0 0.0
    %3523 = vmatpush2.msra.mxu0 0.0
    %3524 = vmatprep.subr.mxu0 0.0
    %3525 = vmatpush2.msra.mxu0 0.0
    %3526 = vmatprep.subr.mxu0 0.0
    %3527 = vmatpush2.msra.mxu0 0.0
    %3528 = vmatprep.subr.mxu0 0.0
    %3529 = vmatpush2.msra.mxu0 0.0
    %3530 = vmatprep.subr.mxu0 0.0
    %3531 = vmatpush2.msra.mxu0 0.0
    %3532 = vmatprep.subr.mxu0 0.0
    %3533 = vmatpush2.msra.mxu0 0.0
    %3534 = vmatprep.subr.mxu0 0.0
    %3535 = vmatpush2.msra.mxu0 0.0
    %3536 = vmatprep.subr.mxu0 0.0
    %3537 = vmatpush2.msra.mxu0 0.0
    %3538 = vmatprep.subr.mxu0 0.0
    %3539 = vmatpush2.msra.mxu0 0.0
    %3540 = vmatprep.subr.mxu0 0.0
    %3541 = vmatpush2.msra.mxu0 0.0
    %3542 = vmatprep.subr.mxu0 0.0
    %3543 = vmatpush2.msra.mxu0 0.0
    %3544 = vmatprep.subr.mxu0 0.0
    %3545 = vmatpush2.msra.mxu0 0.0
    %3546 = vmatprep.subr.mxu0 0.0
    %3547 = vmatpush2.msra.mxu0 0.0
    %3548 = vmatprep.subr.mxu0 0.0
    %3549 = vmatpush2.msra.mxu0 0.0
    %3550 = vmatprep.subr.mxu0 0.0
    %3551 = vmatpush2.msra.mxu0 0.0
    %3552 = vmatprep.mubr.f32.mxu0 0.0
    %3553 = vmatmul.mubr.f32.gmra.mxu0 %v3483
    %v3554 = vpop.f32.mrf.mxu0
    %v3555 = vadd.f32 %v3444, %v3554
    %v3556 = vpop.f32.mrf.mxu0
    %3557 = vmatprep.mubr.f32.mxu0 0.0
    %3558 = vmatmul.mubr.f32.gmra.mxu0 %v3486
    %v3559 = vpop.f32.mrf.mxu0
    %v3560 = vadd.f32 %v3449, %v3559
    %v3561 = vpop.f32.mrf.mxu0
    %3562 = vdwg.mxu0
    %v3563 = vmul.f32 %v3555, 0.2
    %v3564 = vmul.f32 %v3560, 0.2
    %3565 = vrot.lane.b32.xlu0 %v1952, 8
    %v3566 = vpop.permute.xlu0 %3565
    %3567 = vrot.lane.b32.xlu0 %v1957, 8
    %v3568 = vpop.permute.xlu0 %3567
    %v3571 = vadd.f32 %v3563, %v3566
    %v3572 = vadd.f32 %v3564, %v3568
    %v3573 = vmax.f32 %v3571, 0.0
    %v3574 = vmax.f32 %v3572, 0.0
    %v3575 = vld [vmem:[#allocation10] sm:$0xff]
    %v3576 = vld [vmem:[%s10] sm:$0x1]
    %v3578 = vlaneseq
    %v3579 = vshrl.u32 %v3578, 7
    %v3580 = vsub.s32 0, %v3579
    %v3581 = vrot.slane %v3576, %v3580
    %v3584 = vsel %vm1962, %v3573, 0
    %v3587 = vsel %vm1962, %v3574, 0
    %3589 = vmatprep.subr.mxu0 0.0
    %3590 = vmatpush1.msra.mxu0 0.0
    %3591 = vmatprep.subr.mxu0 0.0
    %3592 = vmatpush1.msra.mxu0 0.0
    %3593 = vmatprep.subr.mxu0 0.0
    %3594 = vmatpush1.msra.mxu0 0.0
    %3595 = vmatprep.subr.mxu0 0.0
    %3596 = vmatpush1.msra.mxu0 0.0
    %3597 = vmatprep.subr.mxu0 0.0
    %3598 = vmatpush1.msra.mxu0 0.0
    %3599 = vmatprep.subr.mxu0 0.0
    %3600 = vmatpush1.msra.mxu0 0.0
    %3601 = vmatprep.subr.mxu0 0.0
    %3602 = vmatpush1.msra.mxu0 0.0
    %3603 = vmatprep.subr.mxu0 0.0
    %3604 = vmatpush1.msra.mxu0 0.0
    %3605 = vmatprep.subr.mxu0 0.0
    %3606 = vmatpush1.msra.mxu0 0.0
    %3607 = vmatprep.subr.mxu0 0.0
    %3608 = vmatpush1.msra.mxu0 0.0
    %3609 = vmatprep.subr.mxu0 0.0
    %3610 = vmatpush1.msra.mxu0 0.0
    %3611 = vmatprep.subr.mxu0 0.0
    %3612 = vmatpush1.msra.mxu0 0.0
    %3613 = vmatprep.subr.mxu0 0.0
    %3614 = vmatpush1.msra.mxu0 0.0
    %3615 = vmatprep.subr.mxu0 0.0
    %3616 = vmatpush1.msra.mxu0 0.0
    %3617 = vmatprep.subr.mxu0 0.0
    %3618 = vmatpush1.msra.mxu0 0.0
    %3619 = vmatprep.subr.mxu0 0.0
    %3620 = vmatpush1.msra.mxu0 %v3575
    %3621 = vmatprep.subr.mxu0 0.0
    %3622 = vmatpush2.msra.mxu0 0.0
    %3623 = vmatprep.subr.mxu0 0.0
    %3624 = vmatpush2.msra.mxu0 0.0
    %3625 = vmatprep.subr.mxu0 0.0
    %3626 = vmatpush2.msra.mxu0 0.0
    %3627 = vmatprep.subr.mxu0 0.0
    %3628 = vmatpush2.msra.mxu0 0.0
    %3629 = vmatprep.subr.mxu0 0.0
    %3630 = vmatpush2.msra.mxu0 0.0
    %3631 = vmatprep.subr.mxu0 0.0
    %3632 = vmatpush2.msra.mxu0 0.0
    %3633 = vmatprep.subr.mxu0 0.0
    %3634 = vmatpush2.msra.mxu0 0.0
    %3635 = vmatprep.subr.mxu0 0.0
    %3636 = vmatpush2.msra.mxu0 0.0
    %3637 = vmatprep.subr.mxu0 0.0
    %3638 = vmatpush2.msra.mxu0 0.0
    %3639 = vmatprep.subr.mxu0 0.0
    %3640 = vmatpush2.msra.mxu0 0.0
    %3641 = vmatprep.subr.mxu0 0.0
    %3642 = vmatpush2.msra.mxu0 0.0
    %3643 = vmatprep.subr.mxu0 0.0
    %3644 = vmatpush2.msra.mxu0 0.0
    %3645 = vmatprep.subr.mxu0 0.0
    %3646 = vmatpush2.msra.mxu0 0.0
    %3647 = vmatprep.subr.mxu0 0.0
    %3648 = vmatpush2.msra.mxu0 0.0
    %3649 = vmatprep.subr.mxu0 0.0
    %3650 = vmatpush2.msra.mxu0 0.0
    %3651 = vmatprep.subr.mxu0 0.0
    %3652 = vmatpush2.msra.mxu0 0.0
    %3653 = vmatprep.mubr.f32.mxu0 0.0
    %3654 = vmatmul.mubr.f32.gmra.mxu0 %v3584
    %v3655 = vpop.f32.mrf.mxu0
    %v3656 = vadd.f32 %v3581, %v3655
    %v3657 = vpop.f32.mrf.mxu0
    %3658 = vmatprep.mubr.f32.mxu0 0.0
    %3659 = vmatmul.mubr.f32.gmra.mxu0 %v3587
    %v3660 = vpop.f32.mrf.mxu0
    %v3661 = vadd.f32 %v3581, %v3660
    %v3662 = vpop.f32.mrf.mxu0
    %3663 = vdwg.mxu0
    %v3664 = vmax.f32 %v3656, 0.0
    %v3665 = vmax.f32 %v3661, 0.0
    %v3666 = vld [vmem:[%s11] sm:$0xff]
    %v3667 = vld [vmem:[%s11 + $0x8] sm:$0xff]
    %v3668 = vld [vmem:[%s12] sm:$0x1]
    %v3670 = vlaneseq
    %v3671 = vshrl.u32 %v3670, 7
    %v3672 = vsub.s32 0, %v3671
    %v3673 = vrot.slane %v3668, %v3672
    %v3676 = vsel %vm236, %v3664, 0
    %v3679 = vsel %vm236, %v3665, 0
    %3681 = vmatprep.subr.mxu0 0.0
    %3682 = vmatpush1.msra.mxu0 0.0
    %3683 = vmatprep.subr.mxu0 0.0
    %3684 = vmatpush1.msra.mxu0 0.0
    %3685 = vmatprep.subr.mxu0 0.0
    %3686 = vmatpush1.msra.mxu0 0.0
    %3687 = vmatprep.subr.mxu0 0.0
    %3688 = vmatpush1.msra.mxu0 0.0
    %3689 = vmatprep.subr.mxu0 0.0
    %3690 = vmatpush1.msra.mxu0 0.0
    %3691 = vmatprep.subr.mxu0 0.0
    %3692 = vmatpush1.msra.mxu0 0.0
    %3693 = vmatprep.subr.mxu0 0.0
    %3694 = vmatpush1.msra.mxu0 0.0
    %3695 = vmatprep.subr.mxu0 0.0
    %3696 = vmatpush1.msra.mxu0 0.0
    %3697 = vmatprep.subr.mxu0 0.0
    %3698 = vmatpush1.msra.mxu0 0.0
    %3699 = vmatprep.subr.mxu0 0.0
    %3700 = vmatpush1.msra.mxu0 0.0
    %3701 = vmatprep.subr.mxu0 0.0
    %3702 = vmatpush1.msra.mxu0 0.0
    %3703 = vmatprep.subr.mxu0 0.0
    %3704 = vmatpush1.msra.mxu0 0.0
    %3705 = vmatprep.subr.mxu0 0.0
    %3706 = vmatpush1.msra.mxu0 0.0
    %3707 = vmatprep.subr.mxu0 0.0
    %3708 = vmatpush1.msra.mxu0 0.0
    %3709 = vmatprep.subr.mxu0 0.0
    %3710 = vmatpush1.msra.mxu0 %v3667
    %3711 = vmatprep.subr.mxu0 0.0
    %3712 = vmatpush1.msra.mxu0 %v3666
    %3713 = vmatprep.subr.mxu0 0.0
    %3714 = vmatpush2.msra.mxu0 0.0
    %3715 = vmatprep.subr.mxu0 0.0
    %3716 = vmatpush2.msra.mxu0 0.0
    %3717 = vmatprep.subr.mxu0 0.0
    %3718 = vmatpush2.msra.mxu0 0.0
    %3719 = vmatprep.subr.mxu0 0.0
    %3720 = vmatpush2.msra.mxu0 0.0
    %3721 = vmatprep.subr.mxu0 0.0
    %3722 = vmatpush2.msra.mxu0 0.0
    %3723 = vmatprep.subr.mxu0 0.0
    %3724 = vmatpush2.msra.mxu0 0.0
    %3725 = vmatprep.subr.mxu0 0.0
    %3726 = vmatpush2.msra.mxu0 0.0
    %3727 = vmatprep.subr.mxu0 0.0
    %3728 = vmatpush2.msra.mxu0 0.0
    %3729 = vmatprep.subr.mxu0 0.0
    %3730 = vmatpush2.msra.mxu0 0.0
    %3731 = vmatprep.subr.mxu0 0.0
    %3732 = vmatpush2.msra.mxu0 0.0
    %3733 = vmatprep.subr.mxu0 0.0
    %3734 = vmatpush2.msra.mxu0 0.0
    %3735 = vmatprep.subr.mxu0 0.0
    %3736 = vmatpush2.msra.mxu0 0.0
    %3737 = vmatprep.subr.mxu0 0.0
    %3738 = vmatpush2.msra.mxu0 0.0
    %3739 = vmatprep.subr.mxu0 0.0
    %3740 = vmatpush2.msra.mxu0 0.0
    %3741 = vmatprep.subr.mxu0 0.0
    %3742 = vmatpush2.msra.mxu0 0.0
    %3743 = vmatprep.subr.mxu0 0.0
    %3744 = vmatpush2.msra.mxu0 0.0
    %3745 = vmatprep.mubr.f32.mxu0 0.0
    %3746 = vmatmul.mubr.f32.gmra.mxu0 %v3676
    %v3747 = vpop.f32.mrf.mxu0
    %v3748 = vadd.f32 %v3673, %v3747
    %v3749 = vpop.f32.mrf.mxu0
    %3750 = vmatprep.mubr.f32.mxu0 0.0
    %3751 = vmatmul.mubr.f32.gmra.mxu0 %v3679
    %v3752 = vpop.f32.mrf.mxu0
    %v3753 = vadd.f32 %v3673, %v3752
    %v3754 = vpop.f32.mrf.mxu0
    %3755 = vdwg.mxu0
    %3756 = vst.msk [vmem:[%s13] sm:$0xff] %vm501, %v3748
    %3757 = vst.msk [vmem:[%s13 + $0x8] sm:$0xff] %vm501, %v3753
    // Predicated region
    $region78: #{tpu_custom_call.1} parent=1 // pred_check
      _
    $region79: #{tpu_custom_call.1} parent=1 // pred_check_branch
      %3759 = sbr.rel (0) target = $region81
    $region80: #{tpu_custom_call.1} parent=1 // pred_region
      _
    $region81: #{tpu_custom_call.1} parent=1 // pred_fallthru
      _
    // Predicated region
    $region82: #{tpu_custom_call.1} parent=1 // pred_check
      _
    $region83: #{tpu_custom_call.1} parent=1 // pred_check_branch
      %3761 = sbr.rel (0) target = $region85
    $region84: #{tpu_custom_call.1} parent=1 // pred_region
      _
    $region85: #{tpu_custom_call.1} parent=1 // pred_fallthru
      _
    %3762 = vsyncpa [#allocation3], 1
    %3763 = vsyncpa [#allocation5], 1
    %3764 = vsyncpa [#allocation8], 1
    %3765 = vsyncpa [#allocation11], 1

</llo_original>
